<compile_context>
chip_gen: v5e
topology: v5e:2x2
jax: 0.10.0
libtpu: 0.0.40
codegen_flags: <defaults>
</compile_context>

<pallas_src>
import math

import jax
import jax.numpy as jnp
from jax import lax
from jax.experimental import pallas as pl
from jax.experimental.pallas import tpu as pltpu


def _sigmoid(x):
    # One EUP op (tanh) instead of exp + reciprocal.
    return 0.5 * jnp.tanh(0.5 * x) + 0.5


# ---------------------------------------------------------------------------
# Fused kernel factory: num_layers x LSTM + ReLU + Linear head, one invocation.
# ---------------------------------------------------------------------------
def _make_fused_kernel(num_layers, T, B, Hg):
    """Ref order:
      x_ref            : (T*B, Din0)                               [input, VMEM]
      per layer l      : wx_ref (Din_l, 4Hg), wh_ref (Hg, 4Hg), b_ref (1, 4Hg)
      wfc_ref (Hg, Cpad), bfc_ref (1, Cpad)
      out_ref          : (B, Cpad)                                  [output]
      proj_ref (T*B, 4Hg)                                           [scratch]
      hseq_ref (T*B, Hg)     (only if num_layers > 1)               [scratch]
    """
    unroll_cfg = True if T <= 16 else 8

    def kernel(*refs):
        x_ref = refs[0]
        layer_refs = [(refs[1 + 3 * l], refs[2 + 3 * l], refs[3 + 3 * l])
                      for l in range(num_layers)]
        wfc_ref = refs[1 + 3 * num_layers]
        bfc_ref = refs[2 + 3 * num_layers]
        out_ref = refs[3 + 3 * num_layers]
        proj_ref = refs[4 + 3 * num_layers]
        hseq_ref = refs[5 + 3 * num_layers] if num_layers > 1 else None

        h_last = jnp.zeros((B, Hg), jnp.float32)

        for l in range(num_layers):
            wx_ref, wh_ref, b_ref = layer_refs[l]
            is_last = (l == num_layers - 1)

            # (1) Input-side gate projection for ALL timesteps (bias folded in):
            #     (T*B, Din_l) @ (Din_l, 4Hg) + b -> (T*B, 4Hg) in VMEM scratch.
            inp = x_ref[...] if l == 0 else hseq_ref[...]
            proj_ref[...] = (jnp.dot(inp, wx_ref[...],
                                     preferred_element_type=jnp.float32)
                             + b_ref[...])

            wh = wh_ref[...]                      # (Hg, 4Hg) time-invariant

            # (2a) Peeled t = 0 step: h0 = c0 = 0 -> no recurrent matmul,
            #      no forget-gate term.  Gate slices are 128-lane aligned.
            g0 = proj_ref[0:B, :]                 # (B, 4Hg), bias already added
            i_g = _sigmoid(g0[:, 0 * Hg:1 * Hg])
            g_g = jnp.tanh(g0[:, 2 * Hg:3 * Hg])
            o_g = _sigmoid(g0[:, 3 * Hg:4 * Hg])
            c0 = i_g * g_g
            h0 = o_g * jnp.tanh(c0)
            if (not is_last) and T > 1:
                hseq_ref[0:B, :] = h0

            # (2b) Remaining timesteps: only the small recurrent matmul per step.
            def step(t, carry):
                h_prev, c_prev = carry
                row = pl.multiple_of(t * B, B)    # 8-sublane aligned offset
                gates = (proj_ref[pl.ds(row, B), :]
                         + jnp.dot(h_prev, wh,
                                   preferred_element_type=jnp.float32))

                i_g = _sigmoid(gates[:, 0 * Hg:1 * Hg])
                f_g = _sigmoid(gates[:, 1 * Hg:2 * Hg])
                g_g = jnp.tanh(gates[:, 2 * Hg:3 * Hg])
                o_g = _sigmoid(gates[:, 3 * Hg:4 * Hg])

                c_new = f_g * c_prev + i_g * g_g
                h_new = o_g * jnp.tanh(c_new)

                if not is_last:                   # only non-last layers stash h_t
                    hseq_ref[pl.ds(row, B), :] = h_new
                return (h_new, c_new)

            h_last, _ = lax.fori_loop(1, T, step, (h0, c0), unroll=unroll_cfg)

        # (3) ReLU + Linear head into a lane-dense (B, Cpad) block.
        h_relu = jnp.maximum(h_last, 0.0)
        out_ref[...] = (jnp.dot(h_relu, wfc_ref[...],
                                preferred_element_type=jnp.float32)
                        + bfc_ref[...])

    return kernel


# ---------------------------------------------------------------------------
# Wrapper: layout plumbing + single pallas_call
# ---------------------------------------------------------------------------
def lstm1_forward(x_nct, params, num_layers):
    """x_nct: (batch, input_size, seq_len) -- PyTorch LSTM1 input layout."""
    x = x_nct.astype(jnp.float32)
    B, Din, T = x.shape
    H = params["lstm"][0]["w_hh"].shape[1]
    C = params["fc"]["w"].shape[0]

    B_pad = ((B + 7) // 8) * 8            # sublane-aligned batch
    Hg = ((H + 127) // 128) * 128         # per-gate lane-aligned width
    C_pad = ((C + 127) // 128) * 128      # lane-dense head output

    # (B, Din, T) -> (T, B, Din) -> pad batch -> flatten time-major rows.
    x_tbf = jnp.transpose(x, (2, 0, 1))
    x_tbf = jnp.pad(x_tbf, ((0, 0), (0, B_pad - B), (0, 0)))
    x2d = x_tbf.reshape(T * B_pad, Din)

    flat = []
    for l in range(num_layers):
        p = params["lstm"][l]
        din_l = Din if l == 0 else Hg     # layer >0 consumes the padded h_seq
        din_real = Din if l == 0 else H
        w_ih = p["w_ih"].astype(jnp.float32)          # (4H, din_real)
        w_hh = p["w_hh"].astype(jnp.float32)          # (4H, H)
        b = (p["b_ih"] + p["b_hh"]).astype(jnp.float32)

        wx = jnp.zeros((din_l, 4 * Hg), jnp.float32)
        wh = jnp.zeros((Hg, 4 * Hg), jnp.float32)
        bb = jnp.zeros((1, 4 * Hg), jnp.float32)
        for g in range(4):                 # PyTorch gate order: i, f, g, o
            wx = wx.at[:din_real, g * Hg:g * Hg + H].set(
                jnp.transpose(w_ih[g * H:(g + 1) * H, :]))
            wh = wh.at[:H, g * Hg:g * Hg + H].set(
                jnp.transpose(w_hh[g * H:(g + 1) * H, :]))
            bb = bb.at[0, g * Hg:g * Hg + H].set(b[g * H:(g + 1) * H])
        flat += [wx, wh, bb]

    wfc = jnp.zeros((Hg, C_pad), jnp.float32).at[:H, :C].set(
        jnp.transpose(params["fc"]["w"]).astype(jnp.float32))
    bfc = jnp.zeros((1, C_pad), jnp.float32).at[0, :C].set(
        params["fc"]["b"].astype(jnp.float32))
    flat += [wfc, bfc]

    kernel = _make_fused_kernel(num_layers, T, B_pad, Hg)

    scratch_shapes = [pltpu.VMEM((T * B_pad, 4 * Hg), jnp.float32)]   # gate proj
    if num_layers > 1:
        scratch_shapes.append(pltpu.VMEM((T * B_pad, Hg), jnp.float32))  # h_seq

    # VMEM budget: resident inputs + output + scratch, with headroom.
    resident_bytes = (x2d.size + sum(a.size for a in flat)
                      + B_pad * C_pad
                      + T * B_pad * 4 * Hg
                      + (T * B_pad * Hg if num_layers > 1 else 0)) * 4
    vmem_limit = int(min(64 << 20, max(16 << 20, resident_bytes + (8 << 20))))

    out = pl.pallas_call(
        kernel,
        out_shape=jax.ShapeDtypeStruct((B_pad, C_pad), jnp.float32),
        in_specs=[pl.BlockSpec(memory_space=pltpu.MemorySpace.VMEM)]
                 * (1 + len(flat)),
        out_specs=pl.BlockSpec(memory_space=pltpu.MemorySpace.VMEM),
        scratch_shapes=scratch_shapes,
        compiler_params=pltpu.CompilerParams(vmem_limit_bytes=vmem_limit),
    )(x2d, *flat)

    return out[:B, :C]


# ---------------------------------------------------------------------------
# Deterministic parameter init (PyTorch-style U(-1/sqrt(H), 1/sqrt(H)))
# ---------------------------------------------------------------------------
def init_params(key, num_classes, input_size, hidden_size, num_layers):
    params = {"lstm": [], "fc": {}}
    k = 1.0 / math.sqrt(hidden_size)
    for layer in range(num_layers):
        din = input_size if layer == 0 else hidden_size
        key, k1, k2, k3, k4 = jax.random.split(key, 5)
        params["lstm"].append({
            "w_ih": jax.random.uniform(k1, (4 * hidden_size, din), jnp.float32, -k, k),
            "w_hh": jax.random.uniform(k2, (4 * hidden_size, hidden_size), jnp.float32, -k, k),
            "b_ih": jax.random.uniform(k3, (4 * hidden_size,), jnp.float32, -k, k),
            "b_hh": jax.random.uniform(k4, (4 * hidden_size,), jnp.float32, -k, k),
        })
    key, k1, k2 = jax.random.split(key, 3)
    params["fc"]["w"] = jax.random.uniform(k1, (num_classes, hidden_size), jnp.float32, -k, k)
    params["fc"]["b"] = jax.random.uniform(k2, (num_classes,), jnp.float32, -k, k)
    return params


# ---------------------------------------------------------------------------
# Pure-JAX reference (for self-check)
# ---------------------------------------------------------------------------
def reference_forward(x_nct, params, num_layers, hidden_size):
    x = jnp.transpose(x_nct.astype(jnp.float32), (0, 2, 1))  # (B, T, F)
    B, T, _ = x.shape
    seq = jnp.transpose(x, (1, 0, 2))                        # (T, B, F)
    for layer in range(num_layers):
        p = params["lstm"][layer]
        w_ih, w_hh = p["w_ih"], p["w_hh"]
        bias = p["b_ih"] + p["b_hh"]
        H = hidden_size

        def step(carry, x_t):
            h, c = carry
            gates = x_t @ w_ih.T + h @ w_hh.T + bias
            i = jax.nn.sigmoid(gates[:, 0 * H:1 * H])
            f = jax.nn.sigmoid(gates[:, 1 * H:2 * H])
            g = jnp.tanh(gates[:, 2 * H:3 * H])
            o = jax.nn.sigmoid(gates[:, 3 * H:4 * H])
            c = f * c + i * g
            h = o * jnp.tanh(c)
            return (h, c), h

        init = (jnp.zeros((B, H), jnp.float32), jnp.zeros((B, H), jnp.float32))
        (_, _), seq = jax.lax.scan(step, init, seq)
    hn = seq[-1]
    return jnp.maximum(hn, 0.0) @ params["fc"]["w"].T + params["fc"]["b"]


if __name__ == "__main__":
    # Small shapes consistent with the module's forward:
    batch, input_size, seq_len = 4, 8, 8
    hidden_size, num_layers, num_classes = 32, 2, 5

    key = jax.random.PRNGKey(0)
    key, kx, kp = jax.random.split(key, 3)
    x = jax.random.normal(kx, (batch, input_size, seq_len), jnp.float32)  # (B, C, T)
    params = init_params(kp, num_classes, input_size, hidden_size, num_layers)

    out = lstm1_forward(x, params, num_layers)
    out = jax.block_until_ready(out)

    ref = reference_forward(x, params, num_layers, hidden_size)
    assert out.shape == (batch, num_classes)
    assert jnp.allclose(out, ref, atol=2e-4, rtol=2e-4), "mismatch vs JAX reference"

    print("KERNEL_OK")
</pallas_src>

<mosaic_0001>
module attributes {stable_mosaic.version = 11 : i64} {
  func.func @kernel(%arg0: memref<64x8xf32, #tpu.memory_space<vmem>>, %arg1: memref<8x512xf32, #tpu.memory_space<vmem>>, %arg2: memref<128x512xf32, #tpu.memory_space<vmem>>, %arg3: memref<1x512xf32, #tpu.memory_space<vmem>>, %arg4: memref<128x512xf32, #tpu.memory_space<vmem>>, %arg5: memref<128x512xf32, #tpu.memory_space<vmem>>, %arg6: memref<1x512xf32, #tpu.memory_space<vmem>>, %arg7: memref<128x128xf32, #tpu.memory_space<vmem>>, %arg8: memref<1x128xf32, #tpu.memory_space<vmem>>, %arg9: memref<8x128xf32, #tpu.memory_space<vmem>>, %arg10: memref<64x512xf32, #tpu.memory_space<vmem>>, %arg11: memref<64x128xf32, #tpu.memory_space<vmem>>) attributes {dimension_semantics = [], scalar_prefetch = 0 : i64, scratch_operands = 2 : i64, tpu.core_type = #tpu.core_type<tc>} {
    %c0 = arith.constant 0 : index
    %c0_0 = arith.constant 0 : index
    %0 = vector.load %arg0[%c0, %c0_0] : memref<64x8xf32, #tpu.memory_space<vmem>>, vector<64x8xf32>
    %c0_1 = arith.constant 0 : index
    %c0_2 = arith.constant 0 : index
    %1 = vector.load %arg1[%c0_1, %c0_2] : memref<8x512xf32, #tpu.memory_space<vmem>>, vector<8x512xf32>
    %cst = arith.constant dense<0.000000e+00> : vector<64x512xf32>
    %2 = tpu.matmul %0, %1, %cst {dimension_numbers = #tpu.dot_dimension_numbers<[1], [0], [0], [1], [0, 0, 1, 1], [], []>} : vector<64x8xf32>, vector<8x512xf32>, vector<64x512xf32> -> vector<64x512xf32>
    %c0_3 = arith.constant 0 : index
    %c0_4 = arith.constant 0 : index
    %3 = vector.load %arg3[%c0_3, %c0_4] : memref<1x512xf32, #tpu.memory_space<vmem>>, vector<1x512xf32>
    %4 = vector.broadcast %3 : vector<1x512xf32> to vector<64x512xf32>
    %5 = arith.addf %2, %4 : vector<64x512xf32>
    %c0_5 = arith.constant 0 : index
    %c0_6 = arith.constant 0 : index
    %6 = vector.load %arg10[%c0_5, %c0_6] : memref<64x512xf32, #tpu.memory_space<vmem>>, vector<64x512xf32>
    tpu.vector_store %arg10[%c0_5, %c0_6], %5 {strides = array<i32>} : memref<64x512xf32, #tpu.memory_space<vmem>>, vector<64x512xf32>,
    %c0_7 = arith.constant 0 : index
    %c0_8 = arith.constant 0 : index
    %7 = vector.load %arg2[%c0_7, %c0_8] : memref<128x512xf32, #tpu.memory_space<vmem>>, vector<128x512xf32>
    %c0_9 = arith.constant 0 : index
    %c0_10 = arith.constant 0 : index
    %8 = vector.load %arg10[%c0_9, %c0_10] : memref<64x512xf32, #tpu.memory_space<vmem>>, vector<8x512xf32>
    %9 = vector.extract_strided_slice %8 {offsets = [0, 0], sizes = [8, 128], strides = [1, 1]} : vector<8x512xf32> to vector<8x128xf32>
    %cst_11 = arith.constant 5.000000e-01 : f32
    %10 = vector.broadcast %cst_11 : f32 to vector<8x128xf32>
    %11 = arith.mulf %10, %9 : vector<8x128xf32>
    %12 = math.tanh %11 : vector<8x128xf32>
    %cst_12 = arith.constant 5.000000e-01 : f32
    %13 = vector.broadcast %cst_12 : f32 to vector<8x128xf32>
    %14 = arith.mulf %13, %12 : vector<8x128xf32>
    %cst_13 = arith.constant 5.000000e-01 : f32
    %15 = vector.broadcast %cst_13 : f32 to vector<8x128xf32>
    %16 = arith.addf %14, %15 : vector<8x128xf32>
    %17 = vector.extract_strided_slice %8 {offsets = [0, 256], sizes = [8, 128], strides = [1, 1]} : vector<8x512xf32> to vector<8x128xf32>
    %18 = math.tanh %17 : vector<8x128xf32>
    %19 = vector.extract_strided_slice %8 {offsets = [0, 384], sizes = [8, 128], strides = [1, 1]} : vector<8x512xf32> to vector<8x128xf32>
    %cst_14 = arith.constant 5.000000e-01 : f32
    %20 = vector.broadcast %cst_14 : f32 to vector<8x128xf32>
    %21 = arith.mulf %20, %19 : vector<8x128xf32>
    %22 = math.tanh %21 : vector<8x128xf32>
    %cst_15 = arith.constant 5.000000e-01 : f32
    %23 = vector.broadcast %cst_15 : f32 to vector<8x128xf32>
    %24 = arith.mulf %23, %22 : vector<8x128xf32>
    %cst_16 = arith.constant 5.000000e-01 : f32
    %25 = vector.broadcast %cst_16 : f32 to vector<8x128xf32>
    %26 = arith.addf %24, %25 : vector<8x128xf32>
    %27 = arith.mulf %16, %18 : vector<8x128xf32>
    %28 = math.tanh %27 : vector<8x128xf32>
    %29 = arith.mulf %26, %28 : vector<8x128xf32>
    %c0_17 = arith.constant 0 : index
    %c0_18 = arith.constant 0 : index
    %30 = vector.load %arg11[%c0_17, %c0_18] : memref<64x128xf32, #tpu.memory_space<vmem>>, vector<8x128xf32>
    tpu.vector_store %arg11[%c0_17, %c0_18], %29 {strides = array<i32>} : memref<64x128xf32, #tpu.memory_space<vmem>>, vector<8x128xf32>,
    %c1_i32 = arith.constant 1 : i32
    %c8_i32 = arith.constant 8 : i32
    %31 = arith.muli %c1_i32, %c8_i32 : i32
    %32 = tpu.assume_multiple %31, 8 : i32
    %33 = arith.index_cast %32 : i32 to index
    %c0_19 = arith.constant 0 : index
    %34 = vector.load %arg10[%33, %c0_19] : memref<64x512xf32, #tpu.memory_space<vmem>>, vector<8x512xf32>
    %cst_20 = arith.constant dense<0.000000e+00> : vector<8x512xf32>
    %35 = tpu.matmul %29, %7, %cst_20 {dimension_numbers = #tpu.dot_dimension_numbers<[1], [0], [0], [1], [0, 0, 1, 1], [], []>} : vector<8x128xf32>, vector<128x512xf32>, vector<8x512xf32> -> vector<8x512xf32>
    %36 = arith.addf %34, %35 : vector<8x512xf32>
    %37 = vector.extract_strided_slice %36 {offsets = [0, 0], sizes = [8, 128], strides = [1, 1]} : vector<8x512xf32> to vector<8x128xf32>
    %cst_21 = arith.constant 5.000000e-01 : f32
    %38 = vector.broadcast %cst_21 : f32 to vector<8x128xf32>
    %39 = arith.mulf %38, %37 : vector<8x128xf32>
    %40 = math.tanh %39 : vector<8x128xf32>
    %cst_22 = arith.constant 5.000000e-01 : f32
    %41 = vector.broadcast %cst_22 : f32 to vector<8x128xf32>
    %42 = arith.mulf %41, %40 : vector<8x128xf32>
    %cst_23 = arith.constant 5.000000e-01 : f32
    %43 = vector.broadcast %cst_23 : f32 to vector<8x128xf32>
    %44 = arith.addf %42, %43 : vector<8x128xf32>
    %45 = vector.extract_strided_slice %36 {offsets = [0, 128], sizes = [8, 128], strides = [1, 1]} : vector<8x512xf32> to vector<8x128xf32>
    %cst_24 = arith.constant 5.000000e-01 : f32
    %46 = vector.broadcast %cst_24 : f32 to vector<8x128xf32>
    %47 = arith.mulf %46, %45 : vector<8x128xf32>
    %48 = math.tanh %47 : vector<8x128xf32>
    %cst_25 = arith.constant 5.000000e-01 : f32
    %49 = vector.broadcast %cst_25 : f32 to vector<8x128xf32>
    %50 = arith.mulf %49, %48 : vector<8x128xf32>
    %cst_26 = arith.constant 5.000000e-01 : f32
    %51 = vector.broadcast %cst_26 : f32 to vector<8x128xf32>
    %52 = arith.addf %50, %51 : vector<8x128xf32>
    %53 = vector.extract_strided_slice %36 {offsets = [0, 256], sizes = [8, 128], strides = [1, 1]} : vector<8x512xf32> to vector<8x128xf32>
    %54 = math.tanh %53 : vector<8x128xf32>
    %55 = vector.extract_strided_slice %36 {offsets = [0, 384], sizes = [8, 128], strides = [1, 1]} : vector<8x512xf32> to vector<8x128xf32>
    %cst_27 = arith.constant 5.000000e-01 : f32
    %56 = vector.broadcast %cst_27 : f32 to vector<8x128xf32>
    %57 = arith.mulf %56, %55 : vector<8x128xf32>
    %58 = math.tanh %57 : vector<8x128xf32>
    %cst_28 = arith.constant 5.000000e-01 : f32
    %59 = vector.broadcast %cst_28 : f32 to vector<8x128xf32>
    %60 = arith.mulf %59, %58 : vector<8x128xf32>
    %cst_29 = arith.constant 5.000000e-01 : f32
    %61 = vector.broadcast %cst_29 : f32 to vector<8x128xf32>
    %62 = arith.addf %60, %61 : vector<8x128xf32>
    %63 = arith.mulf %52, %27 : vector<8x128xf32>
    %64 = arith.mulf %44, %54 : vector<8x128xf32>
    %65 = arith.addf %63, %64 : vector<8x128xf32>
    %66 = math.tanh %65 : vector<8x128xf32>
    %67 = arith.mulf %62, %66 : vector<8x128xf32>
    %68 = arith.index_cast %32 : i32 to index
    %c0_30 = arith.constant 0 : index
    %69 = vector.load %arg11[%68, %c0_30] : memref<64x128xf32, #tpu.memory_space<vmem>>, vector<8x128xf32>
    tpu.vector_store %arg11[%68, %c0_30], %67 {strides = array<i32>} : memref<64x128xf32, #tpu.memory_space<vmem>>, vector<8x128xf32>,
    %c2_i32 = arith.constant 2 : i32
    %c8_i32_31 = arith.constant 8 : i32
    %70 = arith.muli %c2_i32, %c8_i32_31 : i32
    %71 = tpu.assume_multiple %70, 8 : i32
    %72 = arith.index_cast %71 : i32 to index
    %c0_32 = arith.constant 0 : index
    %73 = vector.load %arg10[%72, %c0_32] : memref<64x512xf32, #tpu.memory_space<vmem>>, vector<8x512xf32>
    %cst_33 = arith.constant dense<0.000000e+00> : vector<8x512xf32>
    %74 = tpu.matmul %67, %7, %cst_33 {dimension_numbers = #tpu.dot_dimension_numbers<[1], [0], [0], [1], [0, 0, 1, 1], [], []>} : vector<8x128xf32>, vector<128x512xf32>, vector<8x512xf32> -> vector<8x512xf32>
    %75 = arith.addf %73, %74 : vector<8x512xf32>
    %76 = vector.extract_strided_slice %75 {offsets = [0, 0], sizes = [8, 128], strides = [1, 1]} : vector<8x512xf32> to vector<8x128xf32>
    %cst_34 = arith.constant 5.000000e-01 : f32
    %77 = vector.broadcast %cst_34 : f32 to vector<8x128xf32>
    %78 = arith.mulf %77, %76 : vector<8x128xf32>
    %79 = math.tanh %78 : vector<8x128xf32>
    %cst_35 = arith.constant 5.000000e-01 : f32
    %80 = vector.broadcast %cst_35 : f32 to vector<8x128xf32>
    %81 = arith.mulf %80, %79 : vector<8x128xf32>
    %cst_36 = arith.constant 5.000000e-01 : f32
    %82 = vector.broadcast %cst_36 : f32 to vector<8x128xf32>
    %83 = arith.addf %81, %82 : vector<8x128xf32>
    %84 = vector.extract_strided_slice %75 {offsets = [0, 128], sizes = [8, 128], strides = [1, 1]} : vector<8x512xf32> to vector<8x128xf32>
    %cst_37 = arith.constant 5.000000e-01 : f32
    %85 = vector.broadcast %cst_37 : f32 to vector<8x128xf32>
    %86 = arith.mulf %85, %84 : vector<8x128xf32>
    %87 = math.tanh %86 : vector<8x128xf32>
    %cst_38 = arith.constant 5.000000e-01 : f32
    %88 = vector.broadcast %cst_38 : f32 to vector<8x128xf32>
    %89 = arith.mulf %88, %87 : vector<8x128xf32>
    %cst_39 = arith.constant 5.000000e-01 : f32
    %90 = vector.broadcast %cst_39 : f32 to vector<8x128xf32>
    %91 = arith.addf %89, %90 : vector<8x128xf32>
    %92 = vector.extract_strided_slice %75 {offsets = [0, 256], sizes = [8, 128], strides = [1, 1]} : vector<8x512xf32> to vector<8x128xf32>
    %93 = math.tanh %92 : vector<8x128xf32>
    %94 = vector.extract_strided_slice %75 {offsets = [0, 384], sizes = [8, 128], strides = [1, 1]} : vector<8x512xf32> to vector<8x128xf32>
    %cst_40 = arith.constant 5.000000e-01 : f32
    %95 = vector.broadcast %cst_40 : f32 to vector<8x128xf32>
    %96 = arith.mulf %95, %94 : vector<8x128xf32>
    %97 = math.tanh %96 : vector<8x128xf32>
    %cst_41 = arith.constant 5.000000e-01 : f32
    %98 = vector.broadcast %cst_41 : f32 to vector<8x128xf32>
    %99 = arith.mulf %98, %97 : vector<8x128xf32>
    %cst_42 = arith.constant 5.000000e-01 : f32
    %100 = vector.broadcast %cst_42 : f32 to vector<8x128xf32>
    %101 = arith.addf %99, %100 : vector<8x128xf32>
    %102 = arith.mulf %91, %65 : vector<8x128xf32>
    %103 = arith.mulf %83, %93 : vector<8x128xf32>
    %104 = arith.addf %102, %103 : vector<8x128xf32>
    %105 = math.tanh %104 : vector<8x128xf32>
    %106 = arith.mulf %101, %105 : vector<8x128xf32>
    %107 = arith.index_cast %71 : i32 to index
    %c0_43 = arith.constant 0 : index
    %108 = vector.load %arg11[%107, %c0_43] : memref<64x128xf32, #tpu.memory_space<vmem>>, vector<8x128xf32>
    tpu.vector_store %arg11[%107, %c0_43], %106 {strides = array<i32>} : memref<64x128xf32, #tpu.memory_space<vmem>>, vector<8x128xf32>,
    %c3_i32 = arith.constant 3 : i32
    %c8_i32_44 = arith.constant 8 : i32
    %109 = arith.muli %c3_i32, %c8_i32_44 : i32
    %110 = tpu.assume_multiple %109, 8 : i32
    %111 = arith.index_cast %110 : i32 to index
    %c0_45 = arith.constant 0 : index
    %112 = vector.load %arg10[%111, %c0_45] : memref<64x512xf32, #tpu.memory_space<vmem>>, vector<8x512xf32>
    %cst_46 = arith.constant dense<0.000000e+00> : vector<8x512xf32>
    %113 = tpu.matmul %106, %7, %cst_46 {dimension_numbers = #tpu.dot_dimension_numbers<[1], [0], [0], [1], [0, 0, 1, 1], [], []>} : vector<8x128xf32>, vector<128x512xf32>, vector<8x512xf32> -> vector<8x512xf32>
    %114 = arith.addf %112, %113 : vector<8x512xf32>
    %115 = vector.extract_strided_slice %114 {offsets = [0, 0], sizes = [8, 128], strides = [1, 1]} : vector<8x512xf32> to vector<8x128xf32>
    %cst_47 = arith.constant 5.000000e-01 : f32
    %116 = vector.broadcast %cst_47 : f32 to vector<8x128xf32>
    %117 = arith.mulf %116, %115 : vector<8x128xf32>
    %118 = math.tanh %117 : vector<8x128xf32>
    %cst_48 = arith.constant 5.000000e-01 : f32
    %119 = vector.broadcast %cst_48 : f32 to vector<8x128xf32>
    %120 = arith.mulf %119, %118 : vector<8x128xf32>
    %cst_49 = arith.constant 5.000000e-01 : f32
    %121 = vector.broadcast %cst_49 : f32 to vector<8x128xf32>
    %122 = arith.addf %120, %121 : vector<8x128xf32>
    %123 = vector.extract_strided_slice %114 {offsets = [0, 128], sizes = [8, 128], strides = [1, 1]} : vector<8x512xf32> to vector<8x128xf32>
    %cst_50 = arith.constant 5.000000e-01 : f32
    %124 = vector.broadcast %cst_50 : f32 to vector<8x128xf32>
    %125 = arith.mulf %124, %123 : vector<8x128xf32>
    %126 = math.tanh %125 : vector<8x128xf32>
    %cst_51 = arith.constant 5.000000e-01 : f32
    %127 = vector.broadcast %cst_51 : f32 to vector<8x128xf32>
    %128 = arith.mulf %127, %126 : vector<8x128xf32>
    %cst_52 = arith.constant 5.000000e-01 : f32
    %129 = vector.broadcast %cst_52 : f32 to vector<8x128xf32>
    %130 = arith.addf %128, %129 : vector<8x128xf32>
    %131 = vector.extract_strided_slice %114 {offsets = [0, 256], sizes = [8, 128], strides = [1, 1]} : vector<8x512xf32> to vector<8x128xf32>
    %132 = math.tanh %131 : vector<8x128xf32>
    %133 = vector.extract_strided_slice %114 {offsets = [0, 384], sizes = [8, 128], strides = [1, 1]} : vector<8x512xf32> to vector<8x128xf32>
    %cst_53 = arith.constant 5.000000e-01 : f32
    %134 = vector.broadcast %cst_53 : f32 to vector<8x128xf32>
    %135 = arith.mulf %134, %133 : vector<8x128xf32>
    %136 = math.tanh %135 : vector<8x128xf32>
    %cst_54 = arith.constant 5.000000e-01 : f32
    %137 = vector.broadcast %cst_54 : f32 to vector<8x128xf32>
    %138 = arith.mulf %137, %136 : vector<8x128xf32>
    %cst_55 = arith.constant 5.000000e-01 : f32
    %139 = vector.broadcast %cst_55 : f32 to vector<8x128xf32>
    %140 = arith.addf %138, %139 : vector<8x128xf32>
    %141 = arith.mulf %130, %104 : vector<8x128xf32>
    %142 = arith.mulf %122, %132 : vector<8x128xf32>
    %143 = arith.addf %141, %142 : vector<8x128xf32>
    %144 = math.tanh %143 : vector<8x128xf32>
    %145 = arith.mulf %140, %144 : vector<8x128xf32>
    %146 = arith.index_cast %110 : i32 to index
    %c0_56 = arith.constant 0 : index
    %147 = vector.load %arg11[%146, %c0_56] : memref<64x128xf32, #tpu.memory_space<vmem>>, vector<8x128xf32>
    tpu.vector_store %arg11[%146, %c0_56], %145 {strides = array<i32>} : memref<64x128xf32, #tpu.memory_space<vmem>>, vector<8x128xf32>,
    %c4_i32 = arith.constant 4 : i32
    %c8_i32_57 = arith.constant 8 : i32
    %148 = arith.muli %c4_i32, %c8_i32_57 : i32
    %149 = tpu.assume_multiple %148, 8 : i32
    %150 = arith.index_cast %149 : i32 to index
    %c0_58 = arith.constant 0 : index
    %151 = vector.load %arg10[%150, %c0_58] : memref<64x512xf32, #tpu.memory_space<vmem>>, vector<8x512xf32>
    %cst_59 = arith.constant dense<0.000000e+00> : vector<8x512xf32>
    %152 = tpu.matmul %145, %7, %cst_59 {dimension_numbers = #tpu.dot_dimension_numbers<[1], [0], [0], [1], [0, 0, 1, 1], [], []>} : vector<8x128xf32>, vector<128x512xf32>, vector<8x512xf32> -> vector<8x512xf32>
    %153 = arith.addf %151, %152 : vector<8x512xf32>
    %154 = vector.extract_strided_slice %153 {offsets = [0, 0], sizes = [8, 128], strides = [1, 1]} : vector<8x512xf32> to vector<8x128xf32>
    %cst_60 = arith.constant 5.000000e-01 : f32
    %155 = vector.broadcast %cst_60 : f32 to vector<8x128xf32>
    %156 = arith.mulf %155, %154 : vector<8x128xf32>
    %157 = math.tanh %156 : vector<8x128xf32>
    %cst_61 = arith.constant 5.000000e-01 : f32
    %158 = vector.broadcast %cst_61 : f32 to vector<8x128xf32>
    %159 = arith.mulf %158, %157 : vector<8x128xf32>
    %cst_62 = arith.constant 5.000000e-01 : f32
    %160 = vector.broadcast %cst_62 : f32 to vector<8x128xf32>
    %161 = arith.addf %159, %160 : vector<8x128xf32>
    %162 = vector.extract_strided_slice %153 {offsets = [0, 128], sizes = [8, 128], strides = [1, 1]} : vector<8x512xf32> to vector<8x128xf32>
    %cst_63 = arith.constant 5.000000e-01 : f32
    %163 = vector.broadcast %cst_63 : f32 to vector<8x128xf32>
    %164 = arith.mulf %163, %162 : vector<8x128xf32>
    %165 = math.tanh %164 : vector<8x128xf32>
    %cst_64 = arith.constant 5.000000e-01 : f32
    %166 = vector.broadcast %cst_64 : f32 to vector<8x128xf32>
    %167 = arith.mulf %166, %165 : vector<8x128xf32>
    %cst_65 = arith.constant 5.000000e-01 : f32
    %168 = vector.broadcast %cst_65 : f32 to vector<8x128xf32>
    %169 = arith.addf %167, %168 : vector<8x128xf32>
    %170 = vector.extract_strided_slice %153 {offsets = [0, 256], sizes = [8, 128], strides = [1, 1]} : vector<8x512xf32> to vector<8x128xf32>
    %171 = math.tanh %170 : vector<8x128xf32>
    %172 = vector.extract_strided_slice %153 {offsets = [0, 384], sizes = [8, 128], strides = [1, 1]} : vector<8x512xf32> to vector<8x128xf32>
    %cst_66 = arith.constant 5.000000e-01 : f32
    %173 = vector.broadcast %cst_66 : f32 to vector<8x128xf32>
    %174 = arith.mulf %173, %172 : vector<8x128xf32>
    %175 = math.tanh %174 : vector<8x128xf32>
    %cst_67 = arith.constant 5.000000e-01 : f32
    %176 = vector.broadcast %cst_67 : f32 to vector<8x128xf32>
    %177 = arith.mulf %176, %175 : vector<8x128xf32>
    %cst_68 = arith.constant 5.000000e-01 : f32
    %178 = vector.broadcast %cst_68 : f32 to vector<8x128xf32>
    %179 = arith.addf %177, %178 : vector<8x128xf32>
    %180 = arith.mulf %169, %143 : vector<8x128xf32>
    %181 = arith.mulf %161, %171 : vector<8x128xf32>
    %182 = arith.addf %180, %181 : vector<8x128xf32>
    %183 = math.tanh %182 : vector<8x128xf32>
    %184 = arith.mulf %179, %183 : vector<8x128xf32>
    %185 = arith.index_cast %149 : i32 to index
    %c0_69 = arith.constant 0 : index
    %186 = vector.load %arg11[%185, %c0_69] : memref<64x128xf32, #tpu.memory_space<vmem>>, vector<8x128xf32>
    tpu.vector_store %arg11[%185, %c0_69], %184 {strides = array<i32>} : memref<64x128xf32, #tpu.memory_space<vmem>>, vector<8x128xf32>,
    %c5_i32 = arith.constant 5 : i32
    %c8_i32_70 = arith.constant 8 : i32
    %187 = arith.muli %c5_i32, %c8_i32_70 : i32
    %188 = tpu.assume_multiple %187, 8 : i32
    %189 = arith.index_cast %188 : i32 to index
    %c0_71 = arith.constant 0 : index
    %190 = vector.load %arg10[%189, %c0_71] : memref<64x512xf32, #tpu.memory_space<vmem>>, vector<8x512xf32>
    %cst_72 = arith.constant dense<0.000000e+00> : vector<8x512xf32>
    %191 = tpu.matmul %184, %7, %cst_72 {dimension_numbers = #tpu.dot_dimension_numbers<[1], [0], [0], [1], [0, 0, 1, 1], [], []>} : vector<8x128xf32>, vector<128x512xf32>, vector<8x512xf32> -> vector<8x512xf32>
    %192 = arith.addf %190, %191 : vector<8x512xf32>
    %193 = vector.extract_strided_slice %192 {offsets = [0, 0], sizes = [8, 128], strides = [1, 1]} : vector<8x512xf32> to vector<8x128xf32>
    %cst_73 = arith.constant 5.000000e-01 : f32
    %194 = vector.broadcast %cst_73 : f32 to vector<8x128xf32>
    %195 = arith.mulf %194, %193 : vector<8x128xf32>
    %196 = math.tanh %195 : vector<8x128xf32>
    %cst_74 = arith.constant 5.000000e-01 : f32
    %197 = vector.broadcast %cst_74 : f32 to vector<8x128xf32>
    %198 = arith.mulf %197, %196 : vector<8x128xf32>
    %cst_75 = arith.constant 5.000000e-01 : f32
    %199 = vector.broadcast %cst_75 : f32 to vector<8x128xf32>
    %200 = arith.addf %198, %199 : vector<8x128xf32>
    %201 = vector.extract_strided_slice %192 {offsets = [0, 128], sizes = [8, 128], strides = [1, 1]} : vector<8x512xf32> to vector<8x128xf32>
    %cst_76 = arith.constant 5.000000e-01 : f32
    %202 = vector.broadcast %cst_76 : f32 to vector<8x128xf32>
    %203 = arith.mulf %202, %201 : vector<8x128xf32>
    %204 = math.tanh %203 : vector<8x128xf32>
    %cst_77 = arith.constant 5.000000e-01 : f32
    %205 = vector.broadcast %cst_77 : f32 to vector<8x128xf32>
    %206 = arith.mulf %205, %204 : vector<8x128xf32>
    %cst_78 = arith.constant 5.000000e-01 : f32
    %207 = vector.broadcast %cst_78 : f32 to vector<8x128xf32>
    %208 = arith.addf %206, %207 : vector<8x128xf32>
    %209 = vector.extract_strided_slice %192 {offsets = [0, 256], sizes = [8, 128], strides = [1, 1]} : vector<8x512xf32> to vector<8x128xf32>
    %210 = math.tanh %209 : vector<8x128xf32>
    %211 = vector.extract_strided_slice %192 {offsets = [0, 384], sizes = [8, 128], strides = [1, 1]} : vector<8x512xf32> to vector<8x128xf32>
    %cst_79 = arith.constant 5.000000e-01 : f32
    %212 = vector.broadcast %cst_79 : f32 to vector<8x128xf32>
    %213 = arith.mulf %212, %211 : vector<8x128xf32>
    %214 = math.tanh %213 : vector<8x128xf32>
    %cst_80 = arith.constant 5.000000e-01 : f32
    %215 = vector.broadcast %cst_80 : f32 to vector<8x128xf32>
    %216 = arith.mulf %215, %214 : vector<8x128xf32>
    %cst_81 = arith.constant 5.000000e-01 : f32
    %217 = vector.broadcast %cst_81 : f32 to vector<8x128xf32>
    %218 = arith.addf %216, %217 : vector<8x128xf32>
    %219 = arith.mulf %208, %182 : vector<8x128xf32>
    %220 = arith.mulf %200, %210 : vector<8x128xf32>
    %221 = arith.addf %219, %220 : vector<8x128xf32>
    %222 = math.tanh %221 : vector<8x128xf32>
    %223 = arith.mulf %218, %222 : vector<8x128xf32>
    %224 = arith.index_cast %188 : i32 to index
    %c0_82 = arith.constant 0 : index
    %225 = vector.load %arg11[%224, %c0_82] : memref<64x128xf32, #tpu.memory_space<vmem>>, vector<8x128xf32>
    tpu.vector_store %arg11[%224, %c0_82], %223 {strides = array<i32>} : memref<64x128xf32, #tpu.memory_space<vmem>>, vector<8x128xf32>,
    %c6_i32 = arith.constant 6 : i32
    %c8_i32_83 = arith.constant 8 : i32
    %226 = arith.muli %c6_i32, %c8_i32_83 : i32
    %227 = tpu.assume_multiple %226, 8 : i32
    %228 = arith.index_cast %227 : i32 to index
    %c0_84 = arith.constant 0 : index
    %229 = vector.load %arg10[%228, %c0_84] : memref<64x512xf32, #tpu.memory_space<vmem>>, vector<8x512xf32>
    %cst_85 = arith.constant dense<0.000000e+00> : vector<8x512xf32>
    %230 = tpu.matmul %223, %7, %cst_85 {dimension_numbers = #tpu.dot_dimension_numbers<[1], [0], [0], [1], [0, 0, 1, 1], [], []>} : vector<8x128xf32>, vector<128x512xf32>, vector<8x512xf32> -> vector<8x512xf32>
    %231 = arith.addf %229, %230 : vector<8x512xf32>
    %232 = vector.extract_strided_slice %231 {offsets = [0, 0], sizes = [8, 128], strides = [1, 1]} : vector<8x512xf32> to vector<8x128xf32>
    %cst_86 = arith.constant 5.000000e-01 : f32
    %233 = vector.broadcast %cst_86 : f32 to vector<8x128xf32>
    %234 = arith.mulf %233, %232 : vector<8x128xf32>
    %235 = math.tanh %234 : vector<8x128xf32>
    %cst_87 = arith.constant 5.000000e-01 : f32
    %236 = vector.broadcast %cst_87 : f32 to vector<8x128xf32>
    %237 = arith.mulf %236, %235 : vector<8x128xf32>
    %cst_88 = arith.constant 5.000000e-01 : f32
    %238 = vector.broadcast %cst_88 : f32 to vector<8x128xf32>
    %239 = arith.addf %237, %238 : vector<8x128xf32>
    %240 = vector.extract_strided_slice %231 {offsets = [0, 128], sizes = [8, 128], strides = [1, 1]} : vector<8x512xf32> to vector<8x128xf32>
    %cst_89 = arith.constant 5.000000e-01 : f32
    %241 = vector.broadcast %cst_89 : f32 to vector<8x128xf32>
    %242 = arith.mulf %241, %240 : vector<8x128xf32>
    %243 = math.tanh %242 : vector<8x128xf32>
    %cst_90 = arith.constant 5.000000e-01 : f32
    %244 = vector.broadcast %cst_90 : f32 to vector<8x128xf32>
    %245 = arith.mulf %244, %243 : vector<8x128xf32>
    %cst_91 = arith.constant 5.000000e-01 : f32
    %246 = vector.broadcast %cst_91 : f32 to vector<8x128xf32>
    %247 = arith.addf %245, %246 : vector<8x128xf32>
    %248 = vector.extract_strided_slice %231 {offsets = [0, 256], sizes = [8, 128], strides = [1, 1]} : vector<8x512xf32> to vector<8x128xf32>
    %249 = math.tanh %248 : vector<8x128xf32>
    %250 = vector.extract_strided_slice %231 {offsets = [0, 384], sizes = [8, 128], strides = [1, 1]} : vector<8x512xf32> to vector<8x128xf32>
    %cst_92 = arith.constant 5.000000e-01 : f32
    %251 = vector.broadcast %cst_92 : f32 to vector<8x128xf32>
    %252 = arith.mulf %251, %250 : vector<8x128xf32>
    %253 = math.tanh %252 : vector<8x128xf32>
    %cst_93 = arith.constant 5.000000e-01 : f32
    %254 = vector.broadcast %cst_93 : f32 to vector<8x128xf32>
    %255 = arith.mulf %254, %253 : vector<8x128xf32>
    %cst_94 = arith.constant 5.000000e-01 : f32
    %256 = vector.broadcast %cst_94 : f32 to vector<8x128xf32>
    %257 = arith.addf %255, %256 : vector<8x128xf32>
    %258 = arith.mulf %247, %221 : vector<8x128xf32>
    %259 = arith.mulf %239, %249 : vector<8x128xf32>
    %260 = arith.addf %258, %259 : vector<8x128xf32>
    %261 = math.tanh %260 : vector<8x128xf32>
    %262 = arith.mulf %257, %261 : vector<8x128xf32>
    %263 = arith.index_cast %227 : i32 to index
    %c0_95 = arith.constant 0 : index
    %264 = vector.load %arg11[%263, %c0_95] : memref<64x128xf32, #tpu.memory_space<vmem>>, vector<8x128xf32>
    tpu.vector_store %arg11[%263, %c0_95], %262 {strides = array<i32>} : memref<64x128xf32, #tpu.memory_space<vmem>>, vector<8x128xf32>,
    %c7_i32 = arith.constant 7 : i32
    %c8_i32_96 = arith.constant 8 : i32
    %265 = arith.muli %c7_i32, %c8_i32_96 : i32
    %266 = tpu.assume_multiple %265, 8 : i32
    %267 = arith.index_cast %266 : i32 to index
    %c0_97 = arith.constant 0 : index
    %268 = vector.load %arg10[%267, %c0_97] : memref<64x512xf32, #tpu.memory_space<vmem>>, vector<8x512xf32>
    %cst_98 = arith.constant dense<0.000000e+00> : vector<8x512xf32>
    %269 = tpu.matmul %262, %7, %cst_98 {dimension_numbers = #tpu.dot_dimension_numbers<[1], [0], [0], [1], [0, 0, 1, 1], [], []>} : vector<8x128xf32>, vector<128x512xf32>, vector<8x512xf32> -> vector<8x512xf32>
    %270 = arith.addf %268, %269 : vector<8x512xf32>
    %271 = vector.extract_strided_slice %270 {offsets = [0, 0], sizes = [8, 128], strides = [1, 1]} : vector<8x512xf32> to vector<8x128xf32>
    %cst_99 = arith.constant 5.000000e-01 : f32
    %272 = vector.broadcast %cst_99 : f32 to vector<8x128xf32>
    %273 = arith.mulf %272, %271 : vector<8x128xf32>
    %274 = math.tanh %273 : vector<8x128xf32>
    %cst_100 = arith.constant 5.000000e-01 : f32
    %275 = vector.broadcast %cst_100 : f32 to vector<8x128xf32>
    %276 = arith.mulf %275, %274 : vector<8x128xf32>
    %cst_101 = arith.constant 5.000000e-01 : f32
    %277 = vector.broadcast %cst_101 : f32 to vector<8x128xf32>
    %278 = arith.addf %276, %277 : vector<8x128xf32>
    %279 = vector.extract_strided_slice %270 {offsets = [0, 128], sizes = [8, 128], strides = [1, 1]} : vector<8x512xf32> to vector<8x128xf32>
    %cst_102 = arith.constant 5.000000e-01 : f32
    %280 = vector.broadcast %cst_102 : f32 to vector<8x128xf32>
    %281 = arith.mulf %280, %279 : vector<8x128xf32>
    %282 = math.tanh %281 : vector<8x128xf32>
    %cst_103 = arith.constant 5.000000e-01 : f32
    %283 = vector.broadcast %cst_103 : f32 to vector<8x128xf32>
    %284 = arith.mulf %283, %282 : vector<8x128xf32>
    %cst_104 = arith.constant 5.000000e-01 : f32
    %285 = vector.broadcast %cst_104 : f32 to vector<8x128xf32>
    %286 = arith.addf %284, %285 : vector<8x128xf32>
    %287 = vector.extract_strided_slice %270 {offsets = [0, 256], sizes = [8, 128], strides = [1, 1]} : vector<8x512xf32> to vector<8x128xf32>
    %288 = math.tanh %287 : vector<8x128xf32>
    %289 = vector.extract_strided_slice %270 {offsets = [0, 384], sizes = [8, 128], strides = [1, 1]} : vector<8x512xf32> to vector<8x128xf32>
    %cst_105 = arith.constant 5.000000e-01 : f32
    %290 = vector.broadcast %cst_105 : f32 to vector<8x128xf32>
    %291 = arith.mulf %290, %289 : vector<8x128xf32>
    %292 = math.tanh %291 : vector<8x128xf32>
    %cst_106 = arith.constant 5.000000e-01 : f32
    %293 = vector.broadcast %cst_106 : f32 to vector<8x128xf32>
    %294 = arith.mulf %293, %292 : vector<8x128xf32>
    %cst_107 = arith.constant 5.000000e-01 : f32
    %295 = vector.broadcast %cst_107 : f32 to vector<8x128xf32>
    %296 = arith.addf %294, %295 : vector<8x128xf32>
    %297 = arith.mulf %286, %260 : vector<8x128xf32>
    %298 = arith.mulf %278, %288 : vector<8x128xf32>
    %299 = arith.addf %297, %298 : vector<8x128xf32>
    %300 = math.tanh %299 : vector<8x128xf32>
    %301 = arith.mulf %296, %300 : vector<8x128xf32>
    %302 = arith.index_cast %266 : i32 to index
    %c0_108 = arith.constant 0 : index
    %303 = vector.load %arg11[%302, %c0_108] : memref<64x128xf32, #tpu.memory_space<vmem>>, vector<8x128xf32>
    tpu.vector_store %arg11[%302, %c0_108], %301 {strides = array<i32>} : memref<64x128xf32, #tpu.memory_space<vmem>>, vector<8x128xf32>,
    %c7_i32_109 = arith.constant 7 : i32
    %c0_110 = arith.constant 0 : index
    %c0_111 = arith.constant 0 : index
    %304 = vector.load %arg11[%c0_110, %c0_111] : memref<64x128xf32, #tpu.memory_space<vmem>>, vector<64x128xf32>
    %c0_112 = arith.constant 0 : index
    %c0_113 = arith.constant 0 : index
    %305 = vector.load %arg4[%c0_112, %c0_113] : memref<128x512xf32, #tpu.memory_space<vmem>>, vector<128x512xf32>
    %cst_114 = arith.constant dense<0.000000e+00> : vector<64x512xf32>
    %306 = tpu.matmul %304, %305, %cst_114 {dimension_numbers = #tpu.dot_dimension_numbers<[1], [0], [0], [1], [0, 0, 1, 1], [], []>} : vector<64x128xf32>, vector<128x512xf32>, vector<64x512xf32> -> vector<64x512xf32>
    %c0_115 = arith.constant 0 : index
    %c0_116 = arith.constant 0 : index
    %307 = vector.load %arg6[%c0_115, %c0_116] : memref<1x512xf32, #tpu.memory_space<vmem>>, vector<1x512xf32>
    %308 = vector.broadcast %307 : vector<1x512xf32> to vector<64x512xf32>
    %309 = arith.addf %306, %308 : vector<64x512xf32>
    %c0_117 = arith.constant 0 : index
    %c0_118 = arith.constant 0 : index
    %310 = vector.load %arg10[%c0_117, %c0_118] : memref<64x512xf32, #tpu.memory_space<vmem>>, vector<64x512xf32>
    tpu.vector_store %arg10[%c0_117, %c0_118], %309 {strides = array<i32>} : memref<64x512xf32, #tpu.memory_space<vmem>>, vector<64x512xf32>,
    %c0_119 = arith.constant 0 : index
    %c0_120 = arith.constant 0 : index
    %311 = vector.load %arg5[%c0_119, %c0_120] : memref<128x512xf32, #tpu.memory_space<vmem>>, vector<128x512xf32>
    %c0_121 = arith.constant 0 : index
    %c0_122 = arith.constant 0 : index
    %312 = vector.load %arg10[%c0_121, %c0_122] : memref<64x512xf32, #tpu.memory_space<vmem>>, vector<8x512xf32>
    %313 = vector.extract_strided_slice %312 {offsets = [0, 0], sizes = [8, 128], strides = [1, 1]} : vector<8x512xf32> to vector<8x128xf32>
    %cst_123 = arith.constant 5.000000e-01 : f32
    %314 = vector.broadcast %cst_123 : f32 to vector<8x128xf32>
    %315 = arith.mulf %314, %313 : vector<8x128xf32>
    %316 = math.tanh %315 : vector<8x128xf32>
    %cst_124 = arith.constant 5.000000e-01 : f32
    %317 = vector.broadcast %cst_124 : f32 to vector<8x128xf32>
    %318 = arith.mulf %317, %316 : vector<8x128xf32>
    %cst_125 = arith.constant 5.000000e-01 : f32
    %319 = vector.broadcast %cst_125 : f32 to vector<8x128xf32>
    %320 = arith.addf %318, %319 : vector<8x128xf32>
    %321 = vector.extract_strided_slice %312 {offsets = [0, 256], sizes = [8, 128], strides = [1, 1]} : vector<8x512xf32> to vector<8x128xf32>
    %322 = math.tanh %321 : vector<8x128xf32>
    %323 = vector.extract_strided_slice %312 {offsets = [0, 384], sizes = [8, 128], strides = [1, 1]} : vector<8x512xf32> to vector<8x128xf32>
    %cst_126 = arith.constant 5.000000e-01 : f32
    %324 = vector.broadcast %cst_126 : f32 to vector<8x128xf32>
    %325 = arith.mulf %324, %323 : vector<8x128xf32>
    %326 = math.tanh %325 : vector<8x128xf32>
    %cst_127 = arith.constant 5.000000e-01 : f32
    %327 = vector.broadcast %cst_127 : f32 to vector<8x128xf32>
    %328 = arith.mulf %327, %326 : vector<8x128xf32>
    %cst_128 = arith.constant 5.000000e-01 : f32
    %329 = vector.broadcast %cst_128 : f32 to vector<8x128xf32>
    %330 = arith.addf %328, %329 : vector<8x128xf32>
    %331 = arith.mulf %320, %322 : vector<8x128xf32>
    %332 = math.tanh %331 : vector<8x128xf32>
    %333 = arith.mulf %330, %332 : vector<8x128xf32>
    %c1_i32_129 = arith.constant 1 : i32
    %c8_i32_130 = arith.constant 8 : i32
    %334 = arith.muli %c1_i32_129, %c8_i32_130 : i32
    %335 = tpu.assume_multiple %334, 8 : i32
    %336 = arith.index_cast %335 : i32 to index
    %c0_131 = arith.constant 0 : index
    %337 = vector.load %arg10[%336, %c0_131] : memref<64x512xf32, #tpu.memory_space<vmem>>, vector<8x512xf32>
    %cst_132 = arith.constant dense<0.000000e+00> : vector<8x512xf32>
    %338 = tpu.matmul %333, %311, %cst_132 {dimension_numbers = #tpu.dot_dimension_numbers<[1], [0], [0], [1], [0, 0, 1, 1], [], []>} : vector<8x128xf32>, vector<128x512xf32>, vector<8x512xf32> -> vector<8x512xf32>
    %339 = arith.addf %337, %338 : vector<8x512xf32>
    %340 = vector.extract_strided_slice %339 {offsets = [0, 0], sizes = [8, 128], strides = [1, 1]} : vector<8x512xf32> to vector<8x128xf32>
    %cst_133 = arith.constant 5.000000e-01 : f32
    %341 = vector.broadcast %cst_133 : f32 to vector<8x128xf32>
    %342 = arith.mulf %341, %340 : vector<8x128xf32>
    %343 = math.tanh %342 : vector<8x128xf32>
    %cst_134 = arith.constant 5.000000e-01 : f32
    %344 = vector.broadcast %cst_134 : f32 to vector<8x128xf32>
    %345 = arith.mulf %344, %343 : vector<8x128xf32>
    %cst_135 = arith.constant 5.000000e-01 : f32
    %346 = vector.broadcast %cst_135 : f32 to vector<8x128xf32>
    %347 = arith.addf %345, %346 : vector<8x128xf32>
    %348 = vector.extract_strided_slice %339 {offsets = [0, 128], sizes = [8, 128], strides = [1, 1]} : vector<8x512xf32> to vector<8x128xf32>
    %cst_136 = arith.constant 5.000000e-01 : f32
    %349 = vector.broadcast %cst_136 : f32 to vector<8x128xf32>
    %350 = arith.mulf %349, %348 : vector<8x128xf32>
    %351 = math.tanh %350 : vector<8x128xf32>
    %cst_137 = arith.constant 5.000000e-01 : f32
    %352 = vector.broadcast %cst_137 : f32 to vector<8x128xf32>
    %353 = arith.mulf %352, %351 : vector<8x128xf32>
    %cst_138 = arith.constant 5.000000e-01 : f32
    %354 = vector.broadcast %cst_138 : f32 to vector<8x128xf32>
    %355 = arith.addf %353, %354 : vector<8x128xf32>
    %356 = vector.extract_strided_slice %339 {offsets = [0, 256], sizes = [8, 128], strides = [1, 1]} : vector<8x512xf32> to vector<8x128xf32>
    %357 = math.tanh %356 : vector<8x128xf32>
    %358 = vector.extract_strided_slice %339 {offsets = [0, 384], sizes = [8, 128], strides = [1, 1]} : vector<8x512xf32> to vector<8x128xf32>
    %cst_139 = arith.constant 5.000000e-01 : f32
    %359 = vector.broadcast %cst_139 : f32 to vector<8x128xf32>
    %360 = arith.mulf %359, %358 : vector<8x128xf32>
    %361 = math.tanh %360 : vector<8x128xf32>
    %cst_140 = arith.constant 5.000000e-01 : f32
    %362 = vector.broadcast %cst_140 : f32 to vector<8x128xf32>
    %363 = arith.mulf %362, %361 : vector<8x128xf32>
    %cst_141 = arith.constant 5.000000e-01 : f32
    %364 = vector.broadcast %cst_141 : f32 to vector<8x128xf32>
    %365 = arith.addf %363, %364 : vector<8x128xf32>
    %366 = arith.mulf %355, %331 : vector<8x128xf32>
    %367 = arith.mulf %347, %357 : vector<8x128xf32>
    %368 = arith.addf %366, %367 : vector<8x128xf32>
    %369 = math.tanh %368 : vector<8x128xf32>
    %370 = arith.mulf %365, %369 : vector<8x128xf32>
    %c2_i32_142 = arith.constant 2 : i32
    %c8_i32_143 = arith.constant 8 : i32
    %371 = arith.muli %c2_i32_142, %c8_i32_143 : i32
    %372 = tpu.assume_multiple %371, 8 : i32
    %373 = arith.index_cast %372 : i32 to index
    %c0_144 = arith.constant 0 : index
    %374 = vector.load %arg10[%373, %c0_144] : memref<64x512xf32, #tpu.memory_space<vmem>>, vector<8x512xf32>
    %cst_145 = arith.constant dense<0.000000e+00> : vector<8x512xf32>
    %375 = tpu.matmul %370, %311, %cst_145 {dimension_numbers = #tpu.dot_dimension_numbers<[1], [0], [0], [1], [0, 0, 1, 1], [], []>} : vector<8x128xf32>, vector<128x512xf32>, vector<8x512xf32> -> vector<8x512xf32>
    %376 = arith.addf %374, %375 : vector<8x512xf32>
    %377 = vector.extract_strided_slice %376 {offsets = [0, 0], sizes = [8, 128], strides = [1, 1]} : vector<8x512xf32> to vector<8x128xf32>
    %cst_146 = arith.constant 5.000000e-01 : f32
    %378 = vector.broadcast %cst_146 : f32 to vector<8x128xf32>
    %379 = arith.mulf %378, %377 : vector<8x128xf32>
    %380 = math.tanh %379 : vector<8x128xf32>
    %cst_147 = arith.constant 5.000000e-01 : f32
    %381 = vector.broadcast %cst_147 : f32 to vector<8x128xf32>
    %382 = arith.mulf %381, %380 : vector<8x128xf32>
    %cst_148 = arith.constant 5.000000e-01 : f32
    %383 = vector.broadcast %cst_148 : f32 to vector<8x128xf32>
    %384 = arith.addf %382, %383 : vector<8x128xf32>
    %385 = vector.extract_strided_slice %376 {offsets = [0, 128], sizes = [8, 128], strides = [1, 1]} : vector<8x512xf32> to vector<8x128xf32>
    %cst_149 = arith.constant 5.000000e-01 : f32
    %386 = vector.broadcast %cst_149 : f32 to vector<8x128xf32>
    %387 = arith.mulf %386, %385 : vector<8x128xf32>
    %388 = math.tanh %387 : vector<8x128xf32>
    %cst_150 = arith.constant 5.000000e-01 : f32
    %389 = vector.broadcast %cst_150 : f32 to vector<8x128xf32>
    %390 = arith.mulf %389, %388 : vector<8x128xf32>
    %cst_151 = arith.constant 5.000000e-01 : f32
    %391 = vector.broadcast %cst_151 : f32 to vector<8x128xf32>
    %392 = arith.addf %390, %391 : vector<8x128xf32>
    %393 = vector.extract_strided_slice %376 {offsets = [0, 256], sizes = [8, 128], strides = [1, 1]} : vector<8x512xf32> to vector<8x128xf32>
    %394 = math.tanh %393 : vector<8x128xf32>
    %395 = vector.extract_strided_slice %376 {offsets = [0, 384], sizes = [8, 128], strides = [1, 1]} : vector<8x512xf32> to vector<8x128xf32>
    %cst_152 = arith.constant 5.000000e-01 : f32
    %396 = vector.broadcast %cst_152 : f32 to vector<8x128xf32>
    %397 = arith.mulf %396, %395 : vector<8x128xf32>
    %398 = math.tanh %397 : vector<8x128xf32>
    %cst_153 = arith.constant 5.000000e-01 : f32
    %399 = vector.broadcast %cst_153 : f32 to vector<8x128xf32>
    %400 = arith.mulf %399, %398 : vector<8x128xf32>
    %cst_154 = arith.constant 5.000000e-01 : f32
    %401 = vector.broadcast %cst_154 : f32 to vector<8x128xf32>
    %402 = arith.addf %400, %401 : vector<8x128xf32>
    %403 = arith.mulf %392, %368 : vector<8x128xf32>
    %404 = arith.mulf %384, %394 : vector<8x128xf32>
    %405 = arith.addf %403, %404 : vector<8x128xf32>
    %406 = math.tanh %405 : vector<8x128xf32>
    %407 = arith.mulf %402, %406 : vector<8x128xf32>
    %c3_i32_155 = arith.constant 3 : i32
    %c8_i32_156 = arith.constant 8 : i32
    %408 = arith.muli %c3_i32_155, %c8_i32_156 : i32
    %409 = tpu.assume_multiple %408, 8 : i32
    %410 = arith.index_cast %409 : i32 to index
    %c0_157 = arith.constant 0 : index
    %411 = vector.load %arg10[%410, %c0_157] : memref<64x512xf32, #tpu.memory_space<vmem>>, vector<8x512xf32>
    %cst_158 = arith.constant dense<0.000000e+00> : vector<8x512xf32>
    %412 = tpu.matmul %407, %311, %cst_158 {dimension_numbers = #tpu.dot_dimension_numbers<[1], [0], [0], [1], [0, 0, 1, 1], [], []>} : vector<8x128xf32>, vector<128x512xf32>, vector<8x512xf32> -> vector<8x512xf32>
    %413 = arith.addf %411, %412 : vector<8x512xf32>
    %414 = vector.extract_strided_slice %413 {offsets = [0, 0], sizes = [8, 128], strides = [1, 1]} : vector<8x512xf32> to vector<8x128xf32>
    %cst_159 = arith.constant 5.000000e-01 : f32
    %415 = vector.broadcast %cst_159 : f32 to vector<8x128xf32>
    %416 = arith.mulf %415, %414 : vector<8x128xf32>
    %417 = math.tanh %416 : vector<8x128xf32>
    %cst_160 = arith.constant 5.000000e-01 : f32
    %418 = vector.broadcast %cst_160 : f32 to vector<8x128xf32>
    %419 = arith.mulf %418, %417 : vector<8x128xf32>
    %cst_161 = arith.constant 5.000000e-01 : f32
    %420 = vector.broadcast %cst_161 : f32 to vector<8x128xf32>
    %421 = arith.addf %419, %420 : vector<8x128xf32>
    %422 = vector.extract_strided_slice %413 {offsets = [0, 128], sizes = [8, 128], strides = [1, 1]} : vector<8x512xf32> to vector<8x128xf32>
    %cst_162 = arith.constant 5.000000e-01 : f32
    %423 = vector.broadcast %cst_162 : f32 to vector<8x128xf32>
    %424 = arith.mulf %423, %422 : vector<8x128xf32>
    %425 = math.tanh %424 : vector<8x128xf32>
    %cst_163 = arith.constant 5.000000e-01 : f32
    %426 = vector.broadcast %cst_163 : f32 to vector<8x128xf32>
    %427 = arith.mulf %426, %425 : vector<8x128xf32>
    %cst_164 = arith.constant 5.000000e-01 : f32
    %428 = vector.broadcast %cst_164 : f32 to vector<8x128xf32>
    %429 = arith.addf %427, %428 : vector<8x128xf32>
    %430 = vector.extract_strided_slice %413 {offsets = [0, 256], sizes = [8, 128], strides = [1, 1]} : vector<8x512xf32> to vector<8x128xf32>
    %431 = math.tanh %430 : vector<8x128xf32>
    %432 = vector.extract_strided_slice %413 {offsets = [0, 384], sizes = [8, 128], strides = [1, 1]} : vector<8x512xf32> to vector<8x128xf32>
    %cst_165 = arith.constant 5.000000e-01 : f32
    %433 = vector.broadcast %cst_165 : f32 to vector<8x128xf32>
    %434 = arith.mulf %433, %432 : vector<8x128xf32>
    %435 = math.tanh %434 : vector<8x128xf32>
    %cst_166 = arith.constant 5.000000e-01 : f32
    %436 = vector.broadcast %cst_166 : f32 to vector<8x128xf32>
    %437 = arith.mulf %436, %435 : vector<8x128xf32>
    %cst_167 = arith.constant 5.000000e-01 : f32
    %438 = vector.broadcast %cst_167 : f32 to vector<8x128xf32>
    %439 = arith.addf %437, %438 : vector<8x128xf32>
    %440 = arith.mulf %429, %405 : vector<8x128xf32>
    %441 = arith.mulf %421, %431 : vector<8x128xf32>
    %442 = arith.addf %440, %441 : vector<8x128xf32>
    %443 = math.tanh %442 : vector<8x128xf32>
    %444 = arith.mulf %439, %443 : vector<8x128xf32>
    %c4_i32_168 = arith.constant 4 : i32
    %c8_i32_169 = arith.constant 8 : i32
    %445 = arith.muli %c4_i32_168, %c8_i32_169 : i32
    %446 = tpu.assume_multiple %445, 8 : i32
    %447 = arith.index_cast %446 : i32 to index
    %c0_170 = arith.constant 0 : index
    %448 = vector.load %arg10[%447, %c0_170] : memref<64x512xf32, #tpu.memory_space<vmem>>, vector<8x512xf32>
    %cst_171 = arith.constant dense<0.000000e+00> : vector<8x512xf32>
    %449 = tpu.matmul %444, %311, %cst_171 {dimension_numbers = #tpu.dot_dimension_numbers<[1], [0], [0], [1], [0, 0, 1, 1], [], []>} : vector<8x128xf32>, vector<128x512xf32>, vector<8x512xf32> -> vector<8x512xf32>
    %450 = arith.addf %448, %449 : vector<8x512xf32>
    %451 = vector.extract_strided_slice %450 {offsets = [0, 0], sizes = [8, 128], strides = [1, 1]} : vector<8x512xf32> to vector<8x128xf32>
    %cst_172 = arith.constant 5.000000e-01 : f32
    %452 = vector.broadcast %cst_172 : f32 to vector<8x128xf32>
    %453 = arith.mulf %452, %451 : vector<8x128xf32>
    %454 = math.tanh %453 : vector<8x128xf32>
    %cst_173 = arith.constant 5.000000e-01 : f32
    %455 = vector.broadcast %cst_173 : f32 to vector<8x128xf32>
    %456 = arith.mulf %455, %454 : vector<8x128xf32>
    %cst_174 = arith.constant 5.000000e-01 : f32
    %457 = vector.broadcast %cst_174 : f32 to vector<8x128xf32>
    %458 = arith.addf %456, %457 : vector<8x128xf32>
    %459 = vector.extract_strided_slice %450 {offsets = [0, 128], sizes = [8, 128], strides = [1, 1]} : vector<8x512xf32> to vector<8x128xf32>
    %cst_175 = arith.constant 5.000000e-01 : f32
    %460 = vector.broadcast %cst_175 : f32 to vector<8x128xf32>
    %461 = arith.mulf %460, %459 : vector<8x128xf32>
    %462 = math.tanh %461 : vector<8x128xf32>
    %cst_176 = arith.constant 5.000000e-01 : f32
    %463 = vector.broadcast %cst_176 : f32 to vector<8x128xf32>
    %464 = arith.mulf %463, %462 : vector<8x128xf32>
    %cst_177 = arith.constant 5.000000e-01 : f32
    %465 = vector.broadcast %cst_177 : f32 to vector<8x128xf32>
    %466 = arith.addf %464, %465 : vector<8x128xf32>
    %467 = vector.extract_strided_slice %450 {offsets = [0, 256], sizes = [8, 128], strides = [1, 1]} : vector<8x512xf32> to vector<8x128xf32>
    %468 = math.tanh %467 : vector<8x128xf32>
    %469 = vector.extract_strided_slice %450 {offsets = [0, 384], sizes = [8, 128], strides = [1, 1]} : vector<8x512xf32> to vector<8x128xf32>
    %cst_178 = arith.constant 5.000000e-01 : f32
    %470 = vector.broadcast %cst_178 : f32 to vector<8x128xf32>
    %471 = arith.mulf %470, %469 : vector<8x128xf32>
    %472 = math.tanh %471 : vector<8x128xf32>
    %cst_179 = arith.constant 5.000000e-01 : f32
    %473 = vector.broadcast %cst_179 : f32 to vector<8x128xf32>
    %474 = arith.mulf %473, %472 : vector<8x128xf32>
    %cst_180 = arith.constant 5.000000e-01 : f32
    %475 = vector.broadcast %cst_180 : f32 to vector<8x128xf32>
    %476 = arith.addf %474, %475 : vector<8x128xf32>
    %477 = arith.mulf %466, %442 : vector<8x128xf32>
    %478 = arith.mulf %458, %468 : vector<8x128xf32>
    %479 = arith.addf %477, %478 : vector<8x128xf32>
    %480 = math.tanh %479 : vector<8x128xf32>
    %481 = arith.mulf %476, %480 : vector<8x128xf32>
    %c5_i32_181 = arith.constant 5 : i32
    %c8_i32_182 = arith.constant 8 : i32
    %482 = arith.muli %c5_i32_181, %c8_i32_182 : i32
    %483 = tpu.assume_multiple %482, 8 : i32
    %484 = arith.index_cast %483 : i32 to index
    %c0_183 = arith.constant 0 : index
    %485 = vector.load %arg10[%484, %c0_183] : memref<64x512xf32, #tpu.memory_space<vmem>>, vector<8x512xf32>
    %cst_184 = arith.constant dense<0.000000e+00> : vector<8x512xf32>
    %486 = tpu.matmul %481, %311, %cst_184 {dimension_numbers = #tpu.dot_dimension_numbers<[1], [0], [0], [1], [0, 0, 1, 1], [], []>} : vector<8x128xf32>, vector<128x512xf32>, vector<8x512xf32> -> vector<8x512xf32>
    %487 = arith.addf %485, %486 : vector<8x512xf32>
    %488 = vector.extract_strided_slice %487 {offsets = [0, 0], sizes = [8, 128], strides = [1, 1]} : vector<8x512xf32> to vector<8x128xf32>
    %cst_185 = arith.constant 5.000000e-01 : f32
    %489 = vector.broadcast %cst_185 : f32 to vector<8x128xf32>
    %490 = arith.mulf %489, %488 : vector<8x128xf32>
    %491 = math.tanh %490 : vector<8x128xf32>
    %cst_186 = arith.constant 5.000000e-01 : f32
    %492 = vector.broadcast %cst_186 : f32 to vector<8x128xf32>
    %493 = arith.mulf %492, %491 : vector<8x128xf32>
    %cst_187 = arith.constant 5.000000e-01 : f32
    %494 = vector.broadcast %cst_187 : f32 to vector<8x128xf32>
    %495 = arith.addf %493, %494 : vector<8x128xf32>
    %496 = vector.extract_strided_slice %487 {offsets = [0, 128], sizes = [8, 128], strides = [1, 1]} : vector<8x512xf32> to vector<8x128xf32>
    %cst_188 = arith.constant 5.000000e-01 : f32
    %497 = vector.broadcast %cst_188 : f32 to vector<8x128xf32>
    %498 = arith.mulf %497, %496 : vector<8x128xf32>
    %499 = math.tanh %498 : vector<8x128xf32>
    %cst_189 = arith.constant 5.000000e-01 : f32
    %500 = vector.broadcast %cst_189 : f32 to vector<8x128xf32>
    %501 = arith.mulf %500, %499 : vector<8x128xf32>
    %cst_190 = arith.constant 5.000000e-01 : f32
    %502 = vector.broadcast %cst_190 : f32 to vector<8x128xf32>
    %503 = arith.addf %501, %502 : vector<8x128xf32>
    %504 = vector.extract_strided_slice %487 {offsets = [0, 256], sizes = [8, 128], strides = [1, 1]} : vector<8x512xf32> to vector<8x128xf32>
    %505 = math.tanh %504 : vector<8x128xf32>
    %506 = vector.extract_strided_slice %487 {offsets = [0, 384], sizes = [8, 128], strides = [1, 1]} : vector<8x512xf32> to vector<8x128xf32>
    %cst_191 = arith.constant 5.000000e-01 : f32
    %507 = vector.broadcast %cst_191 : f32 to vector<8x128xf32>
    %508 = arith.mulf %507, %506 : vector<8x128xf32>
    %509 = math.tanh %508 : vector<8x128xf32>
    %cst_192 = arith.constant 5.000000e-01 : f32
    %510 = vector.broadcast %cst_192 : f32 to vector<8x128xf32>
    %511 = arith.mulf %510, %509 : vector<8x128xf32>
    %cst_193 = arith.constant 5.000000e-01 : f32
    %512 = vector.broadcast %cst_193 : f32 to vector<8x128xf32>
    %513 = arith.addf %511, %512 : vector<8x128xf32>
    %514 = arith.mulf %503, %479 : vector<8x128xf32>
    %515 = arith.mulf %495, %505 : vector<8x128xf32>
    %516 = arith.addf %514, %515 : vector<8x128xf32>
    %517 = math.tanh %516 : vector<8x128xf32>
    %518 = arith.mulf %513, %517 : vector<8x128xf32>
    %c6_i32_194 = arith.constant 6 : i32
    %c8_i32_195 = arith.constant 8 : i32
    %519 = arith.muli %c6_i32_194, %c8_i32_195 : i32
    %520 = tpu.assume_multiple %519, 8 : i32
    %521 = arith.index_cast %520 : i32 to index
    %c0_196 = arith.constant 0 : index
    %522 = vector.load %arg10[%521, %c0_196] : memref<64x512xf32, #tpu.memory_space<vmem>>, vector<8x512xf32>
    %cst_197 = arith.constant dense<0.000000e+00> : vector<8x512xf32>
    %523 = tpu.matmul %518, %311, %cst_197 {dimension_numbers = #tpu.dot_dimension_numbers<[1], [0], [0], [1], [0, 0, 1, 1], [], []>} : vector<8x128xf32>, vector<128x512xf32>, vector<8x512xf32> -> vector<8x512xf32>
    %524 = arith.addf %522, %523 : vector<8x512xf32>
    %525 = vector.extract_strided_slice %524 {offsets = [0, 0], sizes = [8, 128], strides = [1, 1]} : vector<8x512xf32> to vector<8x128xf32>
    %cst_198 = arith.constant 5.000000e-01 : f32
    %526 = vector.broadcast %cst_198 : f32 to vector<8x128xf32>
    %527 = arith.mulf %526, %525 : vector<8x128xf32>
    %528 = math.tanh %527 : vector<8x128xf32>
    %cst_199 = arith.constant 5.000000e-01 : f32
    %529 = vector.broadcast %cst_199 : f32 to vector<8x128xf32>
    %530 = arith.mulf %529, %528 : vector<8x128xf32>
    %cst_200 = arith.constant 5.000000e-01 : f32
    %531 = vector.broadcast %cst_200 : f32 to vector<8x128xf32>
    %532 = arith.addf %530, %531 : vector<8x128xf32>
    %533 = vector.extract_strided_slice %524 {offsets = [0, 128], sizes = [8, 128], strides = [1, 1]} : vector<8x512xf32> to vector<8x128xf32>
    %cst_201 = arith.constant 5.000000e-01 : f32
    %534 = vector.broadcast %cst_201 : f32 to vector<8x128xf32>
    %535 = arith.mulf %534, %533 : vector<8x128xf32>
    %536 = math.tanh %535 : vector<8x128xf32>
    %cst_202 = arith.constant 5.000000e-01 : f32
    %537 = vector.broadcast %cst_202 : f32 to vector<8x128xf32>
    %538 = arith.mulf %537, %536 : vector<8x128xf32>
    %cst_203 = arith.constant 5.000000e-01 : f32
    %539 = vector.broadcast %cst_203 : f32 to vector<8x128xf32>
    %540 = arith.addf %538, %539 : vector<8x128xf32>
    %541 = vector.extract_strided_slice %524 {offsets = [0, 256], sizes = [8, 128], strides = [1, 1]} : vector<8x512xf32> to vector<8x128xf32>
    %542 = math.tanh %541 : vector<8x128xf32>
    %543 = vector.extract_strided_slice %524 {offsets = [0, 384], sizes = [8, 128], strides = [1, 1]} : vector<8x512xf32> to vector<8x128xf32>
    %cst_204 = arith.constant 5.000000e-01 : f32
    %544 = vector.broadcast %cst_204 : f32 to vector<8x128xf32>
    %545 = arith.mulf %544, %543 : vector<8x128xf32>
    %546 = math.tanh %545 : vector<8x128xf32>
    %cst_205 = arith.constant 5.000000e-01 : f32
    %547 = vector.broadcast %cst_205 : f32 to vector<8x128xf32>
    %548 = arith.mulf %547, %546 : vector<8x128xf32>
    %cst_206 = arith.constant 5.000000e-01 : f32
    %549 = vector.broadcast %cst_206 : f32 to vector<8x128xf32>
    %550 = arith.addf %548, %549 : vector<8x128xf32>
    %551 = arith.mulf %540, %516 : vector<8x128xf32>
    %552 = arith.mulf %532, %542 : vector<8x128xf32>
    %553 = arith.addf %551, %552 : vector<8x128xf32>
    %554 = math.tanh %553 : vector<8x128xf32>
    %555 = arith.mulf %550, %554 : vector<8x128xf32>
    %c7_i32_207 = arith.constant 7 : i32
    %c8_i32_208 = arith.constant 8 : i32
    %556 = arith.muli %c7_i32_207, %c8_i32_208 : i32
    %557 = tpu.assume_multiple %556, 8 : i32
    %558 = arith.index_cast %557 : i32 to index
    %c0_209 = arith.constant 0 : index
    %559 = vector.load %arg10[%558, %c0_209] : memref<64x512xf32, #tpu.memory_space<vmem>>, vector<8x512xf32>
    %cst_210 = arith.constant dense<0.000000e+00> : vector<8x512xf32>
    %560 = tpu.matmul %555, %311, %cst_210 {dimension_numbers = #tpu.dot_dimension_numbers<[1], [0], [0], [1], [0, 0, 1, 1], [], []>} : vector<8x128xf32>, vector<128x512xf32>, vector<8x512xf32> -> vector<8x512xf32>
    %561 = arith.addf %559, %560 : vector<8x512xf32>
    %562 = vector.extract_strided_slice %561 {offsets = [0, 0], sizes = [8, 128], strides = [1, 1]} : vector<8x512xf32> to vector<8x128xf32>
    %cst_211 = arith.constant 5.000000e-01 : f32
    %563 = vector.broadcast %cst_211 : f32 to vector<8x128xf32>
    %564 = arith.mulf %563, %562 : vector<8x128xf32>
    %565 = math.tanh %564 : vector<8x128xf32>
    %cst_212 = arith.constant 5.000000e-01 : f32
    %566 = vector.broadcast %cst_212 : f32 to vector<8x128xf32>
    %567 = arith.mulf %566, %565 : vector<8x128xf32>
    %cst_213 = arith.constant 5.000000e-01 : f32
    %568 = vector.broadcast %cst_213 : f32 to vector<8x128xf32>
    %569 = arith.addf %567, %568 : vector<8x128xf32>
    %570 = vector.extract_strided_slice %561 {offsets = [0, 128], sizes = [8, 128], strides = [1, 1]} : vector<8x512xf32> to vector<8x128xf32>
    %cst_214 = arith.constant 5.000000e-01 : f32
    %571 = vector.broadcast %cst_214 : f32 to vector<8x128xf32>
    %572 = arith.mulf %571, %570 : vector<8x128xf32>
    %573 = math.tanh %572 : vector<8x128xf32>
    %cst_215 = arith.constant 5.000000e-01 : f32
    %574 = vector.broadcast %cst_215 : f32 to vector<8x128xf32>
    %575 = arith.mulf %574, %573 : vector<8x128xf32>
    %cst_216 = arith.constant 5.000000e-01 : f32
    %576 = vector.broadcast %cst_216 : f32 to vector<8x128xf32>
    %577 = arith.addf %575, %576 : vector<8x128xf32>
    %578 = vector.extract_strided_slice %561 {offsets = [0, 256], sizes = [8, 128], strides = [1, 1]} : vector<8x512xf32> to vector<8x128xf32>
    %579 = math.tanh %578 : vector<8x128xf32>
    %580 = vector.extract_strided_slice %561 {offsets = [0, 384], sizes = [8, 128], strides = [1, 1]} : vector<8x512xf32> to vector<8x128xf32>
    %cst_217 = arith.constant 5.000000e-01 : f32
    %581 = vector.broadcast %cst_217 : f32 to vector<8x128xf32>
    %582 = arith.mulf %581, %580 : vector<8x128xf32>
    %583 = math.tanh %582 : vector<8x128xf32>
    %cst_218 = arith.constant 5.000000e-01 : f32
    %584 = vector.broadcast %cst_218 : f32 to vector<8x128xf32>
    %585 = arith.mulf %584, %583 : vector<8x128xf32>
    %cst_219 = arith.constant 5.000000e-01 : f32
    %586 = vector.broadcast %cst_219 : f32 to vector<8x128xf32>
    %587 = arith.addf %585, %586 : vector<8x128xf32>
    %588 = arith.mulf %577, %553 : vector<8x128xf32>
    %589 = arith.mulf %569, %579 : vector<8x128xf32>
    %590 = arith.addf %588, %589 : vector<8x128xf32>
    %591 = math.tanh %590 : vector<8x128xf32>
    %592 = arith.mulf %587, %591 : vector<8x128xf32>
    %c7_i32_220 = arith.constant 7 : i32
    %cst_221 = arith.constant 0.000000e+00 : f32
    %593 = vector.broadcast %cst_221 : f32 to vector<8x128xf32>
    %594 = arith.maximumf %592, %593 : vector<8x128xf32>
    %c0_222 = arith.constant 0 : index
    %c0_223 = arith.constant 0 : index
    %595 = vector.load %arg7[%c0_222, %c0_223] : memref<128x128xf32, #tpu.memory_space<vmem>>, vector<128x128xf32>
    %cst_224 = arith.constant dense<0.000000e+00> : vector<8x128xf32>
    %596 = tpu.matmul %594, %595, %cst_224 {dimension_numbers = #tpu.dot_dimension_numbers<[1], [0], [0], [1], [0, 0, 1, 1], [], []>} : vector<8x128xf32>, vector<128x128xf32>, vector<8x128xf32> -> vector<8x128xf32>
    %c0_225 = arith.constant 0 : index
    %c0_226 = arith.constant 0 : index
    %597 = vector.load %arg8[%c0_225, %c0_226] : memref<1x128xf32, #tpu.memory_space<vmem>>, vector<1x128xf32>
    %598 = vector.broadcast %597 : vector<1x128xf32> to vector<8x128xf32>
    %599 = arith.addf %596, %598 : vector<8x128xf32>
    %c0_227 = arith.constant 0 : index
    %c0_228 = arith.constant 0 : index
    %600 = vector.load %arg9[%c0_227, %c0_228] : memref<8x128xf32, #tpu.memory_space<vmem>>, vector<8x128xf32>
    tpu.vector_store %arg9[%c0_227, %c0_228], %599 {strides = array<i32>} : memref<8x128xf32, #tpu.memory_space<vmem>>, vector<8x128xf32>,
    return
  }
}

</mosaic_0001>

<llo_original>
// kernel: tpu_custom_call.1
$region0: #{tpu_custom_call.1}
  #allocation0 [shape = 'u32[]', space=smem, size = 0x4, offset = 0x4, fixed_abs, tag = 'smem constant byte address 0x4 - core index']
  #allocation1 [shape = 'u32[72,128]{1,0:T(1,128)}', space=vmem, size = 0x9000, scoped, tag = 'internal scratch']
  #allocation2 [shape = 'f32[64,512]{1,0:T(8,128)}', space=vmem, size = 0x20000, scoped, tag = 'scratch operand']
  #allocation3 [shape = 'f32[64,128]{1,0:T(8,128)}', space=vmem, size = 0x8000, scoped, tag = 'scratch operand']
  %s0 = inlined_call_operand.vmem [shape: f32[64,8], index: 0, kind: input, shape index: {}]
  %s1 = inlined_call_operand.vmem [shape: f32[8,512], index: 1, kind: input, shape index: {}]
  %s2 = inlined_call_operand.hbm [shape: f32[128,512], index: 2, kind: input, shape index: {}]
  %s3 = inlined_call_operand.vmem [shape: f32[1,512], index: 3, kind: input, shape index: {}]
  %s4 = inlined_call_operand.hbm [shape: f32[128,512], index: 4, kind: input, shape index: {}]
  %s5 = inlined_call_operand.hbm [shape: f32[128,512], index: 5, kind: input, shape index: {}]
  %s6 = inlined_call_operand.vmem [shape: f32[1,512], index: 6, kind: input, shape index: {}]
  %s7 = inlined_call_operand.hbm [shape: f32[128,128], index: 7, kind: input, shape index: {}]
  %s8 = inlined_call_operand.vmem [shape: f32[1,128], index: 8, kind: input, shape index: {}]
  %s9 = inlined_call_operand.hbm [shape: f32[8,128], index: 9, kind: output, shape index: {}]
  %s10 = sld [smem:[#allocation0]]
  $region62: #{tpu_custom_call.1} parent=0
    _
  %s12 = ssub.s32 1, %s10
  %s13 = scalar_select 0, %s12, %s10
  $region1: #{tpu_custom_call.1} parent=0
    #allocation4 [shape = 'u8[262144]{0}', space=vmem, size = 0x40000, scoped, tag = 'input window, operand 2, single buffered']
    #allocation5 [shape = 's32[1]{0}', space=sflag, size = 0x4, scoped, tag = 'scoped memory for tpu_custom_call.1']
    #allocation6 [shape = 's32[1]{0}', space=sflag, size = 0x4, scoped, tag = 'scoped memory for tpu_custom_call.1']
    #allocation7 [shape = 'u8[262144]{0}', space=vmem, size = 0x40000, scoped, tag = 'input window, operand 4, single buffered']
    #allocation8 [shape = 's32[1]{0}', space=sflag, size = 0x4, scoped, tag = 'scoped memory for tpu_custom_call.1']
    #allocation9 [shape = 'u8[262144]{0}', space=vmem, size = 0x40000, scoped, tag = 'input window, operand 5, single buffered']
    #allocation10 [shape = 'u8[65536]{0}', space=vmem, size = 0x10000, scoped, tag = 'input window, operand 7, single buffered']
    #allocation11 [shape = 's32[1]{0}', space=sflag, size = 0x4, scoped, tag = 'scoped memory for tpu_custom_call.1']
    #allocation12 [shape = 'u8[4096]{0}', space=vmem, size = 0x1000, scoped, tag = 'output window, operand 0, single buffered']
    %14 = vsyncpa [#allocation5], 0
    %15 = vsyncpa [#allocation8], 0
    %16 = vsyncpa [#allocation11], 0
    %17 = vsyncpa [#allocation6], 0
    // Predicated region
    $region2: #{tpu_custom_call.1} parent=1 // pred_check
      _
    $region3: #{tpu_custom_call.1} parent=1 // pred_check_branch
      %19 = sbr.rel (0) target = $region5
    $region4: #{tpu_custom_call.1} parent=1 // pred_region
      _
    $region5: #{tpu_custom_call.1} parent=1 // pred_fallthru
      _
    // Predicated region
    $region6: #{tpu_custom_call.1} parent=1 // pred_check
      _
    $region7: #{tpu_custom_call.1} parent=1 // pred_check_branch
      %21 = sbr.rel (0) target = $region9
    $region8: #{tpu_custom_call.1} parent=1 // pred_region
      _
    $region9: #{tpu_custom_call.1} parent=1 // pred_fallthru
      _
    // Predicated region
    $region10: #{tpu_custom_call.1} parent=1 // pred_check
      _
    $region11: #{tpu_custom_call.1} parent=1 // pred_check_branch
      %23 = sbr.rel (0) target = $region13
    $region12: #{tpu_custom_call.1} parent=1 // pred_region
      %25 = vsyncadd [#allocation5], 0
      %s26 = sshll.u32 %s2, 4
      %s27 = int_to_ptr.hbm [resolvable:$true] %s26
      %s28 = sshll.u32 [#allocation4], 4
      %s29 = int_to_ptr.vmem [resolvable:$true] %s28
      %34 = dma.hbm_to_vmem [thread:$0]  %s27, 8192, %s29, [#allocation5], 512, 512, 32
    $region13: #{tpu_custom_call.1} parent=1 // pred_fallthru
      _
    // Predicated region
    $region14: #{tpu_custom_call.1} parent=1 // pred_check
      _
    $region15: #{tpu_custom_call.1} parent=1 // pred_check_branch
      %36 = sbr.rel (0) target = $region17
    $region16: #{tpu_custom_call.1} parent=1 // pred_region
      _
    $region17: #{tpu_custom_call.1} parent=1 // pred_fallthru
      _
    // Predicated region
    $region18: #{tpu_custom_call.1} parent=1 // pred_check
      _
    $region19: #{tpu_custom_call.1} parent=1 // pred_check_branch
      %38 = sbr.rel (0) target = $region21
    $region20: #{tpu_custom_call.1} parent=1 // pred_region
      %40 = vsyncadd [#allocation8], 0
      %s41 = sshll.u32 %s4, 4
      %s42 = int_to_ptr.hbm [resolvable:$true] %s41
      %s43 = sshll.u32 [#allocation7], 4
      %s44 = int_to_ptr.vmem [resolvable:$true] %s43
      %49 = dma.hbm_to_vmem [thread:$0]  %s42, 8192, %s44, [#allocation8], 512, 512, 32
    $region21: #{tpu_custom_call.1} parent=1 // pred_fallthru
      _
    // Predicated region
    $region22: #{tpu_custom_call.1} parent=1 // pred_check
      _
    $region23: #{tpu_custom_call.1} parent=1 // pred_check_branch
      %51 = sbr.rel (0) target = $region25
    $region24: #{tpu_custom_call.1} parent=1 // pred_region
      %53 = vsyncadd [#allocation8], 0
      %s54 = sshll.u32 %s5, 4
      %s55 = int_to_ptr.hbm [resolvable:$true] %s54
      %s56 = sshll.u32 [#allocation9], 4
      %s57 = int_to_ptr.vmem [resolvable:$true] %s56
      %62 = dma.hbm_to_vmem [thread:$0]  %s55, 8192, %s57, [#allocation8], 512, 512, 32
    $region25: #{tpu_custom_call.1} parent=1 // pred_fallthru
      _
    // Predicated region
    $region26: #{tpu_custom_call.1} parent=1 // pred_check
      _
    $region27: #{tpu_custom_call.1} parent=1 // pred_check_branch
      %64 = sbr.rel (0) target = $region29
    $region28: #{tpu_custom_call.1} parent=1 // pred_region
      _
    $region29: #{tpu_custom_call.1} parent=1 // pred_fallthru
      _
    // Predicated region
    $region30: #{tpu_custom_call.1} parent=1 // pred_check
      _
    $region31: #{tpu_custom_call.1} parent=1 // pred_check_branch
      %66 = sbr.rel (0) target = $region33
    $region32: #{tpu_custom_call.1} parent=1 // pred_region
      %68 = vsyncadd [#allocation11], 0
      %s69 = sshll.u32 %s7, 4
      %s70 = int_to_ptr.hbm [resolvable:$true] %s69
      %s71 = sshll.u32 [#allocation10], 4
      %s72 = int_to_ptr.vmem [resolvable:$true] %s71
      %77 = dma.hbm_to_vmem [thread:$0]  %s70, 2048, %s72, [#allocation11], 128, 128, 8
    $region33: #{tpu_custom_call.1} parent=1 // pred_fallthru
      _
    // Predicated region
    $region34: #{tpu_custom_call.1} parent=1 // pred_check
      _
    $region35: #{tpu_custom_call.1} parent=1 // pred_check_branch
      %79 = sbr.rel (0) target = $region37
    $region36: #{tpu_custom_call.1} parent=1 // pred_region
      _
    $region37: #{tpu_custom_call.1} parent=1 // pred_fallthru
      _
    // Predicated region
    $region38: #{tpu_custom_call.1} parent=1 // pred_check
      _
    $region39: #{tpu_custom_call.1} parent=1 // pred_check_branch
      %81 = sbr.rel (0) target = $region41
    $region40: #{tpu_custom_call.1} parent=1 // pred_region
      %83 = dma.done [#allocation5], 8192
    $region41: #{tpu_custom_call.1} parent=1 // pred_fallthru
      _
    // Predicated region
    $region42: #{tpu_custom_call.1} parent=1 // pred_check
      _
    $region43: #{tpu_custom_call.1} parent=1 // pred_check_branch
      %85 = sbr.rel (0) target = $region45
    $region44: #{tpu_custom_call.1} parent=1 // pred_region
      %87 = dma.done [#allocation8], 8192
    $region45: #{tpu_custom_call.1} parent=1 // pred_fallthru
      _
    // Predicated region
    $region46: #{tpu_custom_call.1} parent=1 // pred_check
      _
    $region47: #{tpu_custom_call.1} parent=1 // pred_check_branch
      %89 = sbr.rel (0) target = $region49
    $region48: #{tpu_custom_call.1} parent=1 // pred_region
      %91 = dma.done [#allocation8], 8192
    $region49: #{tpu_custom_call.1} parent=1 // pred_fallthru
      _
    // Predicated region
    $region50: #{tpu_custom_call.1} parent=1 // pred_check
      _
    $region51: #{tpu_custom_call.1} parent=1 // pred_check_branch
      %93 = sbr.rel (0) target = $region53
    $region52: #{tpu_custom_call.1} parent=1 // pred_region
      %95 = dma.done [#allocation11], 2048
    $region53: #{tpu_custom_call.1} parent=1 // pred_fallthru
      _
    %v96 = vld [vmem:[%s0] sm:$0xff]
    %v97 = vld [vmem:[%s0 + $0x8] sm:$0xff]
    %v98 = vld [vmem:[%s0 + $0x10] sm:$0xff]
    %v99 = vld [vmem:[%s0 + $0x18] sm:$0xff]
    %v100 = vld [vmem:[%s0 + $0x20] sm:$0xff]
    %v101 = vld [vmem:[%s0 + $0x28] sm:$0xff]
    %v102 = vld [vmem:[%s0 + $0x30] sm:$0xff]
    %v103 = vld [vmem:[%s0 + $0x38] sm:$0xff]
    %v104 = vld [vmem:[%s1] sm:$0xff]
    %v105 = vld [vmem:[%s1 + $0x8] sm:$0xff]
    %v106 = vld [vmem:[%s1 + $0x10] sm:$0xff]
    %v107 = vld [vmem:[%s1 + $0x18] sm:$0xff]
    %v108 = vld [vmem:[%s3] sm:$0xf]
    %v110 = vperm.slane %v108, 0
    %v111 = vperm.slane %v108, 1
    %v112 = vperm.slane %v108, 2
    %v113 = vperm.slane %v108, 3
    %vm118 = vcmask 64512
    %v120 = vsel %vm118, %v96, 0
    %v123 = vsel %vm118, %v97, 0
    %v126 = vsel %vm118, %v98, 0
    %v129 = vsel %vm118, %v99, 0
    %v132 = vsel %vm118, %v100, 0
    %v135 = vsel %vm118, %v101, 0
    %v138 = vsel %vm118, %v102, 0
    %v141 = vsel %vm118, %v103, 0
    %143 = vmatpush.msra.mxu0 0.0
    %144 = vmatpush.msra.mxu0 0.0
    %145 = vmatpush.msra.mxu0 0.0
    %146 = vmatpush.msra.mxu0 0.0
    %147 = vmatpush.msra.mxu0 0.0
    %148 = vmatpush.msra.mxu0 0.0
    %149 = vmatpush.msra.mxu0 0.0
    %150 = vmatpush.msra.mxu0 0.0
    %151 = vmatpush.msra.mxu0 0.0
    %152 = vmatpush.msra.mxu0 0.0
    %153 = vmatpush.msra.mxu0 0.0
    %154 = vmatpush.msra.mxu0 0.0
    %155 = vmatpush.msra.mxu0 0.0
    %156 = vmatpush.msra.mxu0 0.0
    %157 = vmatpush.msra.mxu0 0.0
    %158 = vmatpush.msra.mxu0 %v104
    %159 = vmatmul.f32.gmra.mxu0 %v120
    %v160 = vpop.f32.mrf.mxu0
    %v161 = vadd.f32 %v110, %v160
    %162 = vmatmul.f32.gmra.mxu0 %v123
    %v163 = vpop.f32.mrf.mxu0
    %v164 = vadd.f32 %v110, %v163
    %165 = vmatmul.f32.gmra.mxu0 %v126
    %v166 = vpop.f32.mrf.mxu0
    %v167 = vadd.f32 %v110, %v166
    %168 = vmatmul.f32.gmra.mxu0 %v129
    %v169 = vpop.f32.mrf.mxu0
    %v170 = vadd.f32 %v110, %v169
    %171 = vmatmul.f32.gmra.mxu0 %v132
    %v172 = vpop.f32.mrf.mxu0
    %v173 = vadd.f32 %v110, %v172
    %174 = vmatmul.f32.gmra.mxu0 %v135
    %v175 = vpop.f32.mrf.mxu0
    %v176 = vadd.f32 %v110, %v175
    %177 = vmatmul.f32.gmra.mxu0 %v138
    %v178 = vpop.f32.mrf.mxu0
    %v179 = vadd.f32 %v110, %v178
    %180 = vmatmul.f32.gmra.mxu0 %v141
    %v181 = vpop.f32.mrf.mxu0
    %v182 = vadd.f32 %v110, %v181
    %183 = vdwg.mxu0
    %184 = vmatpush.msra.mxu0 0.0
    %185 = vmatpush.msra.mxu0 0.0
    %186 = vmatpush.msra.mxu0 0.0
    %187 = vmatpush.msra.mxu0 0.0
    %188 = vmatpush.msra.mxu0 0.0
    %189 = vmatpush.msra.mxu0 0.0
    %190 = vmatpush.msra.mxu0 0.0
    %191 = vmatpush.msra.mxu0 0.0
    %192 = vmatpush.msra.mxu0 0.0
    %193 = vmatpush.msra.mxu0 0.0
    %194 = vmatpush.msra.mxu0 0.0
    %195 = vmatpush.msra.mxu0 0.0
    %196 = vmatpush.msra.mxu0 0.0
    %197 = vmatpush.msra.mxu0 0.0
    %198 = vmatpush.msra.mxu0 0.0
    %199 = vmatpush.msra.mxu0 %v105
    %200 = vmatmul.f32.gmra.mxu0 %v120
    %v201 = vpop.f32.mrf.mxu0
    %v202 = vadd.f32 %v111, %v201
    %203 = vmatmul.f32.gmra.mxu0 %v123
    %v204 = vpop.f32.mrf.mxu0
    %v205 = vadd.f32 %v111, %v204
    %206 = vmatmul.f32.gmra.mxu0 %v126
    %v207 = vpop.f32.mrf.mxu0
    %v208 = vadd.f32 %v111, %v207
    %209 = vmatmul.f32.gmra.mxu0 %v129
    %v210 = vpop.f32.mrf.mxu0
    %v211 = vadd.f32 %v111, %v210
    %212 = vmatmul.f32.gmra.mxu0 %v132
    %v213 = vpop.f32.mrf.mxu0
    %v214 = vadd.f32 %v111, %v213
    %215 = vmatmul.f32.gmra.mxu0 %v135
    %v216 = vpop.f32.mrf.mxu0
    %v217 = vadd.f32 %v111, %v216
    %218 = vmatmul.f32.gmra.mxu0 %v138
    %v219 = vpop.f32.mrf.mxu0
    %v220 = vadd.f32 %v111, %v219
    %221 = vmatmul.f32.gmra.mxu0 %v141
    %v222 = vpop.f32.mrf.mxu0
    %v223 = vadd.f32 %v111, %v222
    %224 = vdwg.mxu0
    %225 = vmatpush.msra.mxu0 0.0
    %226 = vmatpush.msra.mxu0 0.0
    %227 = vmatpush.msra.mxu0 0.0
    %228 = vmatpush.msra.mxu0 0.0
    %229 = vmatpush.msra.mxu0 0.0
    %230 = vmatpush.msra.mxu0 0.0
    %231 = vmatpush.msra.mxu0 0.0
    %232 = vmatpush.msra.mxu0 0.0
    %233 = vmatpush.msra.mxu0 0.0
    %234 = vmatpush.msra.mxu0 0.0
    %235 = vmatpush.msra.mxu0 0.0
    %236 = vmatpush.msra.mxu0 0.0
    %237 = vmatpush.msra.mxu0 0.0
    %238 = vmatpush.msra.mxu0 0.0
    %239 = vmatpush.msra.mxu0 0.0
    %240 = vmatpush.msra.mxu0 %v106
    %241 = vmatmul.f32.gmra.mxu0 %v120
    %v242 = vpop.f32.mrf.mxu0
    %v243 = vadd.f32 %v112, %v242
    %244 = vmatmul.f32.gmra.mxu0 %v123
    %v245 = vpop.f32.mrf.mxu0
    %v246 = vadd.f32 %v112, %v245
    %247 = vmatmul.f32.gmra.mxu0 %v126
    %v248 = vpop.f32.mrf.mxu0
    %v249 = vadd.f32 %v112, %v248
    %250 = vmatmul.f32.gmra.mxu0 %v129
    %v251 = vpop.f32.mrf.mxu0
    %v252 = vadd.f32 %v112, %v251
    %253 = vmatmul.f32.gmra.mxu0 %v132
    %v254 = vpop.f32.mrf.mxu0
    %v255 = vadd.f32 %v112, %v254
    %256 = vmatmul.f32.gmra.mxu0 %v135
    %v257 = vpop.f32.mrf.mxu0
    %v258 = vadd.f32 %v112, %v257
    %259 = vmatmul.f32.gmra.mxu0 %v138
    %v260 = vpop.f32.mrf.mxu0
    %v261 = vadd.f32 %v112, %v260
    %262 = vmatmul.f32.gmra.mxu0 %v141
    %v263 = vpop.f32.mrf.mxu0
    %v264 = vadd.f32 %v112, %v263
    %265 = vdwg.mxu0
    %266 = vmatpush.msra.mxu0 0.0
    %267 = vmatpush.msra.mxu0 0.0
    %268 = vmatpush.msra.mxu0 0.0
    %269 = vmatpush.msra.mxu0 0.0
    %270 = vmatpush.msra.mxu0 0.0
    %271 = vmatpush.msra.mxu0 0.0
    %272 = vmatpush.msra.mxu0 0.0
    %273 = vmatpush.msra.mxu0 0.0
    %274 = vmatpush.msra.mxu0 0.0
    %275 = vmatpush.msra.mxu0 0.0
    %276 = vmatpush.msra.mxu0 0.0
    %277 = vmatpush.msra.mxu0 0.0
    %278 = vmatpush.msra.mxu0 0.0
    %279 = vmatpush.msra.mxu0 0.0
    %280 = vmatpush.msra.mxu0 0.0
    %281 = vmatpush.msra.mxu0 %v107
    %282 = vmatmul.f32.gmra.mxu0 %v120
    %v283 = vpop.f32.mrf.mxu0
    %v284 = vadd.f32 %v113, %v283
    %285 = vmatmul.f32.gmra.mxu0 %v123
    %v286 = vpop.f32.mrf.mxu0
    %v287 = vadd.f32 %v113, %v286
    %288 = vmatmul.f32.gmra.mxu0 %v126
    %v289 = vpop.f32.mrf.mxu0
    %v290 = vadd.f32 %v113, %v289
    %291 = vmatmul.f32.gmra.mxu0 %v129
    %v292 = vpop.f32.mrf.mxu0
    %v293 = vadd.f32 %v113, %v292
    %294 = vmatmul.f32.gmra.mxu0 %v132
    %v295 = vpop.f32.mrf.mxu0
    %v296 = vadd.f32 %v113, %v295
    %297 = vmatmul.f32.gmra.mxu0 %v135
    %v298 = vpop.f32.mrf.mxu0
    %v299 = vadd.f32 %v113, %v298
    %300 = vmatmul.f32.gmra.mxu0 %v138
    %v301 = vpop.f32.mrf.mxu0
    %v302 = vadd.f32 %v113, %v301
    %303 = vmatmul.f32.gmra.mxu0 %v141
    %v304 = vpop.f32.mrf.mxu0
    %v305 = vadd.f32 %v113, %v304
    %306 = vdwg.mxu0
    %307 = vst [vmem:[#allocation2] sm:$0xff] %v161
    %308 = vst [vmem:[#allocation2 + $0x8] sm:$0xff] %v202
    %309 = vst [vmem:[#allocation2 + $0x10] sm:$0xff] %v243
    %310 = vst [vmem:[#allocation2 + $0x18] sm:$0xff] %v284
    %311 = vst [vmem:[#allocation2 + $0x20] sm:$0xff] %v164
    %312 = vst [vmem:[#allocation2 + $0x28] sm:$0xff] %v205
    %313 = vst [vmem:[#allocation2 + $0x30] sm:$0xff] %v246
    %314 = vst [vmem:[#allocation2 + $0x38] sm:$0xff] %v287
    %315 = vst [vmem:[#allocation2 + $0x40] sm:$0xff] %v167
    %316 = vst [vmem:[#allocation2 + $0x48] sm:$0xff] %v208
    %317 = vst [vmem:[#allocation2 + $0x50] sm:$0xff] %v249
    %318 = vst [vmem:[#allocation2 + $0x58] sm:$0xff] %v290
    %319 = vst [vmem:[#allocation2 + $0x60] sm:$0xff] %v170
    %320 = vst [vmem:[#allocation2 + $0x68] sm:$0xff] %v211
    %321 = vst [vmem:[#allocation2 + $0x70] sm:$0xff] %v252
    %322 = vst [vmem:[#allocation2 + $0x78] sm:$0xff] %v293
    %323 = vst [vmem:[#allocation2 + $0x80] sm:$0xff] %v173
    %324 = vst [vmem:[#allocation2 + $0x88] sm:$0xff] %v214
    %325 = vst [vmem:[#allocation2 + $0x90] sm:$0xff] %v255
    %326 = vst [vmem:[#allocation2 + $0x98] sm:$0xff] %v296
    %327 = vst [vmem:[#allocation2 + $0xa0] sm:$0xff] %v176
    %328 = vst [vmem:[#allocation2 + $0xa8] sm:$0xff] %v217
    %329 = vst [vmem:[#allocation2 + $0xb0] sm:$0xff] %v258
    %330 = vst [vmem:[#allocation2 + $0xb8] sm:$0xff] %v299
    %331 = vst [vmem:[#allocation2 + $0xc0] sm:$0xff] %v179
    %332 = vst [vmem:[#allocation2 + $0xc8] sm:$0xff] %v220
    %333 = vst [vmem:[#allocation2 + $0xd0] sm:$0xff] %v261
    %334 = vst [vmem:[#allocation2 + $0xd8] sm:$0xff] %v302
    %335 = vst [vmem:[#allocation2 + $0xe0] sm:$0xff] %v182
    %336 = vst [vmem:[#allocation2 + $0xe8] sm:$0xff] %v223
    %337 = vst [vmem:[#allocation2 + $0xf0] sm:$0xff] %v264
    %338 = vst [vmem:[#allocation2 + $0xf8] sm:$0xff] %v305
    %v339 = vld [vmem:[#allocation4] sm:$0xff]
    %v340 = vld [vmem:[#allocation4 + $0x8] sm:$0xff]
    %v341 = vld [vmem:[#allocation4 + $0x10] sm:$0xff]
    %v342 = vld [vmem:[#allocation4 + $0x18] sm:$0xff]
    %v343 = vld [vmem:[#allocation4 + $0x20] sm:$0xff]
    %v344 = vld [vmem:[#allocation4 + $0x28] sm:$0xff]
    %v345 = vld [vmem:[#allocation4 + $0x30] sm:$0xff]
    %v346 = vld [vmem:[#allocation4 + $0x38] sm:$0xff]
    %v347 = vld [vmem:[#allocation4 + $0x40] sm:$0xff]
    %v348 = vld [vmem:[#allocation4 + $0x48] sm:$0xff]
    %v349 = vld [vmem:[#allocation4 + $0x50] sm:$0xff]
    %v350 = vld [vmem:[#allocation4 + $0x58] sm:$0xff]
    %v351 = vld [vmem:[#allocation4 + $0x60] sm:$0xff]
    %v352 = vld [vmem:[#allocation4 + $0x68] sm:$0xff]
    %v353 = vld [vmem:[#allocation4 + $0x70] sm:$0xff]
    %v354 = vld [vmem:[#allocation4 + $0x78] sm:$0xff]
    %v355 = vld [vmem:[#allocation4 + $0x80] sm:$0xff]
    %v356 = vld [vmem:[#allocation4 + $0x88] sm:$0xff]
    %v357 = vld [vmem:[#allocation4 + $0x90] sm:$0xff]
    %v358 = vld [vmem:[#allocation4 + $0x98] sm:$0xff]
    %v359 = vld [vmem:[#allocation4 + $0xa0] sm:$0xff]
    %v360 = vld [vmem:[#allocation4 + $0xa8] sm:$0xff]
    %v361 = vld [vmem:[#allocation4 + $0xb0] sm:$0xff]
    %v362 = vld [vmem:[#allocation4 + $0xb8] sm:$0xff]
    %v363 = vld [vmem:[#allocation4 + $0xc0] sm:$0xff]
    %v364 = vld [vmem:[#allocation4 + $0xc8] sm:$0xff]
    %v365 = vld [vmem:[#allocation4 + $0xd0] sm:$0xff]
    %v366 = vld [vmem:[#allocation4 + $0xd8] sm:$0xff]
    %v367 = vld [vmem:[#allocation4 + $0xe0] sm:$0xff]
    %v368 = vld [vmem:[#allocation4 + $0xe8] sm:$0xff]
    %v369 = vld [vmem:[#allocation4 + $0xf0] sm:$0xff]
    %v370 = vld [vmem:[#allocation4 + $0xf8] sm:$0xff]
    %v371 = vld [vmem:[#allocation4 + $0x100] sm:$0xff]
    %v372 = vld [vmem:[#allocation4 + $0x108] sm:$0xff]
    %v373 = vld [vmem:[#allocation4 + $0x110] sm:$0xff]
    %v374 = vld [vmem:[#allocation4 + $0x118] sm:$0xff]
    %v375 = vld [vmem:[#allocation4 + $0x120] sm:$0xff]
    %v376 = vld [vmem:[#allocation4 + $0x128] sm:$0xff]
    %v377 = vld [vmem:[#allocation4 + $0x130] sm:$0xff]
    %v378 = vld [vmem:[#allocation4 + $0x138] sm:$0xff]
    %v379 = vld [vmem:[#allocation4 + $0x140] sm:$0xff]
    %v380 = vld [vmem:[#allocation4 + $0x148] sm:$0xff]
    %v381 = vld [vmem:[#allocation4 + $0x150] sm:$0xff]
    %v382 = vld [vmem:[#allocation4 + $0x158] sm:$0xff]
    %v383 = vld [vmem:[#allocation4 + $0x160] sm:$0xff]
    %v384 = vld [vmem:[#allocation4 + $0x168] sm:$0xff]
    %v385 = vld [vmem:[#allocation4 + $0x170] sm:$0xff]
    %v386 = vld [vmem:[#allocation4 + $0x178] sm:$0xff]
    %v387 = vld [vmem:[#allocation4 + $0x180] sm:$0xff]
    %v388 = vld [vmem:[#allocation4 + $0x188] sm:$0xff]
    %v389 = vld [vmem:[#allocation4 + $0x190] sm:$0xff]
    %v390 = vld [vmem:[#allocation4 + $0x198] sm:$0xff]
    %v391 = vld [vmem:[#allocation4 + $0x1a0] sm:$0xff]
    %v392 = vld [vmem:[#allocation4 + $0x1a8] sm:$0xff]
    %v393 = vld [vmem:[#allocation4 + $0x1b0] sm:$0xff]
    %v394 = vld [vmem:[#allocation4 + $0x1b8] sm:$0xff]
    %v395 = vld [vmem:[#allocation4 + $0x1c0] sm:$0xff]
    %v396 = vld [vmem:[#allocation4 + $0x1c8] sm:$0xff]
    %v397 = vld [vmem:[#allocation4 + $0x1d0] sm:$0xff]
    %v398 = vld [vmem:[#allocation4 + $0x1d8] sm:$0xff]
    %v399 = vld [vmem:[#allocation4 + $0x1e0] sm:$0xff]
    %v400 = vld [vmem:[#allocation4 + $0x1e8] sm:$0xff]
    %v401 = vld [vmem:[#allocation4 + $0x1f0] sm:$0xff]
    %v402 = vld [vmem:[#allocation4 + $0x1f8] sm:$0xff]
    %v403 = vld [vmem:[#allocation2] sm:$0xff]
    %v404 = vld [vmem:[#allocation2 + $0x10] sm:$0xff]
    %v405 = vld [vmem:[#allocation2 + $0x18] sm:$0xff]
    %v406 = vmul.f32 %v403, 0.5
    %v407 = vtanh.pop %v406
    %v408 = vmul.f32 %v407, 0.5
    %v409 = vadd.f32 %v408, 0.5
    %v410 = vtanh.pop %v404
    %v411 = vmul.f32 %v405, 0.5
    %v412 = vtanh.pop %v411
    %v413 = vmul.f32 %v412, 0.5
    %v414 = vadd.f32 %v413, 0.5
    %v415 = vmul.f32 %v409, %v410
    %v416 = vtanh.pop %v415
    %v417 = vmul.f32 %v414, %v416
    %418 = vst [vmem:[#allocation3] sm:$0xff] %v417
    %s419 = smul.u32 1, 4
    %s420 = smul.addr %s419, 8
    %s421 = scalar_lea.vmem [#allocation2], %s420
    %v422 = vld [vmem:[%s421] sm:$0xff]
    %v423 = vld [vmem:[%s421 + $0x8] sm:$0xff]
    %v424 = vld [vmem:[%s421 + $0x10] sm:$0xff]
    %v425 = vld [vmem:[%s421 + $0x18] sm:$0xff]
    %426 = vmatpush.msra.mxu0 %v399
    %427 = vmatpush.msra.mxu0 %v395
    %428 = vmatpush.msra.mxu0 %v391
    %429 = vmatpush.msra.mxu0 %v387
    %430 = vmatpush.msra.mxu0 %v383
    %431 = vmatpush.msra.mxu0 %v379
    %432 = vmatpush.msra.mxu0 %v375
    %433 = vmatpush.msra.mxu0 %v371
    %434 = vmatpush.msra.mxu0 %v367
    %435 = vmatpush.msra.mxu0 %v363
    %436 = vmatpush.msra.mxu0 %v359
    %437 = vmatpush.msra.mxu0 %v355
    %438 = vmatpush.msra.mxu0 %v351
    %439 = vmatpush.msra.mxu0 %v347
    %440 = vmatpush.msra.mxu0 %v343
    %441 = vmatpush.msra.mxu0 %v339
    %442 = vmatmul.f32.gmra.mxu0 %v417
    %v443 = vpop.f32.mrf.mxu0
    %v444 = vadd.f32 0.0, %v443
    %445 = vdwg.mxu0
    %446 = vmatpush.msra.mxu0 %v400
    %447 = vmatpush.msra.mxu0 %v396
    %448 = vmatpush.msra.mxu0 %v392
    %449 = vmatpush.msra.mxu0 %v388
    %450 = vmatpush.msra.mxu0 %v384
    %451 = vmatpush.msra.mxu0 %v380
    %452 = vmatpush.msra.mxu0 %v376
    %453 = vmatpush.msra.mxu0 %v372
    %454 = vmatpush.msra.mxu0 %v368
    %455 = vmatpush.msra.mxu0 %v364
    %456 = vmatpush.msra.mxu0 %v360
    %457 = vmatpush.msra.mxu0 %v356
    %458 = vmatpush.msra.mxu0 %v352
    %459 = vmatpush.msra.mxu0 %v348
    %460 = vmatpush.msra.mxu0 %v344
    %461 = vmatpush.msra.mxu0 %v340
    %462 = vmatmul.f32.gmra.mxu0 %v417
    %v463 = vpop.f32.mrf.mxu0
    %v464 = vadd.f32 0.0, %v463
    %465 = vdwg.mxu0
    %466 = vmatpush.msra.mxu0 %v401
    %467 = vmatpush.msra.mxu0 %v397
    %468 = vmatpush.msra.mxu0 %v393
    %469 = vmatpush.msra.mxu0 %v389
    %470 = vmatpush.msra.mxu0 %v385
    %471 = vmatpush.msra.mxu0 %v381
    %472 = vmatpush.msra.mxu0 %v377
    %473 = vmatpush.msra.mxu0 %v373
    %474 = vmatpush.msra.mxu0 %v369
    %475 = vmatpush.msra.mxu0 %v365
    %476 = vmatpush.msra.mxu0 %v361
    %477 = vmatpush.msra.mxu0 %v357
    %478 = vmatpush.msra.mxu0 %v353
    %479 = vmatpush.msra.mxu0 %v349
    %480 = vmatpush.msra.mxu0 %v345
    %481 = vmatpush.msra.mxu0 %v341
    %482 = vmatmul.f32.gmra.mxu0 %v417
    %v483 = vpop.f32.mrf.mxu0
    %v484 = vadd.f32 0.0, %v483
    %485 = vdwg.mxu0
    %486 = vmatpush.msra.mxu0 %v402
    %487 = vmatpush.msra.mxu0 %v398
    %488 = vmatpush.msra.mxu0 %v394
    %489 = vmatpush.msra.mxu0 %v390
    %490 = vmatpush.msra.mxu0 %v386
    %491 = vmatpush.msra.mxu0 %v382
    %492 = vmatpush.msra.mxu0 %v378
    %493 = vmatpush.msra.mxu0 %v374
    %494 = vmatpush.msra.mxu0 %v370
    %495 = vmatpush.msra.mxu0 %v366
    %496 = vmatpush.msra.mxu0 %v362
    %497 = vmatpush.msra.mxu0 %v358
    %498 = vmatpush.msra.mxu0 %v354
    %499 = vmatpush.msra.mxu0 %v350
    %500 = vmatpush.msra.mxu0 %v346
    %501 = vmatpush.msra.mxu0 %v342
    %502 = vmatmul.f32.gmra.mxu0 %v417
    %v503 = vpop.f32.mrf.mxu0
    %v504 = vadd.f32 0.0, %v503
    %505 = vdwg.mxu0
    %v506 = vadd.f32 %v422, %v444
    %v507 = vadd.f32 %v423, %v464
    %v508 = vadd.f32 %v424, %v484
    %v509 = vadd.f32 %v425, %v504
    %v510 = vmul.f32 %v506, 0.5
    %v511 = vtanh.pop %v510
    %v512 = vmul.f32 %v511, 0.5
    %v513 = vadd.f32 %v512, 0.5
    %v514 = vmul.f32 %v507, 0.5
    %v515 = vtanh.pop %v514
    %v516 = vmul.f32 %v515, 0.5
    %v517 = vadd.f32 %v516, 0.5
    %v518 = vtanh.pop %v508
    %v519 = vmul.f32 %v509, 0.5
    %v520 = vtanh.pop %v519
    %v521 = vmul.f32 %v520, 0.5
    %v522 = vadd.f32 %v521, 0.5
    %v523 = vmul.f32 %v517, %v415
    %v524 = vmul.f32 %v513, %v518
    %v525 = vadd.f32 %v523, %v524
    %v526 = vtanh.pop %v525
    %v527 = vmul.f32 %v522, %v526
    %s528 = scalar_lea.vmem [#allocation3], 8
    %529 = vst [vmem:[%s528] sm:$0xff] %v527
    %s530 = smul.u32 2, 4
    %s531 = smul.addr %s530, 8
    %s532 = scalar_lea.vmem [#allocation2], %s531
    %v533 = vld [vmem:[%s532] sm:$0xff]
    %v534 = vld [vmem:[%s532 + $0x8] sm:$0xff]
    %v535 = vld [vmem:[%s532 + $0x10] sm:$0xff]
    %v536 = vld [vmem:[%s532 + $0x18] sm:$0xff]
    %537 = vmatpush.msra.mxu0 %v399
    %538 = vmatpush.msra.mxu0 %v395
    %539 = vmatpush.msra.mxu0 %v391
    %540 = vmatpush.msra.mxu0 %v387
    %541 = vmatpush.msra.mxu0 %v383
    %542 = vmatpush.msra.mxu0 %v379
    %543 = vmatpush.msra.mxu0 %v375
    %544 = vmatpush.msra.mxu0 %v371
    %545 = vmatpush.msra.mxu0 %v367
    %546 = vmatpush.msra.mxu0 %v363
    %547 = vmatpush.msra.mxu0 %v359
    %548 = vmatpush.msra.mxu0 %v355
    %549 = vmatpush.msra.mxu0 %v351
    %550 = vmatpush.msra.mxu0 %v347
    %551 = vmatpush.msra.mxu0 %v343
    %552 = vmatpush.msra.mxu0 %v339
    %553 = vmatmul.f32.gmra.mxu0 %v527
    %v554 = vpop.f32.mrf.mxu0
    %v555 = vadd.f32 0.0, %v554
    %556 = vdwg.mxu0
    %557 = vmatpush.msra.mxu0 %v400
    %558 = vmatpush.msra.mxu0 %v396
    %559 = vmatpush.msra.mxu0 %v392
    %560 = vmatpush.msra.mxu0 %v388
    %561 = vmatpush.msra.mxu0 %v384
    %562 = vmatpush.msra.mxu0 %v380
    %563 = vmatpush.msra.mxu0 %v376
    %564 = vmatpush.msra.mxu0 %v372
    %565 = vmatpush.msra.mxu0 %v368
    %566 = vmatpush.msra.mxu0 %v364
    %567 = vmatpush.msra.mxu0 %v360
    %568 = vmatpush.msra.mxu0 %v356
    %569 = vmatpush.msra.mxu0 %v352
    %570 = vmatpush.msra.mxu0 %v348
    %571 = vmatpush.msra.mxu0 %v344
    %572 = vmatpush.msra.mxu0 %v340
    %573 = vmatmul.f32.gmra.mxu0 %v527
    %v574 = vpop.f32.mrf.mxu0
    %v575 = vadd.f32 0.0, %v574
    %576 = vdwg.mxu0
    %577 = vmatpush.msra.mxu0 %v401
    %578 = vmatpush.msra.mxu0 %v397
    %579 = vmatpush.msra.mxu0 %v393
    %580 = vmatpush.msra.mxu0 %v389
    %581 = vmatpush.msra.mxu0 %v385
    %582 = vmatpush.msra.mxu0 %v381
    %583 = vmatpush.msra.mxu0 %v377
    %584 = vmatpush.msra.mxu0 %v373
    %585 = vmatpush.msra.mxu0 %v369
    %586 = vmatpush.msra.mxu0 %v365
    %587 = vmatpush.msra.mxu0 %v361
    %588 = vmatpush.msra.mxu0 %v357
    %589 = vmatpush.msra.mxu0 %v353
    %590 = vmatpush.msra.mxu0 %v349
    %591 = vmatpush.msra.mxu0 %v345
    %592 = vmatpush.msra.mxu0 %v341
    %593 = vmatmul.f32.gmra.mxu0 %v527
    %v594 = vpop.f32.mrf.mxu0
    %v595 = vadd.f32 0.0, %v594
    %596 = vdwg.mxu0
    %597 = vmatpush.msra.mxu0 %v402
    %598 = vmatpush.msra.mxu0 %v398
    %599 = vmatpush.msra.mxu0 %v394
    %600 = vmatpush.msra.mxu0 %v390
    %601 = vmatpush.msra.mxu0 %v386
    %602 = vmatpush.msra.mxu0 %v382
    %603 = vmatpush.msra.mxu0 %v378
    %604 = vmatpush.msra.mxu0 %v374
    %605 = vmatpush.msra.mxu0 %v370
    %606 = vmatpush.msra.mxu0 %v366
    %607 = vmatpush.msra.mxu0 %v362
    %608 = vmatpush.msra.mxu0 %v358
    %609 = vmatpush.msra.mxu0 %v354
    %610 = vmatpush.msra.mxu0 %v350
    %611 = vmatpush.msra.mxu0 %v346
    %612 = vmatpush.msra.mxu0 %v342
    %613 = vmatmul.f32.gmra.mxu0 %v527
    %v614 = vpop.f32.mrf.mxu0
    %v615 = vadd.f32 0.0, %v614
    %616 = vdwg.mxu0
    %v617 = vadd.f32 %v533, %v555
    %v618 = vadd.f32 %v534, %v575
    %v619 = vadd.f32 %v535, %v595
    %v620 = vadd.f32 %v536, %v615
    %v621 = vmul.f32 %v617, 0.5
    %v622 = vtanh.pop %v621
    %v623 = vmul.f32 %v622, 0.5
    %v624 = vadd.f32 %v623, 0.5
    %v625 = vmul.f32 %v618, 0.5
    %v626 = vtanh.pop %v625
    %v627 = vmul.f32 %v626, 0.5
    %v628 = vadd.f32 %v627, 0.5
    %v629 = vtanh.pop %v619
    %v630 = vmul.f32 %v620, 0.5
    %v631 = vtanh.pop %v630
    %v632 = vmul.f32 %v631, 0.5
    %v633 = vadd.f32 %v632, 0.5
    %v634 = vmul.f32 %v628, %v525
    %v635 = vmul.f32 %v624, %v629
    %v636 = vadd.f32 %v634, %v635
    %v637 = vtanh.pop %v636
    %v638 = vmul.f32 %v633, %v637
    %s639 = scalar_lea.vmem [#allocation3], 16
    %640 = vst [vmem:[%s639] sm:$0xff] %v638
    %s641 = smul.u32 3, 4
    %s642 = smul.addr %s641, 8
    %s643 = scalar_lea.vmem [#allocation2], %s642
    %v644 = vld [vmem:[%s643] sm:$0xff]
    %v645 = vld [vmem:[%s643 + $0x8] sm:$0xff]
    %v646 = vld [vmem:[%s643 + $0x10] sm:$0xff]
    %v647 = vld [vmem:[%s643 + $0x18] sm:$0xff]
    %648 = vmatpush.msra.mxu0 %v399
    %649 = vmatpush.msra.mxu0 %v395
    %650 = vmatpush.msra.mxu0 %v391
    %651 = vmatpush.msra.mxu0 %v387
    %652 = vmatpush.msra.mxu0 %v383
    %653 = vmatpush.msra.mxu0 %v379
    %654 = vmatpush.msra.mxu0 %v375
    %655 = vmatpush.msra.mxu0 %v371
    %656 = vmatpush.msra.mxu0 %v367
    %657 = vmatpush.msra.mxu0 %v363
    %658 = vmatpush.msra.mxu0 %v359
    %659 = vmatpush.msra.mxu0 %v355
    %660 = vmatpush.msra.mxu0 %v351
    %661 = vmatpush.msra.mxu0 %v347
    %662 = vmatpush.msra.mxu0 %v343
    %663 = vmatpush.msra.mxu0 %v339
    %664 = vmatmul.f32.gmra.mxu0 %v638
    %v665 = vpop.f32.mrf.mxu0
    %v666 = vadd.f32 0.0, %v665
    %667 = vdwg.mxu0
    %668 = vmatpush.msra.mxu0 %v400
    %669 = vmatpush.msra.mxu0 %v396
    %670 = vmatpush.msra.mxu0 %v392
    %671 = vmatpush.msra.mxu0 %v388
    %672 = vmatpush.msra.mxu0 %v384
    %673 = vmatpush.msra.mxu0 %v380
    %674 = vmatpush.msra.mxu0 %v376
    %675 = vmatpush.msra.mxu0 %v372
    %676 = vmatpush.msra.mxu0 %v368
    %677 = vmatpush.msra.mxu0 %v364
    %678 = vmatpush.msra.mxu0 %v360
    %679 = vmatpush.msra.mxu0 %v356
    %680 = vmatpush.msra.mxu0 %v352
    %681 = vmatpush.msra.mxu0 %v348
    %682 = vmatpush.msra.mxu0 %v344
    %683 = vmatpush.msra.mxu0 %v340
    %684 = vmatmul.f32.gmra.mxu0 %v638
    %v685 = vpop.f32.mrf.mxu0
    %v686 = vadd.f32 0.0, %v685
    %687 = vdwg.mxu0
    %688 = vmatpush.msra.mxu0 %v401
    %689 = vmatpush.msra.mxu0 %v397
    %690 = vmatpush.msra.mxu0 %v393
    %691 = vmatpush.msra.mxu0 %v389
    %692 = vmatpush.msra.mxu0 %v385
    %693 = vmatpush.msra.mxu0 %v381
    %694 = vmatpush.msra.mxu0 %v377
    %695 = vmatpush.msra.mxu0 %v373
    %696 = vmatpush.msra.mxu0 %v369
    %697 = vmatpush.msra.mxu0 %v365
    %698 = vmatpush.msra.mxu0 %v361
    %699 = vmatpush.msra.mxu0 %v357
    %700 = vmatpush.msra.mxu0 %v353
    %701 = vmatpush.msra.mxu0 %v349
    %702 = vmatpush.msra.mxu0 %v345
    %703 = vmatpush.msra.mxu0 %v341
    %704 = vmatmul.f32.gmra.mxu0 %v638
    %v705 = vpop.f32.mrf.mxu0
    %v706 = vadd.f32 0.0, %v705
    %707 = vdwg.mxu0
    %708 = vmatpush.msra.mxu0 %v402
    %709 = vmatpush.msra.mxu0 %v398
    %710 = vmatpush.msra.mxu0 %v394
    %711 = vmatpush.msra.mxu0 %v390
    %712 = vmatpush.msra.mxu0 %v386
    %713 = vmatpush.msra.mxu0 %v382
    %714 = vmatpush.msra.mxu0 %v378
    %715 = vmatpush.msra.mxu0 %v374
    %716 = vmatpush.msra.mxu0 %v370
    %717 = vmatpush.msra.mxu0 %v366
    %718 = vmatpush.msra.mxu0 %v362
    %719 = vmatpush.msra.mxu0 %v358
    %720 = vmatpush.msra.mxu0 %v354
    %721 = vmatpush.msra.mxu0 %v350
    %722 = vmatpush.msra.mxu0 %v346
    %723 = vmatpush.msra.mxu0 %v342
    %724 = vmatmul.f32.gmra.mxu0 %v638
    %v725 = vpop.f32.mrf.mxu0
    %v726 = vadd.f32 0.0, %v725
    %727 = vdwg.mxu0
    %v728 = vadd.f32 %v644, %v666
    %v729 = vadd.f32 %v645, %v686
    %v730 = vadd.f32 %v646, %v706
    %v731 = vadd.f32 %v647, %v726
    %v732 = vmul.f32 %v728, 0.5
    %v733 = vtanh.pop %v732
    %v734 = vmul.f32 %v733, 0.5
    %v735 = vadd.f32 %v734, 0.5
    %v736 = vmul.f32 %v729, 0.5
    %v737 = vtanh.pop %v736
    %v738 = vmul.f32 %v737, 0.5
    %v739 = vadd.f32 %v738, 0.5
    %v740 = vtanh.pop %v730
    %v741 = vmul.f32 %v731, 0.5
    %v742 = vtanh.pop %v741
    %v743 = vmul.f32 %v742, 0.5
    %v744 = vadd.f32 %v743, 0.5
    %v745 = vmul.f32 %v739, %v636
    %v746 = vmul.f32 %v735, %v740
    %v747 = vadd.f32 %v745, %v746
    %v748 = vtanh.pop %v747
    %v749 = vmul.f32 %v744, %v748
    %s750 = scalar_lea.vmem [#allocation3], 24
    %751 = vst [vmem:[%s750] sm:$0xff] %v749
    %s752 = smul.u32 4, 4
    %s753 = smul.addr %s752, 8
    %s754 = scalar_lea.vmem [#allocation2], %s753
    %v755 = vld [vmem:[%s754] sm:$0xff]
    %v756 = vld [vmem:[%s754 + $0x8] sm:$0xff]
    %v757 = vld [vmem:[%s754 + $0x10] sm:$0xff]
    %v758 = vld [vmem:[%s754 + $0x18] sm:$0xff]
    %759 = vmatpush.msra.mxu0 %v399
    %760 = vmatpush.msra.mxu0 %v395
    %761 = vmatpush.msra.mxu0 %v391
    %762 = vmatpush.msra.mxu0 %v387
    %763 = vmatpush.msra.mxu0 %v383
    %764 = vmatpush.msra.mxu0 %v379
    %765 = vmatpush.msra.mxu0 %v375
    %766 = vmatpush.msra.mxu0 %v371
    %767 = vmatpush.msra.mxu0 %v367
    %768 = vmatpush.msra.mxu0 %v363
    %769 = vmatpush.msra.mxu0 %v359
    %770 = vmatpush.msra.mxu0 %v355
    %771 = vmatpush.msra.mxu0 %v351
    %772 = vmatpush.msra.mxu0 %v347
    %773 = vmatpush.msra.mxu0 %v343
    %774 = vmatpush.msra.mxu0 %v339
    %775 = vmatmul.f32.gmra.mxu0 %v749
    %v776 = vpop.f32.mrf.mxu0
    %v777 = vadd.f32 0.0, %v776
    %778 = vdwg.mxu0
    %779 = vmatpush.msra.mxu0 %v400
    %780 = vmatpush.msra.mxu0 %v396
    %781 = vmatpush.msra.mxu0 %v392
    %782 = vmatpush.msra.mxu0 %v388
    %783 = vmatpush.msra.mxu0 %v384
    %784 = vmatpush.msra.mxu0 %v380
    %785 = vmatpush.msra.mxu0 %v376
    %786 = vmatpush.msra.mxu0 %v372
    %787 = vmatpush.msra.mxu0 %v368
    %788 = vmatpush.msra.mxu0 %v364
    %789 = vmatpush.msra.mxu0 %v360
    %790 = vmatpush.msra.mxu0 %v356
    %791 = vmatpush.msra.mxu0 %v352
    %792 = vmatpush.msra.mxu0 %v348
    %793 = vmatpush.msra.mxu0 %v344
    %794 = vmatpush.msra.mxu0 %v340
    %795 = vmatmul.f32.gmra.mxu0 %v749
    %v796 = vpop.f32.mrf.mxu0
    %v797 = vadd.f32 0.0, %v796
    %798 = vdwg.mxu0
    %799 = vmatpush.msra.mxu0 %v401
    %800 = vmatpush.msra.mxu0 %v397
    %801 = vmatpush.msra.mxu0 %v393
    %802 = vmatpush.msra.mxu0 %v389
    %803 = vmatpush.msra.mxu0 %v385
    %804 = vmatpush.msra.mxu0 %v381
    %805 = vmatpush.msra.mxu0 %v377
    %806 = vmatpush.msra.mxu0 %v373
    %807 = vmatpush.msra.mxu0 %v369
    %808 = vmatpush.msra.mxu0 %v365
    %809 = vmatpush.msra.mxu0 %v361
    %810 = vmatpush.msra.mxu0 %v357
    %811 = vmatpush.msra.mxu0 %v353
    %812 = vmatpush.msra.mxu0 %v349
    %813 = vmatpush.msra.mxu0 %v345
    %814 = vmatpush.msra.mxu0 %v341
    %815 = vmatmul.f32.gmra.mxu0 %v749
    %v816 = vpop.f32.mrf.mxu0
    %v817 = vadd.f32 0.0, %v816
    %818 = vdwg.mxu0
    %819 = vmatpush.msra.mxu0 %v402
    %820 = vmatpush.msra.mxu0 %v398
    %821 = vmatpush.msra.mxu0 %v394
    %822 = vmatpush.msra.mxu0 %v390
    %823 = vmatpush.msra.mxu0 %v386
    %824 = vmatpush.msra.mxu0 %v382
    %825 = vmatpush.msra.mxu0 %v378
    %826 = vmatpush.msra.mxu0 %v374
    %827 = vmatpush.msra.mxu0 %v370
    %828 = vmatpush.msra.mxu0 %v366
    %829 = vmatpush.msra.mxu0 %v362
    %830 = vmatpush.msra.mxu0 %v358
    %831 = vmatpush.msra.mxu0 %v354
    %832 = vmatpush.msra.mxu0 %v350
    %833 = vmatpush.msra.mxu0 %v346
    %834 = vmatpush.msra.mxu0 %v342
    %835 = vmatmul.f32.gmra.mxu0 %v749
    %v836 = vpop.f32.mrf.mxu0
    %v837 = vadd.f32 0.0, %v836
    %838 = vdwg.mxu0
    %v839 = vadd.f32 %v755, %v777
    %v840 = vadd.f32 %v756, %v797
    %v841 = vadd.f32 %v757, %v817
    %v842 = vadd.f32 %v758, %v837
    %v843 = vmul.f32 %v839, 0.5
    %v844 = vtanh.pop %v843
    %v845 = vmul.f32 %v844, 0.5
    %v846 = vadd.f32 %v845, 0.5
    %v847 = vmul.f32 %v840, 0.5
    %v848 = vtanh.pop %v847
    %v849 = vmul.f32 %v848, 0.5
    %v850 = vadd.f32 %v849, 0.5
    %v851 = vtanh.pop %v841
    %v852 = vmul.f32 %v842, 0.5
    %v853 = vtanh.pop %v852
    %v854 = vmul.f32 %v853, 0.5
    %v855 = vadd.f32 %v854, 0.5
    %v856 = vmul.f32 %v850, %v747
    %v857 = vmul.f32 %v846, %v851
    %v858 = vadd.f32 %v856, %v857
    %v859 = vtanh.pop %v858
    %v860 = vmul.f32 %v855, %v859
    %s861 = scalar_lea.vmem [#allocation3], 32
    %862 = vst [vmem:[%s861] sm:$0xff] %v860
    %s863 = smul.u32 5, 4
    %s864 = smul.addr %s863, 8
    %s865 = scalar_lea.vmem [#allocation2], %s864
    %v866 = vld [vmem:[%s865] sm:$0xff]
    %v867 = vld [vmem:[%s865 + $0x8] sm:$0xff]
    %v868 = vld [vmem:[%s865 + $0x10] sm:$0xff]
    %v869 = vld [vmem:[%s865 + $0x18] sm:$0xff]
    %870 = vmatpush.msra.mxu0 %v399
    %871 = vmatpush.msra.mxu0 %v395
    %872 = vmatpush.msra.mxu0 %v391
    %873 = vmatpush.msra.mxu0 %v387
    %874 = vmatpush.msra.mxu0 %v383
    %875 = vmatpush.msra.mxu0 %v379
    %876 = vmatpush.msra.mxu0 %v375
    %877 = vmatpush.msra.mxu0 %v371
    %878 = vmatpush.msra.mxu0 %v367
    %879 = vmatpush.msra.mxu0 %v363
    %880 = vmatpush.msra.mxu0 %v359
    %881 = vmatpush.msra.mxu0 %v355
    %882 = vmatpush.msra.mxu0 %v351
    %883 = vmatpush.msra.mxu0 %v347
    %884 = vmatpush.msra.mxu0 %v343
    %885 = vmatpush.msra.mxu0 %v339
    %886 = vmatmul.f32.gmra.mxu0 %v860
    %v887 = vpop.f32.mrf.mxu0
    %v888 = vadd.f32 0.0, %v887
    %889 = vdwg.mxu0
    %890 = vmatpush.msra.mxu0 %v400
    %891 = vmatpush.msra.mxu0 %v396
    %892 = vmatpush.msra.mxu0 %v392
    %893 = vmatpush.msra.mxu0 %v388
    %894 = vmatpush.msra.mxu0 %v384
    %895 = vmatpush.msra.mxu0 %v380
    %896 = vmatpush.msra.mxu0 %v376
    %897 = vmatpush.msra.mxu0 %v372
    %898 = vmatpush.msra.mxu0 %v368
    %899 = vmatpush.msra.mxu0 %v364
    %900 = vmatpush.msra.mxu0 %v360
    %901 = vmatpush.msra.mxu0 %v356
    %902 = vmatpush.msra.mxu0 %v352
    %903 = vmatpush.msra.mxu0 %v348
    %904 = vmatpush.msra.mxu0 %v344
    %905 = vmatpush.msra.mxu0 %v340
    %906 = vmatmul.f32.gmra.mxu0 %v860
    %v907 = vpop.f32.mrf.mxu0
    %v908 = vadd.f32 0.0, %v907
    %909 = vdwg.mxu0
    %910 = vmatpush.msra.mxu0 %v401
    %911 = vmatpush.msra.mxu0 %v397
    %912 = vmatpush.msra.mxu0 %v393
    %913 = vmatpush.msra.mxu0 %v389
    %914 = vmatpush.msra.mxu0 %v385
    %915 = vmatpush.msra.mxu0 %v381
    %916 = vmatpush.msra.mxu0 %v377
    %917 = vmatpush.msra.mxu0 %v373
    %918 = vmatpush.msra.mxu0 %v369
    %919 = vmatpush.msra.mxu0 %v365
    %920 = vmatpush.msra.mxu0 %v361
    %921 = vmatpush.msra.mxu0 %v357
    %922 = vmatpush.msra.mxu0 %v353
    %923 = vmatpush.msra.mxu0 %v349
    %924 = vmatpush.msra.mxu0 %v345
    %925 = vmatpush.msra.mxu0 %v341
    %926 = vmatmul.f32.gmra.mxu0 %v860
    %v927 = vpop.f32.mrf.mxu0
    %v928 = vadd.f32 0.0, %v927
    %929 = vdwg.mxu0
    %930 = vmatpush.msra.mxu0 %v402
    %931 = vmatpush.msra.mxu0 %v398
    %932 = vmatpush.msra.mxu0 %v394
    %933 = vmatpush.msra.mxu0 %v390
    %934 = vmatpush.msra.mxu0 %v386
    %935 = vmatpush.msra.mxu0 %v382
    %936 = vmatpush.msra.mxu0 %v378
    %937 = vmatpush.msra.mxu0 %v374
    %938 = vmatpush.msra.mxu0 %v370
    %939 = vmatpush.msra.mxu0 %v366
    %940 = vmatpush.msra.mxu0 %v362
    %941 = vmatpush.msra.mxu0 %v358
    %942 = vmatpush.msra.mxu0 %v354
    %943 = vmatpush.msra.mxu0 %v350
    %944 = vmatpush.msra.mxu0 %v346
    %945 = vmatpush.msra.mxu0 %v342
    %946 = vmatmul.f32.gmra.mxu0 %v860
    %v947 = vpop.f32.mrf.mxu0
    %v948 = vadd.f32 0.0, %v947
    %949 = vdwg.mxu0
    %v950 = vadd.f32 %v866, %v888
    %v951 = vadd.f32 %v867, %v908
    %v952 = vadd.f32 %v868, %v928
    %v953 = vadd.f32 %v869, %v948
    %v954 = vmul.f32 %v950, 0.5
    %v955 = vtanh.pop %v954
    %v956 = vmul.f32 %v955, 0.5
    %v957 = vadd.f32 %v956, 0.5
    %v958 = vmul.f32 %v951, 0.5
    %v959 = vtanh.pop %v958
    %v960 = vmul.f32 %v959, 0.5
    %v961 = vadd.f32 %v960, 0.5
    %v962 = vtanh.pop %v952
    %v963 = vmul.f32 %v953, 0.5
    %v964 = vtanh.pop %v963
    %v965 = vmul.f32 %v964, 0.5
    %v966 = vadd.f32 %v965, 0.5
    %v967 = vmul.f32 %v961, %v858
    %v968 = vmul.f32 %v957, %v962
    %v969 = vadd.f32 %v967, %v968
    %v970 = vtanh.pop %v969
    %v971 = vmul.f32 %v966, %v970
    %s972 = scalar_lea.vmem [#allocation3], 40
    %973 = vst [vmem:[%s972] sm:$0xff] %v971
    %s974 = smul.u32 6, 4
    %s975 = smul.addr %s974, 8
    %s976 = scalar_lea.vmem [#allocation2], %s975
    %v977 = vld [vmem:[%s976] sm:$0xff]
    %v978 = vld [vmem:[%s976 + $0x8] sm:$0xff]
    %v979 = vld [vmem:[%s976 + $0x10] sm:$0xff]
    %v980 = vld [vmem:[%s976 + $0x18] sm:$0xff]
    %981 = vmatpush.msra.mxu0 %v399
    %982 = vmatpush.msra.mxu0 %v395
    %983 = vmatpush.msra.mxu0 %v391
    %984 = vmatpush.msra.mxu0 %v387
    %985 = vmatpush.msra.mxu0 %v383
    %986 = vmatpush.msra.mxu0 %v379
    %987 = vmatpush.msra.mxu0 %v375
    %988 = vmatpush.msra.mxu0 %v371
    %989 = vmatpush.msra.mxu0 %v367
    %990 = vmatpush.msra.mxu0 %v363
    %991 = vmatpush.msra.mxu0 %v359
    %992 = vmatpush.msra.mxu0 %v355
    %993 = vmatpush.msra.mxu0 %v351
    %994 = vmatpush.msra.mxu0 %v347
    %995 = vmatpush.msra.mxu0 %v343
    %996 = vmatpush.msra.mxu0 %v339
    %997 = vmatmul.f32.gmra.mxu0 %v971
    %v998 = vpop.f32.mrf.mxu0
    %v999 = vadd.f32 0.0, %v998
    %1000 = vdwg.mxu0
    %1001 = vmatpush.msra.mxu0 %v400
    %1002 = vmatpush.msra.mxu0 %v396
    %1003 = vmatpush.msra.mxu0 %v392
    %1004 = vmatpush.msra.mxu0 %v388
    %1005 = vmatpush.msra.mxu0 %v384
    %1006 = vmatpush.msra.mxu0 %v380
    %1007 = vmatpush.msra.mxu0 %v376
    %1008 = vmatpush.msra.mxu0 %v372
    %1009 = vmatpush.msra.mxu0 %v368
    %1010 = vmatpush.msra.mxu0 %v364
    %1011 = vmatpush.msra.mxu0 %v360
    %1012 = vmatpush.msra.mxu0 %v356
    %1013 = vmatpush.msra.mxu0 %v352
    %1014 = vmatpush.msra.mxu0 %v348
    %1015 = vmatpush.msra.mxu0 %v344
    %1016 = vmatpush.msra.mxu0 %v340
    %1017 = vmatmul.f32.gmra.mxu0 %v971
    %v1018 = vpop.f32.mrf.mxu0
    %v1019 = vadd.f32 0.0, %v1018
    %1020 = vdwg.mxu0
    %1021 = vmatpush.msra.mxu0 %v401
    %1022 = vmatpush.msra.mxu0 %v397
    %1023 = vmatpush.msra.mxu0 %v393
    %1024 = vmatpush.msra.mxu0 %v389
    %1025 = vmatpush.msra.mxu0 %v385
    %1026 = vmatpush.msra.mxu0 %v381
    %1027 = vmatpush.msra.mxu0 %v377
    %1028 = vmatpush.msra.mxu0 %v373
    %1029 = vmatpush.msra.mxu0 %v369
    %1030 = vmatpush.msra.mxu0 %v365
    %1031 = vmatpush.msra.mxu0 %v361
    %1032 = vmatpush.msra.mxu0 %v357
    %1033 = vmatpush.msra.mxu0 %v353
    %1034 = vmatpush.msra.mxu0 %v349
    %1035 = vmatpush.msra.mxu0 %v345
    %1036 = vmatpush.msra.mxu0 %v341
    %1037 = vmatmul.f32.gmra.mxu0 %v971
    %v1038 = vpop.f32.mrf.mxu0
    %v1039 = vadd.f32 0.0, %v1038
    %1040 = vdwg.mxu0
    %1041 = vmatpush.msra.mxu0 %v402
    %1042 = vmatpush.msra.mxu0 %v398
    %1043 = vmatpush.msra.mxu0 %v394
    %1044 = vmatpush.msra.mxu0 %v390
    %1045 = vmatpush.msra.mxu0 %v386
    %1046 = vmatpush.msra.mxu0 %v382
    %1047 = vmatpush.msra.mxu0 %v378
    %1048 = vmatpush.msra.mxu0 %v374
    %1049 = vmatpush.msra.mxu0 %v370
    %1050 = vmatpush.msra.mxu0 %v366
    %1051 = vmatpush.msra.mxu0 %v362
    %1052 = vmatpush.msra.mxu0 %v358
    %1053 = vmatpush.msra.mxu0 %v354
    %1054 = vmatpush.msra.mxu0 %v350
    %1055 = vmatpush.msra.mxu0 %v346
    %1056 = vmatpush.msra.mxu0 %v342
    %1057 = vmatmul.f32.gmra.mxu0 %v971
    %v1058 = vpop.f32.mrf.mxu0
    %v1059 = vadd.f32 0.0, %v1058
    %1060 = vdwg.mxu0
    %v1061 = vadd.f32 %v977, %v999
    %v1062 = vadd.f32 %v978, %v1019
    %v1063 = vadd.f32 %v979, %v1039
    %v1064 = vadd.f32 %v980, %v1059
    %v1065 = vmul.f32 %v1061, 0.5
    %v1066 = vtanh.pop %v1065
    %v1067 = vmul.f32 %v1066, 0.5
    %v1068 = vadd.f32 %v1067, 0.5
    %v1069 = vmul.f32 %v1062, 0.5
    %v1070 = vtanh.pop %v1069
    %v1071 = vmul.f32 %v1070, 0.5
    %v1072 = vadd.f32 %v1071, 0.5
    %v1073 = vtanh.pop %v1063
    %v1074 = vmul.f32 %v1064, 0.5
    %v1075 = vtanh.pop %v1074
    %v1076 = vmul.f32 %v1075, 0.5
    %v1077 = vadd.f32 %v1076, 0.5
    %v1078 = vmul.f32 %v1072, %v969
    %v1079 = vmul.f32 %v1068, %v1073
    %v1080 = vadd.f32 %v1078, %v1079
    %v1081 = vtanh.pop %v1080
    %v1082 = vmul.f32 %v1077, %v1081
    %s1083 = scalar_lea.vmem [#allocation3], 48
    %1084 = vst [vmem:[%s1083] sm:$0xff] %v1082
    %s1085 = smul.u32 7, 4
    %s1086 = smul.addr %s1085, 8
    %s1087 = scalar_lea.vmem [#allocation2], %s1086
    %v1088 = vld [vmem:[%s1087] sm:$0xff]
    %v1089 = vld [vmem:[%s1087 + $0x8] sm:$0xff]
    %v1090 = vld [vmem:[%s1087 + $0x10] sm:$0xff]
    %v1091 = vld [vmem:[%s1087 + $0x18] sm:$0xff]
    %1092 = vmatpush.msra.mxu0 %v399
    %1093 = vmatpush.msra.mxu0 %v395
    %1094 = vmatpush.msra.mxu0 %v391
    %1095 = vmatpush.msra.mxu0 %v387
    %1096 = vmatpush.msra.mxu0 %v383
    %1097 = vmatpush.msra.mxu0 %v379
    %1098 = vmatpush.msra.mxu0 %v375
    %1099 = vmatpush.msra.mxu0 %v371
    %1100 = vmatpush.msra.mxu0 %v367
    %1101 = vmatpush.msra.mxu0 %v363
    %1102 = vmatpush.msra.mxu0 %v359
    %1103 = vmatpush.msra.mxu0 %v355
    %1104 = vmatpush.msra.mxu0 %v351
    %1105 = vmatpush.msra.mxu0 %v347
    %1106 = vmatpush.msra.mxu0 %v343
    %1107 = vmatpush.msra.mxu0 %v339
    %1108 = vmatmul.f32.gmra.mxu0 %v1082
    %v1109 = vpop.f32.mrf.mxu0
    %v1110 = vadd.f32 0.0, %v1109
    %1111 = vdwg.mxu0
    %1112 = vmatpush.msra.mxu0 %v400
    %1113 = vmatpush.msra.mxu0 %v396
    %1114 = vmatpush.msra.mxu0 %v392
    %1115 = vmatpush.msra.mxu0 %v388
    %1116 = vmatpush.msra.mxu0 %v384
    %1117 = vmatpush.msra.mxu0 %v380
    %1118 = vmatpush.msra.mxu0 %v376
    %1119 = vmatpush.msra.mxu0 %v372
    %1120 = vmatpush.msra.mxu0 %v368
    %1121 = vmatpush.msra.mxu0 %v364
    %1122 = vmatpush.msra.mxu0 %v360
    %1123 = vmatpush.msra.mxu0 %v356
    %1124 = vmatpush.msra.mxu0 %v352
    %1125 = vmatpush.msra.mxu0 %v348
    %1126 = vmatpush.msra.mxu0 %v344
    %1127 = vmatpush.msra.mxu0 %v340
    %1128 = vmatmul.f32.gmra.mxu0 %v1082
    %v1129 = vpop.f32.mrf.mxu0
    %v1130 = vadd.f32 0.0, %v1129
    %1131 = vdwg.mxu0
    %1132 = vmatpush.msra.mxu0 %v401
    %1133 = vmatpush.msra.mxu0 %v397
    %1134 = vmatpush.msra.mxu0 %v393
    %1135 = vmatpush.msra.mxu0 %v389
    %1136 = vmatpush.msra.mxu0 %v385
    %1137 = vmatpush.msra.mxu0 %v381
    %1138 = vmatpush.msra.mxu0 %v377
    %1139 = vmatpush.msra.mxu0 %v373
    %1140 = vmatpush.msra.mxu0 %v369
    %1141 = vmatpush.msra.mxu0 %v365
    %1142 = vmatpush.msra.mxu0 %v361
    %1143 = vmatpush.msra.mxu0 %v357
    %1144 = vmatpush.msra.mxu0 %v353
    %1145 = vmatpush.msra.mxu0 %v349
    %1146 = vmatpush.msra.mxu0 %v345
    %1147 = vmatpush.msra.mxu0 %v341
    %1148 = vmatmul.f32.gmra.mxu0 %v1082
    %v1149 = vpop.f32.mrf.mxu0
    %v1150 = vadd.f32 0.0, %v1149
    %1151 = vdwg.mxu0
    %1152 = vmatpush.msra.mxu0 %v402
    %1153 = vmatpush.msra.mxu0 %v398
    %1154 = vmatpush.msra.mxu0 %v394
    %1155 = vmatpush.msra.mxu0 %v390
    %1156 = vmatpush.msra.mxu0 %v386
    %1157 = vmatpush.msra.mxu0 %v382
    %1158 = vmatpush.msra.mxu0 %v378
    %1159 = vmatpush.msra.mxu0 %v374
    %1160 = vmatpush.msra.mxu0 %v370
    %1161 = vmatpush.msra.mxu0 %v366
    %1162 = vmatpush.msra.mxu0 %v362
    %1163 = vmatpush.msra.mxu0 %v358
    %1164 = vmatpush.msra.mxu0 %v354
    %1165 = vmatpush.msra.mxu0 %v350
    %1166 = vmatpush.msra.mxu0 %v346
    %1167 = vmatpush.msra.mxu0 %v342
    %1168 = vmatmul.f32.gmra.mxu0 %v1082
    %v1169 = vpop.f32.mrf.mxu0
    %v1170 = vadd.f32 0.0, %v1169
    %1171 = vdwg.mxu0
    %v1172 = vadd.f32 %v1088, %v1110
    %v1173 = vadd.f32 %v1089, %v1130
    %v1174 = vadd.f32 %v1090, %v1150
    %v1175 = vadd.f32 %v1091, %v1170
    %v1176 = vmul.f32 %v1172, 0.5
    %v1177 = vtanh.pop %v1176
    %v1178 = vmul.f32 %v1177, 0.5
    %v1179 = vadd.f32 %v1178, 0.5
    %v1180 = vmul.f32 %v1173, 0.5
    %v1181 = vtanh.pop %v1180
    %v1182 = vmul.f32 %v1181, 0.5
    %v1183 = vadd.f32 %v1182, 0.5
    %v1184 = vtanh.pop %v1174
    %v1185 = vmul.f32 %v1175, 0.5
    %v1186 = vtanh.pop %v1185
    %v1187 = vmul.f32 %v1186, 0.5
    %v1188 = vadd.f32 %v1187, 0.5
    %v1189 = vmul.f32 %v1183, %v1080
    %v1190 = vmul.f32 %v1179, %v1184
    %v1191 = vadd.f32 %v1189, %v1190
    %v1192 = vtanh.pop %v1191
    %v1193 = vmul.f32 %v1188, %v1192
    %s1194 = scalar_lea.vmem [#allocation3], 56
    %1195 = vst [vmem:[%s1194] sm:$0xff] %v1193
    %v1196 = vld [vmem:[#allocation3] sm:$0xff]
    %v1197 = vld [vmem:[#allocation3 + $0x8] sm:$0xff]
    %v1198 = vld [vmem:[#allocation3 + $0x10] sm:$0xff]
    %v1199 = vld [vmem:[#allocation3 + $0x18] sm:$0xff]
    %v1200 = vld [vmem:[#allocation3 + $0x20] sm:$0xff]
    %v1201 = vld [vmem:[#allocation3 + $0x28] sm:$0xff]
    %v1202 = vld [vmem:[#allocation3 + $0x30] sm:$0xff]
    %v1203 = vld [vmem:[#allocation3 + $0x38] sm:$0xff]
    %v1204 = vld [vmem:[#allocation7] sm:$0xff]
    %v1205 = vld [vmem:[#allocation7 + $0x8] sm:$0xff]
    %v1206 = vld [vmem:[#allocation7 + $0x10] sm:$0xff]
    %v1207 = vld [vmem:[#allocation7 + $0x18] sm:$0xff]
    %v1208 = vld [vmem:[#allocation7 + $0x20] sm:$0xff]
    %v1209 = vld [vmem:[#allocation7 + $0x28] sm:$0xff]
    %v1210 = vld [vmem:[#allocation7 + $0x30] sm:$0xff]
    %v1211 = vld [vmem:[#allocation7 + $0x38] sm:$0xff]
    %v1212 = vld [vmem:[#allocation7 + $0x40] sm:$0xff]
    %v1213 = vld [vmem:[#allocation7 + $0x48] sm:$0xff]
    %v1214 = vld [vmem:[#allocation7 + $0x50] sm:$0xff]
    %v1215 = vld [vmem:[#allocation7 + $0x58] sm:$0xff]
    %v1216 = vld [vmem:[#allocation7 + $0x60] sm:$0xff]
    %v1217 = vld [vmem:[#allocation7 + $0x68] sm:$0xff]
    %v1218 = vld [vmem:[#allocation7 + $0x70] sm:$0xff]
    %v1219 = vld [vmem:[#allocation7 + $0x78] sm:$0xff]
    %v1220 = vld [vmem:[#allocation7 + $0x80] sm:$0xff]
    %v1221 = vld [vmem:[#allocation7 + $0x88] sm:$0xff]
    %v1222 = vld [vmem:[#allocation7 + $0x90] sm:$0xff]
    %v1223 = vld [vmem:[#allocation7 + $0x98] sm:$0xff]
    %v1224 = vld [vmem:[#allocation7 + $0xa0] sm:$0xff]
    %v1225 = vld [vmem:[#allocation7 + $0xa8] sm:$0xff]
    %v1226 = vld [vmem:[#allocation7 + $0xb0] sm:$0xff]
    %v1227 = vld [vmem:[#allocation7 + $0xb8] sm:$0xff]
    %v1228 = vld [vmem:[#allocation7 + $0xc0] sm:$0xff]
    %v1229 = vld [vmem:[#allocation7 + $0xc8] sm:$0xff]
    %v1230 = vld [vmem:[#allocation7 + $0xd0] sm:$0xff]
    %v1231 = vld [vmem:[#allocation7 + $0xd8] sm:$0xff]
    %v1232 = vld [vmem:[#allocation7 + $0xe0] sm:$0xff]
    %v1233 = vld [vmem:[#allocation7 + $0xe8] sm:$0xff]
    %v1234 = vld [vmem:[#allocation7 + $0xf0] sm:$0xff]
    %v1235 = vld [vmem:[#allocation7 + $0xf8] sm:$0xff]
    %v1236 = vld [vmem:[#allocation7 + $0x100] sm:$0xff]
    %v1237 = vld [vmem:[#allocation7 + $0x108] sm:$0xff]
    %v1238 = vld [vmem:[#allocation7 + $0x110] sm:$0xff]
    %v1239 = vld [vmem:[#allocation7 + $0x118] sm:$0xff]
    %v1240 = vld [vmem:[#allocation7 + $0x120] sm:$0xff]
    %v1241 = vld [vmem:[#allocation7 + $0x128] sm:$0xff]
    %v1242 = vld [vmem:[#allocation7 + $0x130] sm:$0xff]
    %v1243 = vld [vmem:[#allocation7 + $0x138] sm:$0xff]
    %v1244 = vld [vmem:[#allocation7 + $0x140] sm:$0xff]
    %v1245 = vld [vmem:[#allocation7 + $0x148] sm:$0xff]
    %v1246 = vld [vmem:[#allocation7 + $0x150] sm:$0xff]
    %v1247 = vld [vmem:[#allocation7 + $0x158] sm:$0xff]
    %v1248 = vld [vmem:[#allocation7 + $0x160] sm:$0xff]
    %v1249 = vld [vmem:[#allocation7 + $0x168] sm:$0xff]
    %v1250 = vld [vmem:[#allocation7 + $0x170] sm:$0xff]
    %v1251 = vld [vmem:[#allocation7 + $0x178] sm:$0xff]
    %v1252 = vld [vmem:[#allocation7 + $0x180] sm:$0xff]
    %v1253 = vld [vmem:[#allocation7 + $0x188] sm:$0xff]
    %v1254 = vld [vmem:[#allocation7 + $0x190] sm:$0xff]
    %v1255 = vld [vmem:[#allocation7 + $0x198] sm:$0xff]
    %v1256 = vld [vmem:[#allocation7 + $0x1a0] sm:$0xff]
    %v1257 = vld [vmem:[#allocation7 + $0x1a8] sm:$0xff]
    %v1258 = vld [vmem:[#allocation7 + $0x1b0] sm:$0xff]
    %v1259 = vld [vmem:[#allocation7 + $0x1b8] sm:$0xff]
    %v1260 = vld [vmem:[#allocation7 + $0x1c0] sm:$0xff]
    %v1261 = vld [vmem:[#allocation7 + $0x1c8] sm:$0xff]
    %v1262 = vld [vmem:[#allocation7 + $0x1d0] sm:$0xff]
    %v1263 = vld [vmem:[#allocation7 + $0x1d8] sm:$0xff]
    %v1264 = vld [vmem:[#allocation7 + $0x1e0] sm:$0xff]
    %v1265 = vld [vmem:[#allocation7 + $0x1e8] sm:$0xff]
    %v1266 = vld [vmem:[#allocation7 + $0x1f0] sm:$0xff]
    %v1267 = vld [vmem:[#allocation7 + $0x1f8] sm:$0xff]
    %v1268 = vld [vmem:[%s6] sm:$0xf]
    %v1270 = vperm.slane %v1268, 0
    %v1271 = vperm.slane %v1268, 1
    %v1272 = vperm.slane %v1268, 2
    %v1273 = vperm.slane %v1268, 3
    %1278 = vmatpush.msra.mxu0 %v1264
    %1279 = vmatpush.msra.mxu0 %v1260
    %1280 = vmatpush.msra.mxu0 %v1256
    %1281 = vmatpush.msra.mxu0 %v1252
    %1282 = vmatpush.msra.mxu0 %v1248
    %1283 = vmatpush.msra.mxu0 %v1244
    %1284 = vmatpush.msra.mxu0 %v1240
    %1285 = vmatpush.msra.mxu0 %v1236
    %1286 = vmatpush.msra.mxu0 %v1232
    %1287 = vmatpush.msra.mxu0 %v1228
    %1288 = vmatpush.msra.mxu0 %v1224
    %1289 = vmatpush.msra.mxu0 %v1220
    %1290 = vmatpush.msra.mxu0 %v1216
    %1291 = vmatpush.msra.mxu0 %v1212
    %1292 = vmatpush.msra.mxu0 %v1208
    %1293 = vmatpush.msra.mxu0 %v1204
    %1294 = vmatmul.f32.gmra.mxu0 %v1196
    %v1295 = vpop.f32.mrf.mxu0
    %v1296 = vadd.f32 %v1270, %v1295
    %1297 = vmatmul.f32.gmra.mxu0 %v1197
    %v1298 = vpop.f32.mrf.mxu0
    %v1299 = vadd.f32 %v1270, %v1298
    %1300 = vmatmul.f32.gmra.mxu0 %v1198
    %v1301 = vpop.f32.mrf.mxu0
    %v1302 = vadd.f32 %v1270, %v1301
    %1303 = vmatmul.f32.gmra.mxu0 %v1199
    %v1304 = vpop.f32.mrf.mxu0
    %v1305 = vadd.f32 %v1270, %v1304
    %1306 = vmatmul.f32.gmra.mxu0 %v1200
    %v1307 = vpop.f32.mrf.mxu0
    %v1308 = vadd.f32 %v1270, %v1307
    %1309 = vmatmul.f32.gmra.mxu0 %v1201
    %v1310 = vpop.f32.mrf.mxu0
    %v1311 = vadd.f32 %v1270, %v1310
    %1312 = vmatmul.f32.gmra.mxu0 %v1202
    %v1313 = vpop.f32.mrf.mxu0
    %v1314 = vadd.f32 %v1270, %v1313
    %1315 = vmatmul.f32.gmra.mxu0 %v1203
    %v1316 = vpop.f32.mrf.mxu0
    %v1317 = vadd.f32 %v1270, %v1316
    %1318 = vdwg.mxu0
    %1319 = vmatpush.msra.mxu0 %v1265
    %1320 = vmatpush.msra.mxu0 %v1261
    %1321 = vmatpush.msra.mxu0 %v1257
    %1322 = vmatpush.msra.mxu0 %v1253
    %1323 = vmatpush.msra.mxu0 %v1249
    %1324 = vmatpush.msra.mxu0 %v1245
    %1325 = vmatpush.msra.mxu0 %v1241
    %1326 = vmatpush.msra.mxu0 %v1237
    %1327 = vmatpush.msra.mxu0 %v1233
    %1328 = vmatpush.msra.mxu0 %v1229
    %1329 = vmatpush.msra.mxu0 %v1225
    %1330 = vmatpush.msra.mxu0 %v1221
    %1331 = vmatpush.msra.mxu0 %v1217
    %1332 = vmatpush.msra.mxu0 %v1213
    %1333 = vmatpush.msra.mxu0 %v1209
    %1334 = vmatpush.msra.mxu0 %v1205
    %1335 = vmatmul.f32.gmra.mxu0 %v1196
    %v1336 = vpop.f32.mrf.mxu0
    %v1337 = vadd.f32 %v1271, %v1336
    %1338 = vmatmul.f32.gmra.mxu0 %v1197
    %v1339 = vpop.f32.mrf.mxu0
    %v1340 = vadd.f32 %v1271, %v1339
    %1341 = vmatmul.f32.gmra.mxu0 %v1198
    %v1342 = vpop.f32.mrf.mxu0
    %v1343 = vadd.f32 %v1271, %v1342
    %1344 = vmatmul.f32.gmra.mxu0 %v1199
    %v1345 = vpop.f32.mrf.mxu0
    %v1346 = vadd.f32 %v1271, %v1345
    %1347 = vmatmul.f32.gmra.mxu0 %v1200
    %v1348 = vpop.f32.mrf.mxu0
    %v1349 = vadd.f32 %v1271, %v1348
    %1350 = vmatmul.f32.gmra.mxu0 %v1201
    %v1351 = vpop.f32.mrf.mxu0
    %v1352 = vadd.f32 %v1271, %v1351
    %1353 = vmatmul.f32.gmra.mxu0 %v1202
    %v1354 = vpop.f32.mrf.mxu0
    %v1355 = vadd.f32 %v1271, %v1354
    %1356 = vmatmul.f32.gmra.mxu0 %v1203
    %v1357 = vpop.f32.mrf.mxu0
    %v1358 = vadd.f32 %v1271, %v1357
    %1359 = vdwg.mxu0
    %1360 = vmatpush.msra.mxu0 %v1266
    %1361 = vmatpush.msra.mxu0 %v1262
    %1362 = vmatpush.msra.mxu0 %v1258
    %1363 = vmatpush.msra.mxu0 %v1254
    %1364 = vmatpush.msra.mxu0 %v1250
    %1365 = vmatpush.msra.mxu0 %v1246
    %1366 = vmatpush.msra.mxu0 %v1242
    %1367 = vmatpush.msra.mxu0 %v1238
    %1368 = vmatpush.msra.mxu0 %v1234
    %1369 = vmatpush.msra.mxu0 %v1230
    %1370 = vmatpush.msra.mxu0 %v1226
    %1371 = vmatpush.msra.mxu0 %v1222
    %1372 = vmatpush.msra.mxu0 %v1218
    %1373 = vmatpush.msra.mxu0 %v1214
    %1374 = vmatpush.msra.mxu0 %v1210
    %1375 = vmatpush.msra.mxu0 %v1206
    %1376 = vmatmul.f32.gmra.mxu0 %v1196
    %v1377 = vpop.f32.mrf.mxu0
    %v1378 = vadd.f32 %v1272, %v1377
    %1379 = vmatmul.f32.gmra.mxu0 %v1197
    %v1380 = vpop.f32.mrf.mxu0
    %v1381 = vadd.f32 %v1272, %v1380
    %1382 = vmatmul.f32.gmra.mxu0 %v1198
    %v1383 = vpop.f32.mrf.mxu0
    %v1384 = vadd.f32 %v1272, %v1383
    %1385 = vmatmul.f32.gmra.mxu0 %v1199
    %v1386 = vpop.f32.mrf.mxu0
    %v1387 = vadd.f32 %v1272, %v1386
    %1388 = vmatmul.f32.gmra.mxu0 %v1200
    %v1389 = vpop.f32.mrf.mxu0
    %v1390 = vadd.f32 %v1272, %v1389
    %1391 = vmatmul.f32.gmra.mxu0 %v1201
    %v1392 = vpop.f32.mrf.mxu0
    %v1393 = vadd.f32 %v1272, %v1392
    %1394 = vmatmul.f32.gmra.mxu0 %v1202
    %v1395 = vpop.f32.mrf.mxu0
    %v1396 = vadd.f32 %v1272, %v1395
    %1397 = vmatmul.f32.gmra.mxu0 %v1203
    %v1398 = vpop.f32.mrf.mxu0
    %v1399 = vadd.f32 %v1272, %v1398
    %1400 = vdwg.mxu0
    %1401 = vmatpush.msra.mxu0 %v1267
    %1402 = vmatpush.msra.mxu0 %v1263
    %1403 = vmatpush.msra.mxu0 %v1259
    %1404 = vmatpush.msra.mxu0 %v1255
    %1405 = vmatpush.msra.mxu0 %v1251
    %1406 = vmatpush.msra.mxu0 %v1247
    %1407 = vmatpush.msra.mxu0 %v1243
    %1408 = vmatpush.msra.mxu0 %v1239
    %1409 = vmatpush.msra.mxu0 %v1235
    %1410 = vmatpush.msra.mxu0 %v1231
    %1411 = vmatpush.msra.mxu0 %v1227
    %1412 = vmatpush.msra.mxu0 %v1223
    %1413 = vmatpush.msra.mxu0 %v1219
    %1414 = vmatpush.msra.mxu0 %v1215
    %1415 = vmatpush.msra.mxu0 %v1211
    %1416 = vmatpush.msra.mxu0 %v1207
    %1417 = vmatmul.f32.gmra.mxu0 %v1196
    %v1418 = vpop.f32.mrf.mxu0
    %v1419 = vadd.f32 %v1273, %v1418
    %1420 = vmatmul.f32.gmra.mxu0 %v1197
    %v1421 = vpop.f32.mrf.mxu0
    %v1422 = vadd.f32 %v1273, %v1421
    %1423 = vmatmul.f32.gmra.mxu0 %v1198
    %v1424 = vpop.f32.mrf.mxu0
    %v1425 = vadd.f32 %v1273, %v1424
    %1426 = vmatmul.f32.gmra.mxu0 %v1199
    %v1427 = vpop.f32.mrf.mxu0
    %v1428 = vadd.f32 %v1273, %v1427
    %1429 = vmatmul.f32.gmra.mxu0 %v1200
    %v1430 = vpop.f32.mrf.mxu0
    %v1431 = vadd.f32 %v1273, %v1430
    %1432 = vmatmul.f32.gmra.mxu0 %v1201
    %v1433 = vpop.f32.mrf.mxu0
    %v1434 = vadd.f32 %v1273, %v1433
    %1435 = vmatmul.f32.gmra.mxu0 %v1202
    %v1436 = vpop.f32.mrf.mxu0
    %v1437 = vadd.f32 %v1273, %v1436
    %1438 = vmatmul.f32.gmra.mxu0 %v1203
    %v1439 = vpop.f32.mrf.mxu0
    %v1440 = vadd.f32 %v1273, %v1439
    %1441 = vdwg.mxu0
    %1442 = vst [vmem:[#allocation2] sm:$0xff] %v1296
    %1443 = vst [vmem:[#allocation2 + $0x8] sm:$0xff] %v1337
    %1444 = vst [vmem:[#allocation2 + $0x10] sm:$0xff] %v1378
    %1445 = vst [vmem:[#allocation2 + $0x18] sm:$0xff] %v1419
    %1446 = vst [vmem:[#allocation2 + $0x20] sm:$0xff] %v1299
    %1447 = vst [vmem:[#allocation2 + $0x28] sm:$0xff] %v1340
    %1448 = vst [vmem:[#allocation2 + $0x30] sm:$0xff] %v1381
    %1449 = vst [vmem:[#allocation2 + $0x38] sm:$0xff] %v1422
    %1450 = vst [vmem:[#allocation2 + $0x40] sm:$0xff] %v1302
    %1451 = vst [vmem:[#allocation2 + $0x48] sm:$0xff] %v1343
    %1452 = vst [vmem:[#allocation2 + $0x50] sm:$0xff] %v1384
    %1453 = vst [vmem:[#allocation2 + $0x58] sm:$0xff] %v1425
    %1454 = vst [vmem:[#allocation2 + $0x60] sm:$0xff] %v1305
    %1455 = vst [vmem:[#allocation2 + $0x68] sm:$0xff] %v1346
    %1456 = vst [vmem:[#allocation2 + $0x70] sm:$0xff] %v1387
    %1457 = vst [vmem:[#allocation2 + $0x78] sm:$0xff] %v1428
    %1458 = vst [vmem:[#allocation2 + $0x80] sm:$0xff] %v1308
    %1459 = vst [vmem:[#allocation2 + $0x88] sm:$0xff] %v1349
    %1460 = vst [vmem:[#allocation2 + $0x90] sm:$0xff] %v1390
    %1461 = vst [vmem:[#allocation2 + $0x98] sm:$0xff] %v1431
    %1462 = vst [vmem:[#allocation2 + $0xa0] sm:$0xff] %v1311
    %1463 = vst [vmem:[#allocation2 + $0xa8] sm:$0xff] %v1352
    %1464 = vst [vmem:[#allocation2 + $0xb0] sm:$0xff] %v1393
    %1465 = vst [vmem:[#allocation2 + $0xb8] sm:$0xff] %v1434
    %1466 = vst [vmem:[#allocation2 + $0xc0] sm:$0xff] %v1314
    %1467 = vst [vmem:[#allocation2 + $0xc8] sm:$0xff] %v1355
    %1468 = vst [vmem:[#allocation2 + $0xd0] sm:$0xff] %v1396
    %1469 = vst [vmem:[#allocation2 + $0xd8] sm:$0xff] %v1437
    %1470 = vst [vmem:[#allocation2 + $0xe0] sm:$0xff] %v1317
    %1471 = vst [vmem:[#allocation2 + $0xe8] sm:$0xff] %v1358
    %1472 = vst [vmem:[#allocation2 + $0xf0] sm:$0xff] %v1399
    %1473 = vst [vmem:[#allocation2 + $0xf8] sm:$0xff] %v1440
    %v1474 = vld [vmem:[#allocation9] sm:$0xff]
    %v1475 = vld [vmem:[#allocation9 + $0x8] sm:$0xff]
    %v1476 = vld [vmem:[#allocation9 + $0x10] sm:$0xff]
    %v1477 = vld [vmem:[#allocation9 + $0x18] sm:$0xff]
    %v1478 = vld [vmem:[#allocation9 + $0x20] sm:$0xff]
    %v1479 = vld [vmem:[#allocation9 + $0x28] sm:$0xff]
    %v1480 = vld [vmem:[#allocation9 + $0x30] sm:$0xff]
    %v1481 = vld [vmem:[#allocation9 + $0x38] sm:$0xff]
    %v1482 = vld [vmem:[#allocation9 + $0x40] sm:$0xff]
    %v1483 = vld [vmem:[#allocation9 + $0x48] sm:$0xff]
    %v1484 = vld [vmem:[#allocation9 + $0x50] sm:$0xff]
    %v1485 = vld [vmem:[#allocation9 + $0x58] sm:$0xff]
    %v1486 = vld [vmem:[#allocation9 + $0x60] sm:$0xff]
    %v1487 = vld [vmem:[#allocation9 + $0x68] sm:$0xff]
    %v1488 = vld [vmem:[#allocation9 + $0x70] sm:$0xff]
    %v1489 = vld [vmem:[#allocation9 + $0x78] sm:$0xff]
    %v1490 = vld [vmem:[#allocation9 + $0x80] sm:$0xff]
    %v1491 = vld [vmem:[#allocation9 + $0x88] sm:$0xff]
    %v1492 = vld [vmem:[#allocation9 + $0x90] sm:$0xff]
    %v1493 = vld [vmem:[#allocation9 + $0x98] sm:$0xff]
    %v1494 = vld [vmem:[#allocation9 + $0xa0] sm:$0xff]
    %v1495 = vld [vmem:[#allocation9 + $0xa8] sm:$0xff]
    %v1496 = vld [vmem:[#allocation9 + $0xb0] sm:$0xff]
    %v1497 = vld [vmem:[#allocation9 + $0xb8] sm:$0xff]
    %v1498 = vld [vmem:[#allocation9 + $0xc0] sm:$0xff]
    %v1499 = vld [vmem:[#allocation9 + $0xc8] sm:$0xff]
    %v1500 = vld [vmem:[#allocation9 + $0xd0] sm:$0xff]
    %v1501 = vld [vmem:[#allocation9 + $0xd8] sm:$0xff]
    %v1502 = vld [vmem:[#allocation9 + $0xe0] sm:$0xff]
    %v1503 = vld [vmem:[#allocation9 + $0xe8] sm:$0xff]
    %v1504 = vld [vmem:[#allocation9 + $0xf0] sm:$0xff]
    %v1505 = vld [vmem:[#allocation9 + $0xf8] sm:$0xff]
    %v1506 = vld [vmem:[#allocation9 + $0x100] sm:$0xff]
    %v1507 = vld [vmem:[#allocation9 + $0x108] sm:$0xff]
    %v1508 = vld [vmem:[#allocation9 + $0x110] sm:$0xff]
    %v1509 = vld [vmem:[#allocation9 + $0x118] sm:$0xff]
    %v1510 = vld [vmem:[#allocation9 + $0x120] sm:$0xff]
    %v1511 = vld [vmem:[#allocation9 + $0x128] sm:$0xff]
    %v1512 = vld [vmem:[#allocation9 + $0x130] sm:$0xff]
    %v1513 = vld [vmem:[#allocation9 + $0x138] sm:$0xff]
    %v1514 = vld [vmem:[#allocation9 + $0x140] sm:$0xff]
    %v1515 = vld [vmem:[#allocation9 + $0x148] sm:$0xff]
    %v1516 = vld [vmem:[#allocation9 + $0x150] sm:$0xff]
    %v1517 = vld [vmem:[#allocation9 + $0x158] sm:$0xff]
    %v1518 = vld [vmem:[#allocation9 + $0x160] sm:$0xff]
    %v1519 = vld [vmem:[#allocation9 + $0x168] sm:$0xff]
    %v1520 = vld [vmem:[#allocation9 + $0x170] sm:$0xff]
    %v1521 = vld [vmem:[#allocation9 + $0x178] sm:$0xff]
    %v1522 = vld [vmem:[#allocation9 + $0x180] sm:$0xff]
    %v1523 = vld [vmem:[#allocation9 + $0x188] sm:$0xff]
    %v1524 = vld [vmem:[#allocation9 + $0x190] sm:$0xff]
    %v1525 = vld [vmem:[#allocation9 + $0x198] sm:$0xff]
    %v1526 = vld [vmem:[#allocation9 + $0x1a0] sm:$0xff]
    %v1527 = vld [vmem:[#allocation9 + $0x1a8] sm:$0xff]
    %v1528 = vld [vmem:[#allocation9 + $0x1b0] sm:$0xff]
    %v1529 = vld [vmem:[#allocation9 + $0x1b8] sm:$0xff]
    %v1530 = vld [vmem:[#allocation9 + $0x1c0] sm:$0xff]
    %v1531 = vld [vmem:[#allocation9 + $0x1c8] sm:$0xff]
    %v1532 = vld [vmem:[#allocation9 + $0x1d0] sm:$0xff]
    %v1533 = vld [vmem:[#allocation9 + $0x1d8] sm:$0xff]
    %v1534 = vld [vmem:[#allocation9 + $0x1e0] sm:$0xff]
    %v1535 = vld [vmem:[#allocation9 + $0x1e8] sm:$0xff]
    %v1536 = vld [vmem:[#allocation9 + $0x1f0] sm:$0xff]
    %v1537 = vld [vmem:[#allocation9 + $0x1f8] sm:$0xff]
    %v1538 = vld [vmem:[#allocation2] sm:$0xff]
    %v1539 = vld [vmem:[#allocation2 + $0x10] sm:$0xff]
    %v1540 = vld [vmem:[#allocation2 + $0x18] sm:$0xff]
    %v1541 = vmul.f32 %v1538, 0.5
    %v1542 = vtanh.pop %v1541
    %v1543 = vmul.f32 %v1542, 0.5
    %v1544 = vadd.f32 %v1543, 0.5
    %v1545 = vtanh.pop %v1539
    %v1546 = vmul.f32 %v1540, 0.5
    %v1547 = vtanh.pop %v1546
    %v1548 = vmul.f32 %v1547, 0.5
    %v1549 = vadd.f32 %v1548, 0.5
    %v1550 = vmul.f32 %v1544, %v1545
    %v1551 = vtanh.pop %v1550
    %v1552 = vmul.f32 %v1549, %v1551
    %v1553 = vld [vmem:[%s421] sm:$0xff]
    %v1554 = vld [vmem:[%s421 + $0x8] sm:$0xff]
    %v1555 = vld [vmem:[%s421 + $0x10] sm:$0xff]
    %v1556 = vld [vmem:[%s421 + $0x18] sm:$0xff]
    %1557 = vmatpush.msra.mxu0 %v1534
    %1558 = vmatpush.msra.mxu0 %v1530
    %1559 = vmatpush.msra.mxu0 %v1526
    %1560 = vmatpush.msra.mxu0 %v1522
    %1561 = vmatpush.msra.mxu0 %v1518
    %1562 = vmatpush.msra.mxu0 %v1514
    %1563 = vmatpush.msra.mxu0 %v1510
    %1564 = vmatpush.msra.mxu0 %v1506
    %1565 = vmatpush.msra.mxu0 %v1502
    %1566 = vmatpush.msra.mxu0 %v1498
    %1567 = vmatpush.msra.mxu0 %v1494
    %1568 = vmatpush.msra.mxu0 %v1490
    %1569 = vmatpush.msra.mxu0 %v1486
    %1570 = vmatpush.msra.mxu0 %v1482
    %1571 = vmatpush.msra.mxu0 %v1478
    %1572 = vmatpush.msra.mxu0 %v1474
    %1573 = vmatmul.f32.gmra.mxu0 %v1552
    %v1574 = vpop.f32.mrf.mxu0
    %v1575 = vadd.f32 0.0, %v1574
    %1576 = vdwg.mxu0
    %1577 = vmatpush.msra.mxu0 %v1535
    %1578 = vmatpush.msra.mxu0 %v1531
    %1579 = vmatpush.msra.mxu0 %v1527
    %1580 = vmatpush.msra.mxu0 %v1523
    %1581 = vmatpush.msra.mxu0 %v1519
    %1582 = vmatpush.msra.mxu0 %v1515
    %1583 = vmatpush.msra.mxu0 %v1511
    %1584 = vmatpush.msra.mxu0 %v1507
    %1585 = vmatpush.msra.mxu0 %v1503
    %1586 = vmatpush.msra.mxu0 %v1499
    %1587 = vmatpush.msra.mxu0 %v1495
    %1588 = vmatpush.msra.mxu0 %v1491
    %1589 = vmatpush.msra.mxu0 %v1487
    %1590 = vmatpush.msra.mxu0 %v1483
    %1591 = vmatpush.msra.mxu0 %v1479
    %1592 = vmatpush.msra.mxu0 %v1475
    %1593 = vmatmul.f32.gmra.mxu0 %v1552
    %v1594 = vpop.f32.mrf.mxu0
    %v1595 = vadd.f32 0.0, %v1594
    %1596 = vdwg.mxu0
    %1597 = vmatpush.msra.mxu0 %v1536
    %1598 = vmatpush.msra.mxu0 %v1532
    %1599 = vmatpush.msra.mxu0 %v1528
    %1600 = vmatpush.msra.mxu0 %v1524
    %1601 = vmatpush.msra.mxu0 %v1520
    %1602 = vmatpush.msra.mxu0 %v1516
    %1603 = vmatpush.msra.mxu0 %v1512
    %1604 = vmatpush.msra.mxu0 %v1508
    %1605 = vmatpush.msra.mxu0 %v1504
    %1606 = vmatpush.msra.mxu0 %v1500
    %1607 = vmatpush.msra.mxu0 %v1496
    %1608 = vmatpush.msra.mxu0 %v1492
    %1609 = vmatpush.msra.mxu0 %v1488
    %1610 = vmatpush.msra.mxu0 %v1484
    %1611 = vmatpush.msra.mxu0 %v1480
    %1612 = vmatpush.msra.mxu0 %v1476
    %1613 = vmatmul.f32.gmra.mxu0 %v1552
    %v1614 = vpop.f32.mrf.mxu0
    %v1615 = vadd.f32 0.0, %v1614
    %1616 = vdwg.mxu0
    %1617 = vmatpush.msra.mxu0 %v1537
    %1618 = vmatpush.msra.mxu0 %v1533
    %1619 = vmatpush.msra.mxu0 %v1529
    %1620 = vmatpush.msra.mxu0 %v1525
    %1621 = vmatpush.msra.mxu0 %v1521
    %1622 = vmatpush.msra.mxu0 %v1517
    %1623 = vmatpush.msra.mxu0 %v1513
    %1624 = vmatpush.msra.mxu0 %v1509
    %1625 = vmatpush.msra.mxu0 %v1505
    %1626 = vmatpush.msra.mxu0 %v1501
    %1627 = vmatpush.msra.mxu0 %v1497
    %1628 = vmatpush.msra.mxu0 %v1493
    %1629 = vmatpush.msra.mxu0 %v1489
    %1630 = vmatpush.msra.mxu0 %v1485
    %1631 = vmatpush.msra.mxu0 %v1481
    %1632 = vmatpush.msra.mxu0 %v1477
    %1633 = vmatmul.f32.gmra.mxu0 %v1552
    %v1634 = vpop.f32.mrf.mxu0
    %v1635 = vadd.f32 0.0, %v1634
    %1636 = vdwg.mxu0
    %v1637 = vadd.f32 %v1553, %v1575
    %v1638 = vadd.f32 %v1554, %v1595
    %v1639 = vadd.f32 %v1555, %v1615
    %v1640 = vadd.f32 %v1556, %v1635
    %v1641 = vmul.f32 %v1637, 0.5
    %v1642 = vtanh.pop %v1641
    %v1643 = vmul.f32 %v1642, 0.5
    %v1644 = vadd.f32 %v1643, 0.5
    %v1645 = vmul.f32 %v1638, 0.5
    %v1646 = vtanh.pop %v1645
    %v1647 = vmul.f32 %v1646, 0.5
    %v1648 = vadd.f32 %v1647, 0.5
    %v1649 = vtanh.pop %v1639
    %v1650 = vmul.f32 %v1640, 0.5
    %v1651 = vtanh.pop %v1650
    %v1652 = vmul.f32 %v1651, 0.5
    %v1653 = vadd.f32 %v1652, 0.5
    %v1654 = vmul.f32 %v1648, %v1550
    %v1655 = vmul.f32 %v1644, %v1649
    %v1656 = vadd.f32 %v1654, %v1655
    %v1657 = vtanh.pop %v1656
    %v1658 = vmul.f32 %v1653, %v1657
    %v1659 = vld [vmem:[%s532] sm:$0xff]
    %v1660 = vld [vmem:[%s532 + $0x8] sm:$0xff]
    %v1661 = vld [vmem:[%s532 + $0x10] sm:$0xff]
    %v1662 = vld [vmem:[%s532 + $0x18] sm:$0xff]
    %1663 = vmatpush.msra.mxu0 %v1534
    %1664 = vmatpush.msra.mxu0 %v1530
    %1665 = vmatpush.msra.mxu0 %v1526
    %1666 = vmatpush.msra.mxu0 %v1522
    %1667 = vmatpush.msra.mxu0 %v1518
    %1668 = vmatpush.msra.mxu0 %v1514
    %1669 = vmatpush.msra.mxu0 %v1510
    %1670 = vmatpush.msra.mxu0 %v1506
    %1671 = vmatpush.msra.mxu0 %v1502
    %1672 = vmatpush.msra.mxu0 %v1498
    %1673 = vmatpush.msra.mxu0 %v1494
    %1674 = vmatpush.msra.mxu0 %v1490
    %1675 = vmatpush.msra.mxu0 %v1486
    %1676 = vmatpush.msra.mxu0 %v1482
    %1677 = vmatpush.msra.mxu0 %v1478
    %1678 = vmatpush.msra.mxu0 %v1474
    %1679 = vmatmul.f32.gmra.mxu0 %v1658
    %v1680 = vpop.f32.mrf.mxu0
    %v1681 = vadd.f32 0.0, %v1680
    %1682 = vdwg.mxu0
    %1683 = vmatpush.msra.mxu0 %v1535
    %1684 = vmatpush.msra.mxu0 %v1531
    %1685 = vmatpush.msra.mxu0 %v1527
    %1686 = vmatpush.msra.mxu0 %v1523
    %1687 = vmatpush.msra.mxu0 %v1519
    %1688 = vmatpush.msra.mxu0 %v1515
    %1689 = vmatpush.msra.mxu0 %v1511
    %1690 = vmatpush.msra.mxu0 %v1507
    %1691 = vmatpush.msra.mxu0 %v1503
    %1692 = vmatpush.msra.mxu0 %v1499
    %1693 = vmatpush.msra.mxu0 %v1495
    %1694 = vmatpush.msra.mxu0 %v1491
    %1695 = vmatpush.msra.mxu0 %v1487
    %1696 = vmatpush.msra.mxu0 %v1483
    %1697 = vmatpush.msra.mxu0 %v1479
    %1698 = vmatpush.msra.mxu0 %v1475
    %1699 = vmatmul.f32.gmra.mxu0 %v1658
    %v1700 = vpop.f32.mrf.mxu0
    %v1701 = vadd.f32 0.0, %v1700
    %1702 = vdwg.mxu0
    %1703 = vmatpush.msra.mxu0 %v1536
    %1704 = vmatpush.msra.mxu0 %v1532
    %1705 = vmatpush.msra.mxu0 %v1528
    %1706 = vmatpush.msra.mxu0 %v1524
    %1707 = vmatpush.msra.mxu0 %v1520
    %1708 = vmatpush.msra.mxu0 %v1516
    %1709 = vmatpush.msra.mxu0 %v1512
    %1710 = vmatpush.msra.mxu0 %v1508
    %1711 = vmatpush.msra.mxu0 %v1504
    %1712 = vmatpush.msra.mxu0 %v1500
    %1713 = vmatpush.msra.mxu0 %v1496
    %1714 = vmatpush.msra.mxu0 %v1492
    %1715 = vmatpush.msra.mxu0 %v1488
    %1716 = vmatpush.msra.mxu0 %v1484
    %1717 = vmatpush.msra.mxu0 %v1480
    %1718 = vmatpush.msra.mxu0 %v1476
    %1719 = vmatmul.f32.gmra.mxu0 %v1658
    %v1720 = vpop.f32.mrf.mxu0
    %v1721 = vadd.f32 0.0, %v1720
    %1722 = vdwg.mxu0
    %1723 = vmatpush.msra.mxu0 %v1537
    %1724 = vmatpush.msra.mxu0 %v1533
    %1725 = vmatpush.msra.mxu0 %v1529
    %1726 = vmatpush.msra.mxu0 %v1525
    %1727 = vmatpush.msra.mxu0 %v1521
    %1728 = vmatpush.msra.mxu0 %v1517
    %1729 = vmatpush.msra.mxu0 %v1513
    %1730 = vmatpush.msra.mxu0 %v1509
    %1731 = vmatpush.msra.mxu0 %v1505
    %1732 = vmatpush.msra.mxu0 %v1501
    %1733 = vmatpush.msra.mxu0 %v1497
    %1734 = vmatpush.msra.mxu0 %v1493
    %1735 = vmatpush.msra.mxu0 %v1489
    %1736 = vmatpush.msra.mxu0 %v1485
    %1737 = vmatpush.msra.mxu0 %v1481
    %1738 = vmatpush.msra.mxu0 %v1477
    %1739 = vmatmul.f32.gmra.mxu0 %v1658
    %v1740 = vpop.f32.mrf.mxu0
    %v1741 = vadd.f32 0.0, %v1740
    %1742 = vdwg.mxu0
    %v1743 = vadd.f32 %v1659, %v1681
    %v1744 = vadd.f32 %v1660, %v1701
    %v1745 = vadd.f32 %v1661, %v1721
    %v1746 = vadd.f32 %v1662, %v1741
    %v1747 = vmul.f32 %v1743, 0.5
    %v1748 = vtanh.pop %v1747
    %v1749 = vmul.f32 %v1748, 0.5
    %v1750 = vadd.f32 %v1749, 0.5
    %v1751 = vmul.f32 %v1744, 0.5
    %v1752 = vtanh.pop %v1751
    %v1753 = vmul.f32 %v1752, 0.5
    %v1754 = vadd.f32 %v1753, 0.5
    %v1755 = vtanh.pop %v1745
    %v1756 = vmul.f32 %v1746, 0.5
    %v1757 = vtanh.pop %v1756
    %v1758 = vmul.f32 %v1757, 0.5
    %v1759 = vadd.f32 %v1758, 0.5
    %v1760 = vmul.f32 %v1754, %v1656
    %v1761 = vmul.f32 %v1750, %v1755
    %v1762 = vadd.f32 %v1760, %v1761
    %v1763 = vtanh.pop %v1762
    %v1764 = vmul.f32 %v1759, %v1763
    %v1765 = vld [vmem:[%s643] sm:$0xff]
    %v1766 = vld [vmem:[%s643 + $0x8] sm:$0xff]
    %v1767 = vld [vmem:[%s643 + $0x10] sm:$0xff]
    %v1768 = vld [vmem:[%s643 + $0x18] sm:$0xff]
    %1769 = vmatpush.msra.mxu0 %v1534
    %1770 = vmatpush.msra.mxu0 %v1530
    %1771 = vmatpush.msra.mxu0 %v1526
    %1772 = vmatpush.msra.mxu0 %v1522
    %1773 = vmatpush.msra.mxu0 %v1518
    %1774 = vmatpush.msra.mxu0 %v1514
    %1775 = vmatpush.msra.mxu0 %v1510
    %1776 = vmatpush.msra.mxu0 %v1506
    %1777 = vmatpush.msra.mxu0 %v1502
    %1778 = vmatpush.msra.mxu0 %v1498
    %1779 = vmatpush.msra.mxu0 %v1494
    %1780 = vmatpush.msra.mxu0 %v1490
    %1781 = vmatpush.msra.mxu0 %v1486
    %1782 = vmatpush.msra.mxu0 %v1482
    %1783 = vmatpush.msra.mxu0 %v1478
    %1784 = vmatpush.msra.mxu0 %v1474
    %1785 = vmatmul.f32.gmra.mxu0 %v1764
    %v1786 = vpop.f32.mrf.mxu0
    %v1787 = vadd.f32 0.0, %v1786
    %1788 = vdwg.mxu0
    %1789 = vmatpush.msra.mxu0 %v1535
    %1790 = vmatpush.msra.mxu0 %v1531
    %1791 = vmatpush.msra.mxu0 %v1527
    %1792 = vmatpush.msra.mxu0 %v1523
    %1793 = vmatpush.msra.mxu0 %v1519
    %1794 = vmatpush.msra.mxu0 %v1515
    %1795 = vmatpush.msra.mxu0 %v1511
    %1796 = vmatpush.msra.mxu0 %v1507
    %1797 = vmatpush.msra.mxu0 %v1503
    %1798 = vmatpush.msra.mxu0 %v1499
    %1799 = vmatpush.msra.mxu0 %v1495
    %1800 = vmatpush.msra.mxu0 %v1491
    %1801 = vmatpush.msra.mxu0 %v1487
    %1802 = vmatpush.msra.mxu0 %v1483
    %1803 = vmatpush.msra.mxu0 %v1479
    %1804 = vmatpush.msra.mxu0 %v1475
    %1805 = vmatmul.f32.gmra.mxu0 %v1764
    %v1806 = vpop.f32.mrf.mxu0
    %v1807 = vadd.f32 0.0, %v1806
    %1808 = vdwg.mxu0
    %1809 = vmatpush.msra.mxu0 %v1536
    %1810 = vmatpush.msra.mxu0 %v1532
    %1811 = vmatpush.msra.mxu0 %v1528
    %1812 = vmatpush.msra.mxu0 %v1524
    %1813 = vmatpush.msra.mxu0 %v1520
    %1814 = vmatpush.msra.mxu0 %v1516
    %1815 = vmatpush.msra.mxu0 %v1512
    %1816 = vmatpush.msra.mxu0 %v1508
    %1817 = vmatpush.msra.mxu0 %v1504
    %1818 = vmatpush.msra.mxu0 %v1500
    %1819 = vmatpush.msra.mxu0 %v1496
    %1820 = vmatpush.msra.mxu0 %v1492
    %1821 = vmatpush.msra.mxu0 %v1488
    %1822 = vmatpush.msra.mxu0 %v1484
    %1823 = vmatpush.msra.mxu0 %v1480
    %1824 = vmatpush.msra.mxu0 %v1476
    %1825 = vmatmul.f32.gmra.mxu0 %v1764
    %v1826 = vpop.f32.mrf.mxu0
    %v1827 = vadd.f32 0.0, %v1826
    %1828 = vdwg.mxu0
    %1829 = vmatpush.msra.mxu0 %v1537
    %1830 = vmatpush.msra.mxu0 %v1533
    %1831 = vmatpush.msra.mxu0 %v1529
    %1832 = vmatpush.msra.mxu0 %v1525
    %1833 = vmatpush.msra.mxu0 %v1521
    %1834 = vmatpush.msra.mxu0 %v1517
    %1835 = vmatpush.msra.mxu0 %v1513
    %1836 = vmatpush.msra.mxu0 %v1509
    %1837 = vmatpush.msra.mxu0 %v1505
    %1838 = vmatpush.msra.mxu0 %v1501
    %1839 = vmatpush.msra.mxu0 %v1497
    %1840 = vmatpush.msra.mxu0 %v1493
    %1841 = vmatpush.msra.mxu0 %v1489
    %1842 = vmatpush.msra.mxu0 %v1485
    %1843 = vmatpush.msra.mxu0 %v1481
    %1844 = vmatpush.msra.mxu0 %v1477
    %1845 = vmatmul.f32.gmra.mxu0 %v1764
    %v1846 = vpop.f32.mrf.mxu0
    %v1847 = vadd.f32 0.0, %v1846
    %1848 = vdwg.mxu0
    %v1849 = vadd.f32 %v1765, %v1787
    %v1850 = vadd.f32 %v1766, %v1807
    %v1851 = vadd.f32 %v1767, %v1827
    %v1852 = vadd.f32 %v1768, %v1847
    %v1853 = vmul.f32 %v1849, 0.5
    %v1854 = vtanh.pop %v1853
    %v1855 = vmul.f32 %v1854, 0.5
    %v1856 = vadd.f32 %v1855, 0.5
    %v1857 = vmul.f32 %v1850, 0.5
    %v1858 = vtanh.pop %v1857
    %v1859 = vmul.f32 %v1858, 0.5
    %v1860 = vadd.f32 %v1859, 0.5
    %v1861 = vtanh.pop %v1851
    %v1862 = vmul.f32 %v1852, 0.5
    %v1863 = vtanh.pop %v1862
    %v1864 = vmul.f32 %v1863, 0.5
    %v1865 = vadd.f32 %v1864, 0.5
    %v1866 = vmul.f32 %v1860, %v1762
    %v1867 = vmul.f32 %v1856, %v1861
    %v1868 = vadd.f32 %v1866, %v1867
    %v1869 = vtanh.pop %v1868
    %v1870 = vmul.f32 %v1865, %v1869
    %v1871 = vld [vmem:[%s754] sm:$0xff]
    %v1872 = vld [vmem:[%s754 + $0x8] sm:$0xff]
    %v1873 = vld [vmem:[%s754 + $0x10] sm:$0xff]
    %v1874 = vld [vmem:[%s754 + $0x18] sm:$0xff]
    %1875 = vmatpush.msra.mxu0 %v1534
    %1876 = vmatpush.msra.mxu0 %v1530
    %1877 = vmatpush.msra.mxu0 %v1526
    %1878 = vmatpush.msra.mxu0 %v1522
    %1879 = vmatpush.msra.mxu0 %v1518
    %1880 = vmatpush.msra.mxu0 %v1514
    %1881 = vmatpush.msra.mxu0 %v1510
    %1882 = vmatpush.msra.mxu0 %v1506
    %1883 = vmatpush.msra.mxu0 %v1502
    %1884 = vmatpush.msra.mxu0 %v1498
    %1885 = vmatpush.msra.mxu0 %v1494
    %1886 = vmatpush.msra.mxu0 %v1490
    %1887 = vmatpush.msra.mxu0 %v1486
    %1888 = vmatpush.msra.mxu0 %v1482
    %1889 = vmatpush.msra.mxu0 %v1478
    %1890 = vmatpush.msra.mxu0 %v1474
    %1891 = vmatmul.f32.gmra.mxu0 %v1870
    %v1892 = vpop.f32.mrf.mxu0
    %v1893 = vadd.f32 0.0, %v1892
    %1894 = vdwg.mxu0
    %1895 = vmatpush.msra.mxu0 %v1535
    %1896 = vmatpush.msra.mxu0 %v1531
    %1897 = vmatpush.msra.mxu0 %v1527
    %1898 = vmatpush.msra.mxu0 %v1523
    %1899 = vmatpush.msra.mxu0 %v1519
    %1900 = vmatpush.msra.mxu0 %v1515
    %1901 = vmatpush.msra.mxu0 %v1511
    %1902 = vmatpush.msra.mxu0 %v1507
    %1903 = vmatpush.msra.mxu0 %v1503
    %1904 = vmatpush.msra.mxu0 %v1499
    %1905 = vmatpush.msra.mxu0 %v1495
    %1906 = vmatpush.msra.mxu0 %v1491
    %1907 = vmatpush.msra.mxu0 %v1487
    %1908 = vmatpush.msra.mxu0 %v1483
    %1909 = vmatpush.msra.mxu0 %v1479
    %1910 = vmatpush.msra.mxu0 %v1475
    %1911 = vmatmul.f32.gmra.mxu0 %v1870
    %v1912 = vpop.f32.mrf.mxu0
    %v1913 = vadd.f32 0.0, %v1912
    %1914 = vdwg.mxu0
    %1915 = vmatpush.msra.mxu0 %v1536
    %1916 = vmatpush.msra.mxu0 %v1532
    %1917 = vmatpush.msra.mxu0 %v1528
    %1918 = vmatpush.msra.mxu0 %v1524
    %1919 = vmatpush.msra.mxu0 %v1520
    %1920 = vmatpush.msra.mxu0 %v1516
    %1921 = vmatpush.msra.mxu0 %v1512
    %1922 = vmatpush.msra.mxu0 %v1508
    %1923 = vmatpush.msra.mxu0 %v1504
    %1924 = vmatpush.msra.mxu0 %v1500
    %1925 = vmatpush.msra.mxu0 %v1496
    %1926 = vmatpush.msra.mxu0 %v1492
    %1927 = vmatpush.msra.mxu0 %v1488
    %1928 = vmatpush.msra.mxu0 %v1484
    %1929 = vmatpush.msra.mxu0 %v1480
    %1930 = vmatpush.msra.mxu0 %v1476
    %1931 = vmatmul.f32.gmra.mxu0 %v1870
    %v1932 = vpop.f32.mrf.mxu0
    %v1933 = vadd.f32 0.0, %v1932
    %1934 = vdwg.mxu0
    %1935 = vmatpush.msra.mxu0 %v1537
    %1936 = vmatpush.msra.mxu0 %v1533
    %1937 = vmatpush.msra.mxu0 %v1529
    %1938 = vmatpush.msra.mxu0 %v1525
    %1939 = vmatpush.msra.mxu0 %v1521
    %1940 = vmatpush.msra.mxu0 %v1517
    %1941 = vmatpush.msra.mxu0 %v1513
    %1942 = vmatpush.msra.mxu0 %v1509
    %1943 = vmatpush.msra.mxu0 %v1505
    %1944 = vmatpush.msra.mxu0 %v1501
    %1945 = vmatpush.msra.mxu0 %v1497
    %1946 = vmatpush.msra.mxu0 %v1493
    %1947 = vmatpush.msra.mxu0 %v1489
    %1948 = vmatpush.msra.mxu0 %v1485
    %1949 = vmatpush.msra.mxu0 %v1481
    %1950 = vmatpush.msra.mxu0 %v1477
    %1951 = vmatmul.f32.gmra.mxu0 %v1870
    %v1952 = vpop.f32.mrf.mxu0
    %v1953 = vadd.f32 0.0, %v1952
    %1954 = vdwg.mxu0
    %v1955 = vadd.f32 %v1871, %v1893
    %v1956 = vadd.f32 %v1872, %v1913
    %v1957 = vadd.f32 %v1873, %v1933
    %v1958 = vadd.f32 %v1874, %v1953
    %v1959 = vmul.f32 %v1955, 0.5
    %v1960 = vtanh.pop %v1959
    %v1961 = vmul.f32 %v1960, 0.5
    %v1962 = vadd.f32 %v1961, 0.5
    %v1963 = vmul.f32 %v1956, 0.5
    %v1964 = vtanh.pop %v1963
    %v1965 = vmul.f32 %v1964, 0.5
    %v1966 = vadd.f32 %v1965, 0.5
    %v1967 = vtanh.pop %v1957
    %v1968 = vmul.f32 %v1958, 0.5
    %v1969 = vtanh.pop %v1968
    %v1970 = vmul.f32 %v1969, 0.5
    %v1971 = vadd.f32 %v1970, 0.5
    %v1972 = vmul.f32 %v1966, %v1868
    %v1973 = vmul.f32 %v1962, %v1967
    %v1974 = vadd.f32 %v1972, %v1973
    %v1975 = vtanh.pop %v1974
    %v1976 = vmul.f32 %v1971, %v1975
    %v1977 = vld [vmem:[%s865] sm:$0xff]
    %v1978 = vld [vmem:[%s865 + $0x8] sm:$0xff]
    %v1979 = vld [vmem:[%s865 + $0x10] sm:$0xff]
    %v1980 = vld [vmem:[%s865 + $0x18] sm:$0xff]
    %1981 = vmatpush.msra.mxu0 %v1534
    %1982 = vmatpush.msra.mxu0 %v1530
    %1983 = vmatpush.msra.mxu0 %v1526
    %1984 = vmatpush.msra.mxu0 %v1522
    %1985 = vmatpush.msra.mxu0 %v1518
    %1986 = vmatpush.msra.mxu0 %v1514
    %1987 = vmatpush.msra.mxu0 %v1510
    %1988 = vmatpush.msra.mxu0 %v1506
    %1989 = vmatpush.msra.mxu0 %v1502
    %1990 = vmatpush.msra.mxu0 %v1498
    %1991 = vmatpush.msra.mxu0 %v1494
    %1992 = vmatpush.msra.mxu0 %v1490
    %1993 = vmatpush.msra.mxu0 %v1486
    %1994 = vmatpush.msra.mxu0 %v1482
    %1995 = vmatpush.msra.mxu0 %v1478
    %1996 = vmatpush.msra.mxu0 %v1474
    %1997 = vmatmul.f32.gmra.mxu0 %v1976
    %v1998 = vpop.f32.mrf.mxu0
    %v1999 = vadd.f32 0.0, %v1998
    %2000 = vdwg.mxu0
    %2001 = vmatpush.msra.mxu0 %v1535
    %2002 = vmatpush.msra.mxu0 %v1531
    %2003 = vmatpush.msra.mxu0 %v1527
    %2004 = vmatpush.msra.mxu0 %v1523
    %2005 = vmatpush.msra.mxu0 %v1519
    %2006 = vmatpush.msra.mxu0 %v1515
    %2007 = vmatpush.msra.mxu0 %v1511
    %2008 = vmatpush.msra.mxu0 %v1507
    %2009 = vmatpush.msra.mxu0 %v1503
    %2010 = vmatpush.msra.mxu0 %v1499
    %2011 = vmatpush.msra.mxu0 %v1495
    %2012 = vmatpush.msra.mxu0 %v1491
    %2013 = vmatpush.msra.mxu0 %v1487
    %2014 = vmatpush.msra.mxu0 %v1483
    %2015 = vmatpush.msra.mxu0 %v1479
    %2016 = vmatpush.msra.mxu0 %v1475
    %2017 = vmatmul.f32.gmra.mxu0 %v1976
    %v2018 = vpop.f32.mrf.mxu0
    %v2019 = vadd.f32 0.0, %v2018
    %2020 = vdwg.mxu0
    %2021 = vmatpush.msra.mxu0 %v1536
    %2022 = vmatpush.msra.mxu0 %v1532
    %2023 = vmatpush.msra.mxu0 %v1528
    %2024 = vmatpush.msra.mxu0 %v1524
    %2025 = vmatpush.msra.mxu0 %v1520
    %2026 = vmatpush.msra.mxu0 %v1516
    %2027 = vmatpush.msra.mxu0 %v1512
    %2028 = vmatpush.msra.mxu0 %v1508
    %2029 = vmatpush.msra.mxu0 %v1504
    %2030 = vmatpush.msra.mxu0 %v1500
    %2031 = vmatpush.msra.mxu0 %v1496
    %2032 = vmatpush.msra.mxu0 %v1492
    %2033 = vmatpush.msra.mxu0 %v1488
    %2034 = vmatpush.msra.mxu0 %v1484
    %2035 = vmatpush.msra.mxu0 %v1480
    %2036 = vmatpush.msra.mxu0 %v1476
    %2037 = vmatmul.f32.gmra.mxu0 %v1976
    %v2038 = vpop.f32.mrf.mxu0
    %v2039 = vadd.f32 0.0, %v2038
    %2040 = vdwg.mxu0
    %2041 = vmatpush.msra.mxu0 %v1537
    %2042 = vmatpush.msra.mxu0 %v1533
    %2043 = vmatpush.msra.mxu0 %v1529
    %2044 = vmatpush.msra.mxu0 %v1525
    %2045 = vmatpush.msra.mxu0 %v1521
    %2046 = vmatpush.msra.mxu0 %v1517
    %2047 = vmatpush.msra.mxu0 %v1513
    %2048 = vmatpush.msra.mxu0 %v1509
    %2049 = vmatpush.msra.mxu0 %v1505
    %2050 = vmatpush.msra.mxu0 %v1501
    %2051 = vmatpush.msra.mxu0 %v1497
    %2052 = vmatpush.msra.mxu0 %v1493
    %2053 = vmatpush.msra.mxu0 %v1489
    %2054 = vmatpush.msra.mxu0 %v1485
    %2055 = vmatpush.msra.mxu0 %v1481
    %2056 = vmatpush.msra.mxu0 %v1477
    %2057 = vmatmul.f32.gmra.mxu0 %v1976
    %v2058 = vpop.f32.mrf.mxu0
    %v2059 = vadd.f32 0.0, %v2058
    %2060 = vdwg.mxu0
    %v2061 = vadd.f32 %v1977, %v1999
    %v2062 = vadd.f32 %v1978, %v2019
    %v2063 = vadd.f32 %v1979, %v2039
    %v2064 = vadd.f32 %v1980, %v2059
    %v2065 = vmul.f32 %v2061, 0.5
    %v2066 = vtanh.pop %v2065
    %v2067 = vmul.f32 %v2066, 0.5
    %v2068 = vadd.f32 %v2067, 0.5
    %v2069 = vmul.f32 %v2062, 0.5
    %v2070 = vtanh.pop %v2069
    %v2071 = vmul.f32 %v2070, 0.5
    %v2072 = vadd.f32 %v2071, 0.5
    %v2073 = vtanh.pop %v2063
    %v2074 = vmul.f32 %v2064, 0.5
    %v2075 = vtanh.pop %v2074
    %v2076 = vmul.f32 %v2075, 0.5
    %v2077 = vadd.f32 %v2076, 0.5
    %v2078 = vmul.f32 %v2072, %v1974
    %v2079 = vmul.f32 %v2068, %v2073
    %v2080 = vadd.f32 %v2078, %v2079
    %v2081 = vtanh.pop %v2080
    %v2082 = vmul.f32 %v2077, %v2081
    %v2083 = vld [vmem:[%s976] sm:$0xff]
    %v2084 = vld [vmem:[%s976 + $0x8] sm:$0xff]
    %v2085 = vld [vmem:[%s976 + $0x10] sm:$0xff]
    %v2086 = vld [vmem:[%s976 + $0x18] sm:$0xff]
    %2087 = vmatpush.msra.mxu0 %v1534
    %2088 = vmatpush.msra.mxu0 %v1530
    %2089 = vmatpush.msra.mxu0 %v1526
    %2090 = vmatpush.msra.mxu0 %v1522
    %2091 = vmatpush.msra.mxu0 %v1518
    %2092 = vmatpush.msra.mxu0 %v1514
    %2093 = vmatpush.msra.mxu0 %v1510
    %2094 = vmatpush.msra.mxu0 %v1506
    %2095 = vmatpush.msra.mxu0 %v1502
    %2096 = vmatpush.msra.mxu0 %v1498
    %2097 = vmatpush.msra.mxu0 %v1494
    %2098 = vmatpush.msra.mxu0 %v1490
    %2099 = vmatpush.msra.mxu0 %v1486
    %2100 = vmatpush.msra.mxu0 %v1482
    %2101 = vmatpush.msra.mxu0 %v1478
    %2102 = vmatpush.msra.mxu0 %v1474
    %2103 = vmatmul.f32.gmra.mxu0 %v2082
    %v2104 = vpop.f32.mrf.mxu0
    %v2105 = vadd.f32 0.0, %v2104
    %2106 = vdwg.mxu0
    %2107 = vmatpush.msra.mxu0 %v1535
    %2108 = vmatpush.msra.mxu0 %v1531
    %2109 = vmatpush.msra.mxu0 %v1527
    %2110 = vmatpush.msra.mxu0 %v1523
    %2111 = vmatpush.msra.mxu0 %v1519
    %2112 = vmatpush.msra.mxu0 %v1515
    %2113 = vmatpush.msra.mxu0 %v1511
    %2114 = vmatpush.msra.mxu0 %v1507
    %2115 = vmatpush.msra.mxu0 %v1503
    %2116 = vmatpush.msra.mxu0 %v1499
    %2117 = vmatpush.msra.mxu0 %v1495
    %2118 = vmatpush.msra.mxu0 %v1491
    %2119 = vmatpush.msra.mxu0 %v1487
    %2120 = vmatpush.msra.mxu0 %v1483
    %2121 = vmatpush.msra.mxu0 %v1479
    %2122 = vmatpush.msra.mxu0 %v1475
    %2123 = vmatmul.f32.gmra.mxu0 %v2082
    %v2124 = vpop.f32.mrf.mxu0
    %v2125 = vadd.f32 0.0, %v2124
    %2126 = vdwg.mxu0
    %2127 = vmatpush.msra.mxu0 %v1536
    %2128 = vmatpush.msra.mxu0 %v1532
    %2129 = vmatpush.msra.mxu0 %v1528
    %2130 = vmatpush.msra.mxu0 %v1524
    %2131 = vmatpush.msra.mxu0 %v1520
    %2132 = vmatpush.msra.mxu0 %v1516
    %2133 = vmatpush.msra.mxu0 %v1512
    %2134 = vmatpush.msra.mxu0 %v1508
    %2135 = vmatpush.msra.mxu0 %v1504
    %2136 = vmatpush.msra.mxu0 %v1500
    %2137 = vmatpush.msra.mxu0 %v1496
    %2138 = vmatpush.msra.mxu0 %v1492
    %2139 = vmatpush.msra.mxu0 %v1488
    %2140 = vmatpush.msra.mxu0 %v1484
    %2141 = vmatpush.msra.mxu0 %v1480
    %2142 = vmatpush.msra.mxu0 %v1476
    %2143 = vmatmul.f32.gmra.mxu0 %v2082
    %v2144 = vpop.f32.mrf.mxu0
    %v2145 = vadd.f32 0.0, %v2144
    %2146 = vdwg.mxu0
    %2147 = vmatpush.msra.mxu0 %v1537
    %2148 = vmatpush.msra.mxu0 %v1533
    %2149 = vmatpush.msra.mxu0 %v1529
    %2150 = vmatpush.msra.mxu0 %v1525
    %2151 = vmatpush.msra.mxu0 %v1521
    %2152 = vmatpush.msra.mxu0 %v1517
    %2153 = vmatpush.msra.mxu0 %v1513
    %2154 = vmatpush.msra.mxu0 %v1509
    %2155 = vmatpush.msra.mxu0 %v1505
    %2156 = vmatpush.msra.mxu0 %v1501
    %2157 = vmatpush.msra.mxu0 %v1497
    %2158 = vmatpush.msra.mxu0 %v1493
    %2159 = vmatpush.msra.mxu0 %v1489
    %2160 = vmatpush.msra.mxu0 %v1485
    %2161 = vmatpush.msra.mxu0 %v1481
    %2162 = vmatpush.msra.mxu0 %v1477
    %2163 = vmatmul.f32.gmra.mxu0 %v2082
    %v2164 = vpop.f32.mrf.mxu0
    %v2165 = vadd.f32 0.0, %v2164
    %2166 = vdwg.mxu0
    %v2167 = vadd.f32 %v2083, %v2105
    %v2168 = vadd.f32 %v2084, %v2125
    %v2169 = vadd.f32 %v2085, %v2145
    %v2170 = vadd.f32 %v2086, %v2165
    %v2171 = vmul.f32 %v2167, 0.5
    %v2172 = vtanh.pop %v2171
    %v2173 = vmul.f32 %v2172, 0.5
    %v2174 = vadd.f32 %v2173, 0.5
    %v2175 = vmul.f32 %v2168, 0.5
    %v2176 = vtanh.pop %v2175
    %v2177 = vmul.f32 %v2176, 0.5
    %v2178 = vadd.f32 %v2177, 0.5
    %v2179 = vtanh.pop %v2169
    %v2180 = vmul.f32 %v2170, 0.5
    %v2181 = vtanh.pop %v2180
    %v2182 = vmul.f32 %v2181, 0.5
    %v2183 = vadd.f32 %v2182, 0.5
    %v2184 = vmul.f32 %v2178, %v2080
    %v2185 = vmul.f32 %v2174, %v2179
    %v2186 = vadd.f32 %v2184, %v2185
    %v2187 = vtanh.pop %v2186
    %v2188 = vmul.f32 %v2183, %v2187
    %v2189 = vld [vmem:[%s1087] sm:$0xff]
    %v2190 = vld [vmem:[%s1087 + $0x8] sm:$0xff]
    %v2191 = vld [vmem:[%s1087 + $0x10] sm:$0xff]
    %v2192 = vld [vmem:[%s1087 + $0x18] sm:$0xff]
    %2193 = vmatpush.msra.mxu0 %v1534
    %2194 = vmatpush.msra.mxu0 %v1530
    %2195 = vmatpush.msra.mxu0 %v1526
    %2196 = vmatpush.msra.mxu0 %v1522
    %2197 = vmatpush.msra.mxu0 %v1518
    %2198 = vmatpush.msra.mxu0 %v1514
    %2199 = vmatpush.msra.mxu0 %v1510
    %2200 = vmatpush.msra.mxu0 %v1506
    %2201 = vmatpush.msra.mxu0 %v1502
    %2202 = vmatpush.msra.mxu0 %v1498
    %2203 = vmatpush.msra.mxu0 %v1494
    %2204 = vmatpush.msra.mxu0 %v1490
    %2205 = vmatpush.msra.mxu0 %v1486
    %2206 = vmatpush.msra.mxu0 %v1482
    %2207 = vmatpush.msra.mxu0 %v1478
    %2208 = vmatpush.msra.mxu0 %v1474
    %2209 = vmatmul.f32.gmra.mxu0 %v2188
    %v2210 = vpop.f32.mrf.mxu0
    %v2211 = vadd.f32 0.0, %v2210
    %2212 = vdwg.mxu0
    %2213 = vmatpush.msra.mxu0 %v1535
    %2214 = vmatpush.msra.mxu0 %v1531
    %2215 = vmatpush.msra.mxu0 %v1527
    %2216 = vmatpush.msra.mxu0 %v1523
    %2217 = vmatpush.msra.mxu0 %v1519
    %2218 = vmatpush.msra.mxu0 %v1515
    %2219 = vmatpush.msra.mxu0 %v1511
    %2220 = vmatpush.msra.mxu0 %v1507
    %2221 = vmatpush.msra.mxu0 %v1503
    %2222 = vmatpush.msra.mxu0 %v1499
    %2223 = vmatpush.msra.mxu0 %v1495
    %2224 = vmatpush.msra.mxu0 %v1491
    %2225 = vmatpush.msra.mxu0 %v1487
    %2226 = vmatpush.msra.mxu0 %v1483
    %2227 = vmatpush.msra.mxu0 %v1479
    %2228 = vmatpush.msra.mxu0 %v1475
    %2229 = vmatmul.f32.gmra.mxu0 %v2188
    %v2230 = vpop.f32.mrf.mxu0
    %v2231 = vadd.f32 0.0, %v2230
    %2232 = vdwg.mxu0
    %2233 = vmatpush.msra.mxu0 %v1536
    %2234 = vmatpush.msra.mxu0 %v1532
    %2235 = vmatpush.msra.mxu0 %v1528
    %2236 = vmatpush.msra.mxu0 %v1524
    %2237 = vmatpush.msra.mxu0 %v1520
    %2238 = vmatpush.msra.mxu0 %v1516
    %2239 = vmatpush.msra.mxu0 %v1512
    %2240 = vmatpush.msra.mxu0 %v1508
    %2241 = vmatpush.msra.mxu0 %v1504
    %2242 = vmatpush.msra.mxu0 %v1500
    %2243 = vmatpush.msra.mxu0 %v1496
    %2244 = vmatpush.msra.mxu0 %v1492
    %2245 = vmatpush.msra.mxu0 %v1488
    %2246 = vmatpush.msra.mxu0 %v1484
    %2247 = vmatpush.msra.mxu0 %v1480
    %2248 = vmatpush.msra.mxu0 %v1476
    %2249 = vmatmul.f32.gmra.mxu0 %v2188
    %v2250 = vpop.f32.mrf.mxu0
    %v2251 = vadd.f32 0.0, %v2250
    %2252 = vdwg.mxu0
    %2253 = vmatpush.msra.mxu0 %v1537
    %2254 = vmatpush.msra.mxu0 %v1533
    %2255 = vmatpush.msra.mxu0 %v1529
    %2256 = vmatpush.msra.mxu0 %v1525
    %2257 = vmatpush.msra.mxu0 %v1521
    %2258 = vmatpush.msra.mxu0 %v1517
    %2259 = vmatpush.msra.mxu0 %v1513
    %2260 = vmatpush.msra.mxu0 %v1509
    %2261 = vmatpush.msra.mxu0 %v1505
    %2262 = vmatpush.msra.mxu0 %v1501
    %2263 = vmatpush.msra.mxu0 %v1497
    %2264 = vmatpush.msra.mxu0 %v1493
    %2265 = vmatpush.msra.mxu0 %v1489
    %2266 = vmatpush.msra.mxu0 %v1485
    %2267 = vmatpush.msra.mxu0 %v1481
    %2268 = vmatpush.msra.mxu0 %v1477
    %2269 = vmatmul.f32.gmra.mxu0 %v2188
    %v2270 = vpop.f32.mrf.mxu0
    %v2271 = vadd.f32 0.0, %v2270
    %2272 = vdwg.mxu0
    %v2273 = vadd.f32 %v2189, %v2211
    %v2274 = vadd.f32 %v2190, %v2231
    %v2275 = vadd.f32 %v2191, %v2251
    %v2276 = vadd.f32 %v2192, %v2271
    %v2277 = vmul.f32 %v2273, 0.5
    %v2278 = vtanh.pop %v2277
    %v2279 = vmul.f32 %v2278, 0.5
    %v2280 = vadd.f32 %v2279, 0.5
    %v2281 = vmul.f32 %v2274, 0.5
    %v2282 = vtanh.pop %v2281
    %v2283 = vmul.f32 %v2282, 0.5
    %v2284 = vadd.f32 %v2283, 0.5
    %v2285 = vtanh.pop %v2275
    %v2286 = vmul.f32 %v2276, 0.5
    %v2287 = vtanh.pop %v2286
    %v2288 = vmul.f32 %v2287, 0.5
    %v2289 = vadd.f32 %v2288, 0.5
    %v2290 = vmul.f32 %v2284, %v2186
    %v2291 = vmul.f32 %v2280, %v2285
    %v2292 = vadd.f32 %v2290, %v2291
    %v2293 = vtanh.pop %v2292
    %v2294 = vmul.f32 %v2289, %v2293
    %v2295 = vmax.f32 %v2294, 0.0
    %v2296 = vld [vmem:[#allocation10] sm:$0xff]
    %v2297 = vld [vmem:[#allocation10 + $0x8] sm:$0xff]
    %v2298 = vld [vmem:[#allocation10 + $0x10] sm:$0xff]
    %v2299 = vld [vmem:[#allocation10 + $0x18] sm:$0xff]
    %v2300 = vld [vmem:[#allocation10 + $0x20] sm:$0xff]
    %v2301 = vld [vmem:[#allocation10 + $0x28] sm:$0xff]
    %v2302 = vld [vmem:[#allocation10 + $0x30] sm:$0xff]
    %v2303 = vld [vmem:[#allocation10 + $0x38] sm:$0xff]
    %v2304 = vld [vmem:[#allocation10 + $0x40] sm:$0xff]
    %v2305 = vld [vmem:[#allocation10 + $0x48] sm:$0xff]
    %v2306 = vld [vmem:[#allocation10 + $0x50] sm:$0xff]
    %v2307 = vld [vmem:[#allocation10 + $0x58] sm:$0xff]
    %v2308 = vld [vmem:[#allocation10 + $0x60] sm:$0xff]
    %v2309 = vld [vmem:[#allocation10 + $0x68] sm:$0xff]
    %v2310 = vld [vmem:[#allocation10 + $0x70] sm:$0xff]
    %v2311 = vld [vmem:[#allocation10 + $0x78] sm:$0xff]
    %v2312 = vld [vmem:[%s8] sm:$0x1]
    %v2314 = vperm.slane %v2312, 0
    %2316 = vmatpush.msra.mxu0 %v2311
    %2317 = vmatpush.msra.mxu0 %v2310
    %2318 = vmatpush.msra.mxu0 %v2309
    %2319 = vmatpush.msra.mxu0 %v2308
    %2320 = vmatpush.msra.mxu0 %v2307
    %2321 = vmatpush.msra.mxu0 %v2306
    %2322 = vmatpush.msra.mxu0 %v2305
    %2323 = vmatpush.msra.mxu0 %v2304
    %2324 = vmatpush.msra.mxu0 %v2303
    %2325 = vmatpush.msra.mxu0 %v2302
    %2326 = vmatpush.msra.mxu0 %v2301
    %2327 = vmatpush.msra.mxu0 %v2300
    %2328 = vmatpush.msra.mxu0 %v2299
    %2329 = vmatpush.msra.mxu0 %v2298
    %2330 = vmatpush.msra.mxu0 %v2297
    %2331 = vmatpush.msra.mxu0 %v2296
    %2332 = vmatmul.f32.gmra.mxu0 %v2295
    %v2333 = vpop.f32.mrf.mxu0
    %v2334 = vadd.f32 %v2314, %v2333
    %2335 = vdwg.mxu0
    %2336 = vst [vmem:[#allocation12] sm:$0xff] %v2334
    // Predicated region
    $region54: #{tpu_custom_call.1} parent=1 // pred_check
      _
    $region55: #{tpu_custom_call.1} parent=1 // pred_check_branch
      %2338 = sbr.rel (0) target = $region57
    $region56: #{tpu_custom_call.1} parent=1 // pred_region
      %2340 = vsyncadd [#allocation6], 0
      %s2342 = sshll.u32 [#allocation12], 4
      %s2343 = int_to_ptr.vmem [resolvable:$true] %s2342
      %s2344 = sshll.u32 %s9, 4
      %s2345 = int_to_ptr.hbm [resolvable:$true] %s2344
      %2347 = dma.vmem_to_hbm [thread:$0]  %s2343, 128, %s2345, [#allocation6]
    $region57: #{tpu_custom_call.1} parent=1 // pred_fallthru
      _
    // Predicated region
    $region58: #{tpu_custom_call.1} parent=1 // pred_check
      _
    $region59: #{tpu_custom_call.1} parent=1 // pred_check_branch
      %2349 = sbr.rel (0) target = $region61
    $region60: #{tpu_custom_call.1} parent=1 // pred_region
      %2351 = dma.done [#allocation6], 128
    $region61: #{tpu_custom_call.1} parent=1 // pred_fallthru
      _
    %2352 = vsyncpa [#allocation5], 1
    %2353 = vsyncpa [#allocation8], 1
    %2354 = vsyncpa [#allocation11], 1
    %2355 = vsyncpa [#allocation6], 1

</llo_original>
